<compile_context>
chip_gen: v5e
topology: v5e:2x2
jax: 0.10.0
libtpu: 0.0.40
codegen_flags: <defaults>
</compile_context>

<pallas_src>
import math
import jax
import jax.numpy as jnp
from jax.experimental import pallas as pl
from jax.experimental.pallas import tpu as pltpu

# ----------------------------- model hyperparameters (tiny, synthetic) -----------------------
VOCAB = 128
D_MODEL = 32
N_HEADS = 2
D_KV = 16           # head dim
D_FF = 64
N_ENC_LAYERS = 1
N_DEC_LAYERS = 1
NUM_BUCKETS = 32    # T5 relative-position buckets
MAX_DISTANCE = 128
LN_EPS = 1e-6
NEG_INF = -1e9
HD = N_HEADS * D_KV

DP = 128                    # d_model padded to a full 128-lane tile (lane-dense stores/contractions)
COMPUTE_DT = jnp.bfloat16   # MXU operand dtype; accumulation stays f32


# ----------------------------------- in-kernel helpers ---------------------------------------

def _rms(x, w):
    # T5 LayerNorm: no mean subtraction, no bias; stats in f32.
    # Padding lanes (>= D_MODEL) are guaranteed zero, so sum/ D_MODEL == true mean over d_model.
    xf = x.astype(jnp.float32)
    var = jnp.sum(xf * xf, axis=-1, keepdims=True) * (1.0 / D_MODEL)
    return xf * jax.lax.rsqrt(var + LN_EPS) * w


def _attention(q_h, kv_h, wq, wk, wv, wo, bias):
    """Head-batched multi-head attention + output projection (one batch element).

    q_h : [Sq, DP] f32   pre-normed query-side hidden states
    kv_h: [Sk, DP] f32   pre-normed / encoder key-value-side hidden states
    wq/wk/wv: [H, DP, D_KV] bf16 ; wo: [H, D_KV, DP] bf16 (per-head stacked, zero-padded)
    bias: additive f32 bias broadcastable to [H, Sq, Sk]
    Returns [Sq, DP] f32.  T5 attention has NO 1/sqrt(d) scaling.
    All einsums carry a single leading head batch dim -> one batched MXU op each.
    """
    H = N_HEADS
    qb = jnp.broadcast_to(q_h.astype(COMPUTE_DT)[None], (H,) + q_h.shape)   # [H, Sq, DP]
    kb = jnp.broadcast_to(kv_h.astype(COMPUTE_DT)[None], (H,) + kv_h.shape)  # [H, Sk, DP]

    q = jnp.einsum('hsd,hdf->hsf', qb, wq, preferred_element_type=jnp.float32)  # [H, Sq, dkv]
    k = jnp.einsum('hsd,hdf->hsf', kb, wk, preferred_element_type=jnp.float32)  # [H, Sk, dkv]
    v = jnp.einsum('hsd,hdf->hsf', kb, wv, preferred_element_type=jnp.float32)  # [H, Sk, dkv]

    s = jnp.einsum('hqd,hkd->hqk', q.astype(COMPUTE_DT), k.astype(COMPUTE_DT),
                   preferred_element_type=jnp.float32) + bias                    # [H, Sq, Sk]
    m = jnp.max(s, axis=-1, keepdims=True)
    e = jnp.exp(s - m)
    p = e * pl.reciprocal(jnp.sum(e, axis=-1, keepdims=True), approx=True)

    ctx = jnp.einsum('hqk,hkd->hqd', p.astype(COMPUTE_DT), v.astype(COMPUTE_DT),
                     preferred_element_type=jnp.float32)                         # [H, Sq, dkv]
    out = jnp.einsum('hsd,hdo->hso', ctx.astype(COMPUTE_DT), wo,
                     preferred_element_type=jnp.float32)                         # [H, Sq, DP]
    return jnp.sum(out, axis=0)                                                  # [Sq, DP]


# ----------------------------------- fused layer kernels -------------------------------------

def _make_enc_layer_kernel(apply_final):
    def kernel(x_ref, pad_ref, rel_ref, ln1_ref, wq_ref, wk_ref, wv_ref, wo_ref,
               ln2_ref, wi_ref, wff_ref, *rest):
        if apply_final:
            fln_ref, o_ref = rest
        else:
            (o_ref,) = rest

        x = x_ref[0].astype(jnp.float32)                          # [S, DP]
        # additive bias built once: rel-pos [H,S,S] + key-padding [1,1,S]
        bias = rel_ref[...] + pad_ref[...]

        # --- self-attention sub-layer ---
        h = _rms(x, ln1_ref[...])
        x = x + _attention(h, h, wq_ref[...], wk_ref[...], wv_ref[...], wo_ref[...], bias)

        # --- FFN sub-layer (DenseReluDense, no biases) ---
        h = _rms(x, ln2_ref[...])
        ff = jnp.maximum(
            jnp.dot(h.astype(COMPUTE_DT), wi_ref[...], preferred_element_type=jnp.float32), 0.0)
        x = x + jnp.dot(ff.astype(COMPUTE_DT), wff_ref[...], preferred_element_type=jnp.float32)

        if apply_final:                                           # fused encoder final RMSNorm
            x = _rms(x, fln_ref[...])
        o_ref[0] = x.astype(COMPUTE_DT)
    return kernel


def _make_dec_layer_kernel(Sd):
    def kernel(y_ref, enc_ref, encpad_ref, rel_ref,
               ln1_ref, wq_s, wk_s, wv_s, wo_s,
               ln2_ref, wq_c, wk_c, wv_c, wo_c,
               ln3_ref, wi_ref, wff_ref, o_ref):
        x = y_ref[0].astype(jnp.float32)                          # [Sd, DP]
        enc = enc_ref[0].astype(jnp.float32)                      # [Se, DP]

        # causal mask built in-kernel; folded with the relative bias into one [H, Sd, Sd] add
        ri = jax.lax.broadcasted_iota(jnp.int32, (Sd, Sd), 0)
        ci = jax.lax.broadcasted_iota(jnp.int32, (Sd, Sd), 1)
        causal = jnp.where(ci <= ri, 0.0, NEG_INF).astype(jnp.float32)
        self_bias = rel_ref[...] + causal[None, :, :]             # [H, Sd, Sd]

        # --- decoder self-attention ---
        h = _rms(x, ln1_ref[...])
        x = x + _attention(h, h, wq_s[...], wk_s[...], wv_s[...], wo_s[...], self_bias)

        # --- cross-attention (K/V from final encoder hidden states, as in T5) ---
        h = _rms(x, ln2_ref[...])
        x = x + _attention(h, enc, wq_c[...], wk_c[...], wv_c[...], wo_c[...], encpad_ref[...])

        # --- FFN ---
        h = _rms(x, ln3_ref[...])
        ff = jnp.maximum(
            jnp.dot(h.astype(COMPUTE_DT), wi_ref[...], preferred_element_type=jnp.float32), 0.0)
        x = x + jnp.dot(ff.astype(COMPUTE_DT), wff_ref[...], preferred_element_type=jnp.float32)

        o_ref[0] = x.astype(COMPUTE_DT)
    return kernel


def _lmhead_ce_kernel(x_ref, lnw_ref, emb_ref, lab_ref, loss_ref, logits_ref):
    # fused: decoder final RMSNorm -> tied LM head (embedding consumed untransposed) -> CE loss
    x = _rms(x_ref[...], lnw_ref[...]) * (D_MODEL ** -0.5)                    # [N, DP] f32
    logits = jax.lax.dot_general(x.astype(COMPUTE_DT), emb_ref[...],
                                 (((1,), (1,)), ((), ())),
                                 preferred_element_type=jnp.float32)          # [N, V]
    logits_ref[...] = logits

    lab = lab_ref[...]                                                        # [N, 1] int32
    onehot = (jax.lax.broadcasted_iota(jnp.int32, logits.shape, 1) == lab).astype(jnp.float32)
    m = jnp.max(logits, axis=-1, keepdims=True)
    lse = jnp.log(jnp.sum(jnp.exp(logits - m), axis=-1, keepdims=True)) + m
    tgt = jnp.sum(logits * onehot, axis=-1, keepdims=True)
    # TODO(synk): ignore_index=-100 token masking (HF CrossEntropyLoss) not implemented;
    # all label positions are assumed valid in this synthetic setup.
    # TODO(synk): at real T5 vocab sizes (~32k) tile over the vocab axis with an online
    # logsumexp (flash-CE) and row blocks instead of materializing [N, V] logits in VMEM.
    loss_ref[...] = jnp.mean(lse - tgt, axis=(0, 1), keepdims=True)


# ----------------------------------- pallas_call wrappers ------------------------------------

def _rep_spec(shape):
    # replicated across the grid (weights / shared tables): constant block index -> DMA'd once
    nd = len(shape)
    return pl.BlockSpec(tuple(shape), lambda b, _n=nd: (0,) * _n)


def _batched_spec(shape):
    # leading-dim (batch) blocked: block (1, ...), index (b, 0, ...)
    nd = len(shape)
    return pl.BlockSpec((1,) + tuple(shape[1:]), lambda b, _n=nd: (b,) + (0,) * (_n - 1))


_PARALLEL = pltpu.CompilerParams(dimension_semantics=("parallel",))
_ARBITRARY = pltpu.CompilerParams(dimension_semantics=("arbitrary",))


def pallas_encoder_layer(x, pad_bias, rel_bias, lyr, final_ln=None):
    B, S, _ = x.shape
    sa = lyr["self_attn"]
    inputs = [x, pad_bias, rel_bias,
              lyr["ln1"], sa["wq"], sa["wk"], sa["wv"], sa["wo"],
              lyr["ln2"], lyr["wi"], lyr["wo_ff"]]
    specs = [_batched_spec(x.shape), _batched_spec(pad_bias.shape)] + \
            [_rep_spec(a.shape) for a in inputs[2:]]
    if final_ln is not None:
        inputs.append(final_ln)
        specs.append(_rep_spec(final_ln.shape))
    return pl.pallas_call(
        _make_enc_layer_kernel(final_ln is not None),
        out_shape=jax.ShapeDtypeStruct((B, S, DP), COMPUTE_DT),
        grid=(B,),
        in_specs=specs,
        out_specs=_batched_spec((B, S, DP)),
        compiler_params=_PARALLEL,
    )(*inputs)


def pallas_decoder_layer(y, enc_out, enc_pad_bias, rel_bias, lyr):
    B, Sd, _ = y.shape
    sa, ca = lyr["self_attn"], lyr["cross_attn"]
    inputs = [y, enc_out, enc_pad_bias, rel_bias,
              lyr["ln1"], sa["wq"], sa["wk"], sa["wv"], sa["wo"],
              lyr["ln2"], ca["wq"], ca["wk"], ca["wv"], ca["wo"],
              lyr["ln3"], lyr["wi"], lyr["wo_ff"]]
    specs = [_batched_spec(y.shape), _batched_spec(enc_out.shape),
             _batched_spec(enc_pad_bias.shape)] + [_rep_spec(a.shape) for a in inputs[3:]]
    return pl.pallas_call(
        _make_dec_layer_kernel(Sd),
        out_shape=jax.ShapeDtypeStruct((B, Sd, DP), COMPUTE_DT),
        grid=(B,),
        in_specs=specs,
        out_specs=_batched_spec((B, Sd, DP)),
        compiler_params=_PARALLEL,
    )(*inputs)


def pallas_lmhead_ce(dec_out, final_ln, embed, labels):
    B, Sd, _ = dec_out.shape
    N = B * Sd
    x2 = dec_out.reshape(N, DP)
    labels2 = labels.reshape(N, 1).astype(jnp.int32)
    inputs = [x2, final_ln, embed, labels2]
    loss, logits = pl.pallas_call(
        _lmhead_ce_kernel,
        out_shape=(jax.ShapeDtypeStruct((1, 1), jnp.float32),
                   jax.ShapeDtypeStruct((N, VOCAB), jnp.float32)),
        grid=(1,),
        in_specs=[_rep_spec(a.shape) for a in inputs],
        out_specs=(_rep_spec((1, 1)), _rep_spec((N, VOCAB))),
        compiler_params=_ARBITRARY,
    )(*inputs)
    return loss[0, 0], logits.reshape(B, Sd, VOCAB)


# ------------------------------------ glue: T5 pieces ----------------------------------------

def _relative_position_bucket(relative_position, bidirectional, num_buckets=NUM_BUCKETS,
                              max_distance=MAX_DISTANCE):
    relative_buckets = jnp.zeros_like(relative_position)
    if bidirectional:
        num_buckets //= 2
        relative_buckets += (relative_position > 0).astype(jnp.int32) * num_buckets
        relative_position = jnp.abs(relative_position)
    else:
        relative_position = -jnp.minimum(relative_position, 0)
    max_exact = num_buckets // 2
    is_small = relative_position < max_exact
    rp_large = max_exact + (
        jnp.log(jnp.maximum(relative_position, 1).astype(jnp.float32) / max_exact)
        / math.log(max_distance / max_exact)
        * (num_buckets - max_exact)
    ).astype(jnp.int32)
    rp_large = jnp.minimum(rp_large, num_buckets - 1)
    relative_buckets += jnp.where(is_small, relative_position, rp_large)
    return relative_buckets


def compute_position_bias(rel_table, q_len, k_len, bidirectional):
    # returns [H, q, k] (batch-independent; no [B,H,S,S] broadcast through HBM)
    ctx = jnp.arange(q_len)[:, None]
    mem = jnp.arange(k_len)[None, :]
    rel = mem - ctx
    buckets = _relative_position_bucket(rel, bidirectional)
    values = rel_table[buckets]                      # [q, k, H]
    return jnp.transpose(values, (2, 0, 1)).astype(jnp.float32)


def shift_right(labels):
    # T5: decoder_start_token_id == pad_token_id == 0
    B = labels.shape[0]
    start = jnp.zeros((B, 1), labels.dtype)
    return jnp.concatenate([start, labels[:, :-1]], axis=1)


def forward(params, input_ids, attention_mask, labels):
    B, Se = input_ids.shape
    Sd = labels.shape[1]

    # additive key-padding bias, [B, 1, Se] (tiny; expanded in-kernel)
    pad_bias = ((1.0 - attention_mask.astype(jnp.float32)) * NEG_INF).reshape(B, 1, Se)
    rel_enc = compute_position_bias(params["rel_bias_enc"], Se, Se, bidirectional=True)
    rel_dec = compute_position_bias(params["rel_bias_dec"], Sd, Sd, bidirectional=False)

    # ---- encoder (1 fused pallas_call per layer; final RMSNorm fused into the last layer) ----
    x = params["embed"][input_ids]                                            # [B, Se, DP] bf16
    n_enc = len(params["enc_layers"])
    for i, lyr in enumerate(params["enc_layers"]):
        fln = params["enc_final_ln"] if i == n_enc - 1 else None
        x = pallas_encoder_layer(x, pad_bias, rel_enc, lyr, final_ln=fln)
    enc_out = x

    # ---- decoder (1 fused pallas_call per layer) ----
    dec_in = shift_right(labels)
    y = params["embed"][dec_in]                                               # [B, Sd, DP] bf16
    for lyr in params["dec_layers"]:
        y = pallas_decoder_layer(y, enc_out, pad_bias, rel_dec, lyr)

    # ---- fused decoder-final-RMSNorm + tied LM head + cross-entropy ----
    loss, logits = pallas_lmhead_ce(y, params["dec_final_ln"], params["embed"], labels)
    return loss, logits


# --------------------------------- deterministic init ----------------------------------------
# Weights are pre-stacked per head and zero-padded to DP lanes ONCE here (no per-call concat).

def init_params(key):
    keys = iter(jax.random.split(key, 64))
    nk = lambda: next(keys)
    nrm = lambda shape: 0.02 * jax.random.normal(nk(), shape, dtype=jnp.float32)
    ln = lambda: jnp.pad(jnp.ones((1, D_MODEL), jnp.float32), ((0, 0), (0, DP - D_MODEL)))

    def attn_params():
        wq, wk, wv = nrm((D_MODEL, HD)), nrm((D_MODEL, HD)), nrm((D_MODEL, HD))
        wo = nrm((HD, D_MODEL))

        def heads_in(w):   # [D, H*dkv] -> [H, DP, dkv], zero-padded d_model rows
            w = w.reshape(D_MODEL, N_HEADS, D_KV).transpose(1, 0, 2)
            return jnp.pad(w, ((0, 0), (0, DP - D_MODEL), (0, 0))).astype(COMPUTE_DT)

        def heads_out(w):  # [H*dkv, D] -> [H, dkv, DP], zero-padded d_model cols
            w = w.reshape(N_HEADS, D_KV, D_MODEL)
            return jnp.pad(w, ((0, 0), (0, 0), (0, DP - D_MODEL))).astype(COMPUTE_DT)

        return dict(wq=heads_in(wq), wk=heads_in(wk), wv=heads_in(wv), wo=heads_out(wo))

    def ffn_params():
        return dict(
            wi=jnp.pad(nrm((D_MODEL, D_FF)), ((0, DP - D_MODEL), (0, 0))).astype(COMPUTE_DT),
            wo_ff=jnp.pad(nrm((D_FF, D_MODEL)), ((0, 0), (0, DP - D_MODEL))).astype(COMPUTE_DT))

    params = dict(
        embed=jnp.pad(nrm((VOCAB, D_MODEL)), ((0, 0), (0, DP - D_MODEL))).astype(COMPUTE_DT),
        rel_bias_enc=nrm((NUM_BUCKETS, N_HEADS)),
        rel_bias_dec=nrm((NUM_BUCKETS, N_HEADS)),
        enc_final_ln=ln(),
        dec_final_ln=ln(),
        enc_layers=[],
        dec_layers=[],
    )
    for _ in range(N_ENC_LAYERS):
        params["enc_layers"].append(dict(
            ln1=ln(), self_attn=attn_params(), ln2=ln(), **ffn_params()))
    for _ in range(N_DEC_LAYERS):
        params["dec_layers"].append(dict(
            ln1=ln(), self_attn=attn_params(), ln2=ln(), cross_attn=attn_params(),
            ln3=ln(), **ffn_params()))
    return params


# --------------------------------------- main ------------------------------------------------

if __name__ == "__main__":
    B, S_ENC, S_DEC = 2, 8, 8
    key = jax.random.PRNGKey(0)
    k_in, k_lab, k_par = jax.random.split(key, 3)

    input_ids = jax.random.randint(k_in, (B, S_ENC), 0, VOCAB, dtype=jnp.int32)
    attention_mask = jnp.ones((B, S_ENC), jnp.int32)
    labels = jax.random.randint(k_lab, (B, S_DEC), 1, VOCAB, dtype=jnp.int32)
    params = init_params(k_par)

    fwd = jax.jit(forward)
    loss, logits = fwd(params, input_ids, attention_mask, labels)
    jax.block_until_ready((loss, logits))

    assert logits.shape == (B, S_DEC, VOCAB)
    assert loss.shape == ()
    assert bool(jnp.isfinite(loss))
    print("KERNEL_OK")
</pallas_src>

<mosaic_0001>
module attributes {stable_mosaic.version = 11 : i64} {
  func.func @kernel(%arg0: i32, %arg1: memref<1x8x128xbf16, #tpu.memory_space<vmem>>, %arg2: memref<1x1x8xf32, #tpu.memory_space<vmem>>, %arg3: memref<2x8x8xf32, #tpu.memory_space<vmem>>, %arg4: memref<1x128xf32, #tpu.memory_space<vmem>>, %arg5: memref<2x128x16xbf16, #tpu.memory_space<vmem>>, %arg6: memref<2x128x16xbf16, #tpu.memory_space<vmem>>, %arg7: memref<2x128x16xbf16, #tpu.memory_space<vmem>>, %arg8: memref<2x16x128xbf16, #tpu.memory_space<vmem>>, %arg9: memref<1x128xf32, #tpu.memory_space<vmem>>, %arg10: memref<128x64xbf16, #tpu.memory_space<vmem>>, %arg11: memref<64x128xbf16, #tpu.memory_space<vmem>>, %arg12: memref<1x128xf32, #tpu.memory_space<vmem>>, %arg13: memref<1x8x128xbf16, #tpu.memory_space<vmem>>) attributes {dimension_semantics = [#tpu.dimension_semantics<parallel>], iteration_bounds = array<i64: 2>, scalar_prefetch = 0 : i64, scratch_operands = 0 : i64, tpu.core_type = #tpu.core_type<tc>, window_params = [{transform_indices = @transform_0, window_bounds = array<i64: 1, 8, 128>}, {transform_indices = @transform_1, window_bounds = array<i64: 1, 1, 8>}, {pipeline_mode = #tpu.pipeline_mode<synchronous>, transform_indices = @transform_2, window_bounds = array<i64: 2, 8, 8>}, {pipeline_mode = #tpu.pipeline_mode<synchronous>, transform_indices = @transform_3, window_bounds = array<i64: 1, 128>}, {pipeline_mode = #tpu.pipeline_mode<synchronous>, transform_indices = @transform_4, window_bounds = array<i64: 2, 128, 16>}, {pipeline_mode = #tpu.pipeline_mode<synchronous>, transform_indices = @transform_5, window_bounds = array<i64: 2, 128, 16>}, {pipeline_mode = #tpu.pipeline_mode<synchronous>, transform_indices = @transform_6, window_bounds = array<i64: 2, 128, 16>}, {pipeline_mode = #tpu.pipeline_mode<synchronous>, transform_indices = @transform_7, window_bounds = array<i64: 2, 16, 128>}, {pipeline_mode = #tpu.pipeline_mode<synchronous>, transform_indices = @transform_8, window_bounds = array<i64: 1, 128>}, {pipeline_mode = #tpu.pipeline_mode<synchronous>, transform_indices = @transform_9, window_bounds = array<i64: 128, 64>}, {pipeline_mode = #tpu.pipeline_mode<synchronous>, transform_indices = @transform_10, window_bounds = array<i64: 64, 128>}, {pipeline_mode = #tpu.pipeline_mode<synchronous>, transform_indices = @transform_11, window_bounds = array<i64: 1, 128>}, {transform_indices = @transform_12, window_bounds = array<i64: 1, 8, 128>}]} {
    %c0 = arith.constant 0 : index
    %c0_0 = arith.constant 0 : index
    %c0_1 = arith.constant 0 : index
    %0 = vector.load %arg1[%c0, %c0_0, %c0_1] : memref<1x8x128xbf16, #tpu.memory_space<vmem>>, vector<1x8x128xbf16>
    %1 = vector.shape_cast %0 : vector<1x8x128xbf16> to vector<8x128xbf16>
    %2 = arith.extf %1 : vector<8x128xbf16> to vector<8x128xf32>
    %c0_2 = arith.constant 0 : index
    %c0_3 = arith.constant 0 : index
    %c0_4 = arith.constant 0 : index
    %3 = vector.load %arg3[%c0_2, %c0_3, %c0_4] : memref<2x8x8xf32, #tpu.memory_space<vmem>>, vector<2x8x8xf32>
    %c0_5 = arith.constant 0 : index
    %c0_6 = arith.constant 0 : index
    %c0_7 = arith.constant 0 : index
    %4 = vector.load %arg2[%c0_5, %c0_6, %c0_7] : memref<1x1x8xf32, #tpu.memory_space<vmem>>, vector<1x1x8xf32>
    %5 = vector.broadcast %4 : vector<1x1x8xf32> to vector<2x8x8xf32>
    %6 = arith.addf %3, %5 : vector<2x8x8xf32>
    %c0_8 = arith.constant 0 : index
    %c0_9 = arith.constant 0 : index
    %7 = vector.load %arg4[%c0_8, %c0_9] : memref<1x128xf32, #tpu.memory_space<vmem>>, vector<1x128xf32>
    %8 = arith.mulf %2, %2 : vector<8x128xf32>
    %cst = arith.constant dense<0.000000e+00> : vector<8xf32>
    %9 = vector.multi_reduction <add>, %8, %cst [1] : vector<8x128xf32> to vector<8xf32>
    %10 = vector.shape_cast %9 : vector<8xf32> to vector<8x1xf32>
    %cst_10 = arith.constant 3.125000e-02 : f32
    %11 = vector.broadcast %cst_10 : f32 to vector<8x1xf32>
    %12 = arith.mulf %10, %11 : vector<8x1xf32>
    %cst_11 = arith.constant 9.99999997E-7 : f32
    %13 = vector.broadcast %cst_11 : f32 to vector<8x1xf32>
    %14 = arith.addf %12, %13 : vector<8x1xf32>
    %15 = math.rsqrt %14 : vector<8x1xf32>
    %16 = vector.broadcast %15 : vector<8x1xf32> to vector<8x128xf32>
    %17 = arith.mulf %2, %16 : vector<8x128xf32>
    %18 = vector.broadcast %7 : vector<1x128xf32> to vector<8x128xf32>
    %19 = arith.mulf %17, %18 : vector<8x128xf32>
    %c0_12 = arith.constant 0 : index
    %c0_13 = arith.constant 0 : index
    %c0_14 = arith.constant 0 : index
    %20 = vector.load %arg5[%c0_12, %c0_13, %c0_14] : memref<2x128x16xbf16, #tpu.memory_space<vmem>>, vector<2x128x16xbf16>
    %c0_15 = arith.constant 0 : index
    %c0_16 = arith.constant 0 : index
    %c0_17 = arith.constant 0 : index
    %21 = vector.load %arg6[%c0_15, %c0_16, %c0_17] : memref<2x128x16xbf16, #tpu.memory_space<vmem>>, vector<2x128x16xbf16>
    %c0_18 = arith.constant 0 : index
    %c0_19 = arith.constant 0 : index
    %c0_20 = arith.constant 0 : index
    %22 = vector.load %arg7[%c0_18, %c0_19, %c0_20] : memref<2x128x16xbf16, #tpu.memory_space<vmem>>, vector<2x128x16xbf16>
    %c0_21 = arith.constant 0 : index
    %c0_22 = arith.constant 0 : index
    %c0_23 = arith.constant 0 : index
    %23 = vector.load %arg8[%c0_21, %c0_22, %c0_23] : memref<2x16x128xbf16, #tpu.memory_space<vmem>>, vector<2x16x128xbf16>
    %24 = arith.truncf %19 : vector<8x128xf32> to vector<8x128xbf16>
    %25 = vector.shape_cast %24 : vector<8x128xbf16> to vector<1x8x128xbf16>
    %26 = vector.shape_cast %25 : vector<1x8x128xbf16> to vector<1x8x128xbf16>
    %27 = vector.broadcast %26 : vector<1x8x128xbf16> to vector<2x8x128xbf16>
    %28 = arith.truncf %19 : vector<8x128xf32> to vector<8x128xbf16>
    %29 = vector.shape_cast %28 : vector<8x128xbf16> to vector<1x8x128xbf16>
    %30 = vector.shape_cast %29 : vector<1x8x128xbf16> to vector<1x8x128xbf16>
    %31 = vector.broadcast %30 : vector<1x8x128xbf16> to vector<2x8x128xbf16>
    "tpu.trace_start"() <{level = 10 : i32, message = "hsd,hdf->hsf"}> : () -> ()
    %cst_24 = arith.constant dense<0.000000e+00> : vector<2x8x16xf32>
    %32 = tpu.matmul %27, %20, %cst_24 {dimension_numbers = #tpu.dot_dimension_numbers<[2], [1], [1], [2], [0, 0, 0, 1, 1, 2], [0], [0]>} : vector<2x8x128xbf16>, vector<2x128x16xbf16>, vector<2x8x16xf32> -> vector<2x8x16xf32>
    %cst_25 = arith.constant dense<0.000000e+00> : vector<2x8x16xf32>
    %33 = tpu.matmul %31, %21, %cst_25 {dimension_numbers = #tpu.dot_dimension_numbers<[2], [1], [1], [2], [0, 0, 0, 1, 1, 2], [0], [0]>} : vector<2x8x128xbf16>, vector<2x128x16xbf16>, vector<2x8x16xf32> -> vector<2x8x16xf32>
    %cst_26 = arith.constant dense<0.000000e+00> : vector<2x8x16xf32>
    %34 = tpu.matmul %31, %22, %cst_26 {dimension_numbers = #tpu.dot_dimension_numbers<[2], [1], [1], [2], [0, 0, 0, 1, 1, 2], [0], [0]>} : vector<2x8x128xbf16>, vector<2x128x16xbf16>, vector<2x8x16xf32> -> vector<2x8x16xf32>
    "tpu.trace_stop"() : () -> ()
    %35 = arith.truncf %32 : vector<2x8x16xf32> to vector<2x8x16xbf16>
    %36 = arith.truncf %33 : vector<2x8x16xf32> to vector<2x8x16xbf16>
    "tpu.trace_start"() <{level = 10 : i32, message = "hqd,hkd->hqk"}> : () -> ()
    %cst_27 = arith.constant dense<0.000000e+00> : vector<2x8x8xf32>
    %37 = tpu.matmul %35, %36, %cst_27 {dimension_numbers = #tpu.dot_dimension_numbers<[2], [2], [1], [1], [0, 0, 0, 1, 1, 1], [0], [0]>} : vector<2x8x16xbf16>, vector<2x8x16xbf16>, vector<2x8x8xf32> -> vector<2x8x8xf32>
    "tpu.trace_stop"() : () -> ()
    %38 = arith.addf %37, %6 : vector<2x8x8xf32>
    %cst_28 = arith.constant dense<0xFF800000> : vector<2x8xf32>
    %39 = vector.multi_reduction <maximumf>, %38, %cst_28 [2] : vector<2x8x8xf32> to vector<2x8xf32>
    %40 = vector.shape_cast %39 : vector<2x8xf32> to vector<2x8x1xf32>
    %41 = vector.broadcast %40 : vector<2x8x1xf32> to vector<2x8x8xf32>
    %42 = arith.subf %38, %41 : vector<2x8x8xf32>
    %43 = math.exp %42 : vector<2x8x8xf32>
    %cst_29 = arith.constant dense<0.000000e+00> : vector<2x8xf32>
    %44 = vector.multi_reduction <add>, %43, %cst_29 [2] : vector<2x8x8xf32> to vector<2x8xf32>
    %45 = vector.shape_cast %44 : vector<2x8xf32> to vector<2x8x1xf32>
    %46 = tpu.reciprocal %45 {approx = true} : vector<2x8x1xf32> -> vector<2x8x1xf32>
    %47 = vector.broadcast %46 : vector<2x8x1xf32> to vector<2x8x8xf32>
    %48 = arith.mulf %43, %47 : vector<2x8x8xf32>
    %49 = arith.truncf %48 : vector<2x8x8xf32> to vector<2x8x8xbf16>
    %50 = arith.truncf %34 : vector<2x8x16xf32> to vector<2x8x16xbf16>
    "tpu.trace_start"() <{level = 10 : i32, message = "hqk,hkd->hqd"}> : () -> ()
    %cst_30 = arith.constant dense<0.000000e+00> : vector<2x8x16xf32>
    %51 = tpu.matmul %49, %50, %cst_30 {dimension_numbers = #tpu.dot_dimension_numbers<[2], [1], [1], [2], [0, 0, 0, 1, 1, 2], [0], [0]>} : vector<2x8x8xbf16>, vector<2x8x16xbf16>, vector<2x8x16xf32> -> vector<2x8x16xf32>
    "tpu.trace_stop"() : () -> ()
    %52 = arith.truncf %51 : vector<2x8x16xf32> to vector<2x8x16xbf16>
    "tpu.trace_start"() <{level = 10 : i32, message = "hsd,hdo->hso"}> : () -> ()
    %cst_31 = arith.constant dense<0.000000e+00> : vector<2x8x128xf32>
    %53 = tpu.matmul %52, %23, %cst_31 {dimension_numbers = #tpu.dot_dimension_numbers<[2], [1], [1], [2], [0, 0, 0, 1, 1, 2], [0], [0]>} : vector<2x8x16xbf16>, vector<2x16x128xbf16>, vector<2x8x128xf32> -> vector<2x8x128xf32>
    "tpu.trace_stop"() : () -> ()
    %cst_32 = arith.constant dense<0.000000e+00> : vector<8x128xf32>
    %54 = vector.multi_reduction <add>, %53, %cst_32 [0] : vector<2x8x128xf32> to vector<8x128xf32>
    %55 = arith.addf %2, %54 : vector<8x128xf32>
    %c0_33 = arith.constant 0 : index
    %c0_34 = arith.constant 0 : index
    %56 = vector.load %arg9[%c0_33, %c0_34] : memref<1x128xf32, #tpu.memory_space<vmem>>, vector<1x128xf32>
    %57 = arith.mulf %55, %55 : vector<8x128xf32>
    %cst_35 = arith.constant dense<0.000000e+00> : vector<8xf32>
    %58 = vector.multi_reduction <add>, %57, %cst_35 [1] : vector<8x128xf32> to vector<8xf32>
    %59 = vector.shape_cast %58 : vector<8xf32> to vector<8x1xf32>
    %cst_36 = arith.constant 3.125000e-02 : f32
    %60 = vector.broadcast %cst_36 : f32 to vector<8x1xf32>
    %61 = arith.mulf %59, %60 : vector<8x1xf32>
    %cst_37 = arith.constant 9.99999997E-7 : f32
    %62 = vector.broadcast %cst_37 : f32 to vector<8x1xf32>
    %63 = arith.addf %61, %62 : vector<8x1xf32>
    %64 = math.rsqrt %63 : vector<8x1xf32>
    %65 = vector.broadcast %64 : vector<8x1xf32> to vector<8x128xf32>
    %66 = arith.mulf %55, %65 : vector<8x128xf32>
    %67 = vector.broadcast %56 : vector<1x128xf32> to vector<8x128xf32>
    %68 = arith.mulf %66, %67 : vector<8x128xf32>
    %69 = arith.truncf %68 : vector<8x128xf32> to vector<8x128xbf16>
    %c0_38 = arith.constant 0 : index
    %c0_39 = arith.constant 0 : index
    %70 = vector.load %arg10[%c0_38, %c0_39] : memref<128x64xbf16, #tpu.memory_space<vmem>>, vector<128x64xbf16>
    %cst_40 = arith.constant dense<0.000000e+00> : vector<8x64xf32>
    %71 = tpu.matmul %69, %70, %cst_40 {dimension_numbers = #tpu.dot_dimension_numbers<[1], [0], [0], [1], [0, 0, 1, 1], [], []>} : vector<8x128xbf16>, vector<128x64xbf16>, vector<8x64xf32> -> vector<8x64xf32>
    %cst_41 = arith.constant 0.000000e+00 : f32
    %72 = vector.broadcast %cst_41 : f32 to vector<8x64xf32>
    %73 = arith.maximumf %71, %72 : vector<8x64xf32>
    %74 = arith.truncf %73 : vector<8x64xf32> to vector<8x64xbf16>
    %c0_42 = arith.constant 0 : index
    %c0_43 = arith.constant 0 : index
    %75 = vector.load %arg11[%c0_42, %c0_43] : memref<64x128xbf16, #tpu.memory_space<vmem>>, vector<64x128xbf16>
    %cst_44 = arith.constant dense<0.000000e+00> : vector<8x128xf32>
    %76 = tpu.matmul %74, %75, %cst_44 {dimension_numbers = #tpu.dot_dimension_numbers<[1], [0], [0], [1], [0, 0, 1, 1], [], []>} : vector<8x64xbf16>, vector<64x128xbf16>, vector<8x128xf32> -> vector<8x128xf32>
    %77 = arith.addf %55, %76 : vector<8x128xf32>
    %c0_45 = arith.constant 0 : index
    %c0_46 = arith.constant 0 : index
    %78 = vector.load %arg12[%c0_45, %c0_46] : memref<1x128xf32, #tpu.memory_space<vmem>>, vector<1x128xf32>
    %79 = arith.mulf %77, %77 : vector<8x128xf32>
    %cst_47 = arith.constant dense<0.000000e+00> : vector<8xf32>
    %80 = vector.multi_reduction <add>, %79, %cst_47 [1] : vector<8x128xf32> to vector<8xf32>
    %81 = vector.shape_cast %80 : vector<8xf32> to vector<8x1xf32>
    %cst_48 = arith.constant 3.125000e-02 : f32
    %82 = vector.broadcast %cst_48 : f32 to vector<8x1xf32>
    %83 = arith.mulf %81, %82 : vector<8x1xf32>
    %cst_49 = arith.constant 9.99999997E-7 : f32
    %84 = vector.broadcast %cst_49 : f32 to vector<8x1xf32>
    %85 = arith.addf %83, %84 : vector<8x1xf32>
    %86 = math.rsqrt %85 : vector<8x1xf32>
    %87 = vector.broadcast %86 : vector<8x1xf32> to vector<8x128xf32>
    %88 = arith.mulf %77, %87 : vector<8x128xf32>
    %89 = vector.broadcast %78 : vector<1x128xf32> to vector<8x128xf32>
    %90 = arith.mulf %88, %89 : vector<8x128xf32>
    %91 = arith.truncf %90 : vector<8x128xf32> to vector<8x128xbf16>
    %c0_50 = arith.constant 0 : index
    %c0_51 = arith.constant 0 : index
    %c0_52 = arith.constant 0 : index
    %92 = vector.load %arg13[%c0_50, %c0_51, %c0_52] : memref<1x8x128xbf16, #tpu.memory_space<vmem>>, vector<1x8x128xbf16>
    %93 = vector.shape_cast %92 : vector<1x8x128xbf16> to vector<8x128xbf16>
    %94 = vector.shape_cast %91 : vector<8x128xbf16> to vector<1x8x128xbf16>
    tpu.vector_store %arg13[%c0_50, %c0_51, %c0_52], %94 {strides = array<i32>} : memref<1x8x128xbf16, #tpu.memory_space<vmem>>, vector<1x8x128xbf16>,
    return
  }
  func.func @transform_0(%arg0: i32) -> (i32, i32, i32) {
    %c0_i32 = arith.constant 0 : i32
    %c0_i32_0 = arith.constant 0 : i32
    %c0_i32_1 = arith.constant 0 : i32
    return %arg0, %c0_i32, %c0_i32_0 : i32, i32, i32
  }
  func.func @transform_1(%arg0: i32) -> (i32, i32, i32) {
    %c0_i32 = arith.constant 0 : i32
    %c0_i32_0 = arith.constant 0 : i32
    %c0_i32_1 = arith.constant 0 : i32
    return %arg0, %c0_i32, %c0_i32_0 : i32, i32, i32
  }
  func.func @transform_2(%arg0: i32) -> (i32, i32, i32) {
    %c0_i32 = arith.constant 0 : i32
    %c0_i32_0 = arith.constant 0 : i32
    %c0_i32_1 = arith.constant 0 : i32
    %c0_i32_2 = arith.constant 0 : i32
    return %c0_i32, %c0_i32_0, %c0_i32_1 : i32, i32, i32
  }
  func.func @transform_3(%arg0: i32) -> (i32, i32) {
    %c0_i32 = arith.constant 0 : i32
    %c0_i32_0 = arith.constant 0 : i32
    %c0_i32_1 = arith.constant 0 : i32
    return %c0_i32, %c0_i32_0 : i32, i32
  }
  func.func @transform_4(%arg0: i32) -> (i32, i32, i32) {
    %c0_i32 = arith.constant 0 : i32
    %c0_i32_0 = arith.constant 0 : i32
    %c0_i32_1 = arith.constant 0 : i32
    %c0_i32_2 = arith.constant 0 : i32
    return %c0_i32, %c0_i32_0, %c0_i32_1 : i32, i32, i32
  }
  func.func @transform_5(%arg0: i32) -> (i32, i32, i32) {
    %c0_i32 = arith.constant 0 : i32
    %c0_i32_0 = arith.constant 0 : i32
    %c0_i32_1 = arith.constant 0 : i32
    %c0_i32_2 = arith.constant 0 : i32
    return %c0_i32, %c0_i32_0, %c0_i32_1 : i32, i32, i32
  }
  func.func @transform_6(%arg0: i32) -> (i32, i32, i32) {
    %c0_i32 = arith.constant 0 : i32
    %c0_i32_0 = arith.constant 0 : i32
    %c0_i32_1 = arith.constant 0 : i32
    %c0_i32_2 = arith.constant 0 : i32
    return %c0_i32, %c0_i32_0, %c0_i32_1 : i32, i32, i32
  }
  func.func @transform_7(%arg0: i32) -> (i32, i32, i32) {
    %c0_i32 = arith.constant 0 : i32
    %c0_i32_0 = arith.constant 0 : i32
    %c0_i32_1 = arith.constant 0 : i32
    %c0_i32_2 = arith.constant 0 : i32
    return %c0_i32, %c0_i32_0, %c0_i32_1 : i32, i32, i32
  }
  func.func @transform_8(%arg0: i32) -> (i32, i32) {
    %c0_i32 = arith.constant 0 : i32
    %c0_i32_0 = arith.constant 0 : i32
    %c0_i32_1 = arith.constant 0 : i32
    return %c0_i32, %c0_i32_0 : i32, i32
  }
  func.func @transform_9(%arg0: i32) -> (i32, i32) {
    %c0_i32 = arith.constant 0 : i32
    %c0_i32_0 = arith.constant 0 : i32
    %c0_i32_1 = arith.constant 0 : i32
    return %c0_i32, %c0_i32_0 : i32, i32
  }
  func.func @transform_10(%arg0: i32) -> (i32, i32) {
    %c0_i32 = arith.constant 0 : i32
    %c0_i32_0 = arith.constant 0 : i32
    %c0_i32_1 = arith.constant 0 : i32
    return %c0_i32, %c0_i32_0 : i32, i32
  }
  func.func @transform_11(%arg0: i32) -> (i32, i32) {
    %c0_i32 = arith.constant 0 : i32
    %c0_i32_0 = arith.constant 0 : i32
    %c0_i32_1 = arith.constant 0 : i32
    return %c0_i32, %c0_i32_0 : i32, i32
  }
  func.func @transform_12(%arg0: i32) -> (i32, i32, i32) {
    %c0_i32 = arith.constant 0 : i32
    %c0_i32_0 = arith.constant 0 : i32
    %c0_i32_1 = arith.constant 0 : i32
    return %arg0, %c0_i32, %c0_i32_0 : i32, i32, i32
  }
}

module attributes {stable_mosaic.version = 11 : i64} {
  func.func @kernel(%arg0: i32, %arg1: memref<1x8x128xbf16, #tpu.memory_space<vmem>>, %arg2: memref<1x8x128xbf16, #tpu.memory_space<vmem>>, %arg3: memref<1x1x8xf32, #tpu.memory_space<vmem>>, %arg4: memref<2x8x8xf32, #tpu.memory_space<vmem>>, %arg5: memref<1x128xf32, #tpu.memory_space<vmem>>, %arg6: memref<2x128x16xbf16, #tpu.memory_space<vmem>>, %arg7: memref<2x128x16xbf16, #tpu.memory_space<vmem>>, %arg8: memref<2x128x16xbf16, #tpu.memory_space<vmem>>, %arg9: memref<2x16x128xbf16, #tpu.memory_space<vmem>>, %arg10: memref<1x128xf32, #tpu.memory_space<vmem>>, %arg11: memref<2x128x16xbf16, #tpu.memory_space<vmem>>, %arg12: memref<2x128x16xbf16, #tpu.memory_space<vmem>>, %arg13: memref<2x128x16xbf16, #tpu.memory_space<vmem>>, %arg14: memref<2x16x128xbf16, #tpu.memory_space<vmem>>, %arg15: memref<1x128xf32, #tpu.memory_space<vmem>>, %arg16: memref<128x64xbf16, #tpu.memory_space<vmem>>, %arg17: memref<64x128xbf16, #tpu.memory_space<vmem>>, %arg18: memref<1x8x128xbf16, #tpu.memory_space<vmem>>) attributes {dimension_semantics = [#tpu.dimension_semantics<parallel>], iteration_bounds = array<i64: 2>, scalar_prefetch = 0 : i64, scratch_operands = 0 : i64, tpu.core_type = #tpu.core_type<tc>, window_params = [{transform_indices = @transform_0, window_bounds = array<i64: 1, 8, 128>}, {transform_indices = @transform_1, window_bounds = array<i64: 1, 8, 128>}, {transform_indices = @transform_2, window_bounds = array<i64: 1, 1, 8>}, {pipeline_mode = #tpu.pipeline_mode<synchronous>, transform_indices = @transform_3, window_bounds = array<i64: 2, 8, 8>}, {pipeline_mode = #tpu.pipeline_mode<synchronous>, transform_indices = @transform_4, window_bounds = array<i64: 1, 128>}, {pipeline_mode = #tpu.pipeline_mode<synchronous>, transform_indices = @transform_5, window_bounds = array<i64: 2, 128, 16>}, {pipeline_mode = #tpu.pipeline_mode<synchronous>, transform_indices = @transform_6, window_bounds = array<i64: 2, 128, 16>}, {pipeline_mode = #tpu.pipeline_mode<synchronous>, transform_indices = @transform_7, window_bounds = array<i64: 2, 128, 16>}, {pipeline_mode = #tpu.pipeline_mode<synchronous>, transform_indices = @transform_8, window_bounds = array<i64: 2, 16, 128>}, {pipeline_mode = #tpu.pipeline_mode<synchronous>, transform_indices = @transform_9, window_bounds = array<i64: 1, 128>}, {pipeline_mode = #tpu.pipeline_mode<synchronous>, transform_indices = @transform_10, window_bounds = array<i64: 2, 128, 16>}, {pipeline_mode = #tpu.pipeline_mode<synchronous>, transform_indices = @transform_11, window_bounds = array<i64: 2, 128, 16>}, {pipeline_mode = #tpu.pipeline_mode<synchronous>, transform_indices = @transform_12, window_bounds = array<i64: 2, 128, 16>}, {pipeline_mode = #tpu.pipeline_mode<synchronous>, transform_indices = @transform_13, window_bounds = array<i64: 2, 16, 128>}, {pipeline_mode = #tpu.pipeline_mode<synchronous>, transform_indices = @transform_14, window_bounds = array<i64: 1, 128>}, {pipeline_mode = #tpu.pipeline_mode<synchronous>, transform_indices = @transform_15, window_bounds = array<i64: 128, 64>}, {pipeline_mode = #tpu.pipeline_mode<synchronous>, transform_indices = @transform_16, window_bounds = array<i64: 64, 128>}, {transform_indices = @transform_17, window_bounds = array<i64: 1, 8, 128>}]} {
    %c0 = arith.constant 0 : index
    %c0_0 = arith.constant 0 : index
    %c0_1 = arith.constant 0 : index
    %0 = vector.load %arg1[%c0, %c0_0, %c0_1] : memref<1x8x128xbf16, #tpu.memory_space<vmem>>, vector<1x8x128xbf16>
    %1 = vector.shape_cast %0 : vector<1x8x128xbf16> to vector<8x128xbf16>
    %2 = arith.extf %1 : vector<8x128xbf16> to vector<8x128xf32>
    %c0_2 = arith.constant 0 : index
    %c0_3 = arith.constant 0 : index
    %c0_4 = arith.constant 0 : index
    %3 = vector.load %arg2[%c0_2, %c0_3, %c0_4] : memref<1x8x128xbf16, #tpu.memory_space<vmem>>, vector<1x8x128xbf16>
    %4 = vector.shape_cast %3 : vector<1x8x128xbf16> to vector<8x128xbf16>
    %5 = arith.extf %4 : vector<8x128xbf16> to vector<8x128xf32>
    %6 = tpu.iota {dimensions = array<i32: 0>} : vector<8x8xi32>
    %7 = tpu.iota {dimensions = array<i32: 1>} : vector<8x8xi32>
    %8 = arith.cmpi sle, %7, %6 : vector<8x8xi32>
    %cst = arith.constant 0.000000e+00 : f32
    %cst_5 = arith.constant -1.000000e+09 : f32
    %9 = vector.broadcast %cst : f32 to vector<8x8xf32>
    %10 = vector.broadcast %cst_5 : f32 to vector<8x8xf32>
    %11 = arith.select %8, %9, %10 : vector<8x8xi1>, vector<8x8xf32>
    %c0_6 = arith.constant 0 : index
    %c0_7 = arith.constant 0 : index
    %c0_8 = arith.constant 0 : index
    %12 = vector.load %arg4[%c0_6, %c0_7, %c0_8] : memref<2x8x8xf32, #tpu.memory_space<vmem>>, vector<2x8x8xf32>
    %13 = vector.shape_cast %11 : vector<8x8xf32> to vector<1x8x8xf32>
    %14 = vector.broadcast %13 : vector<1x8x8xf32> to vector<2x8x8xf32>
    %15 = arith.addf %12, %14 : vector<2x8x8xf32>
    %c0_9 = arith.constant 0 : index
    %c0_10 = arith.constant 0 : index
    %16 = vector.load %arg5[%c0_9, %c0_10] : memref<1x128xf32, #tpu.memory_space<vmem>>, vector<1x128xf32>
    %17 = arith.mulf %2, %2 : vector<8x128xf32>
    %cst_11 = arith.constant dense<0.000000e+00> : vector<8xf32>
    %18 = vector.multi_reduction <add>, %17, %cst_11 [1] : vector<8x128xf32> to vector<8xf32>
    %19 = vector.shape_cast %18 : vector<8xf32> to vector<8x1xf32>
    %cst_12 = arith.constant 3.125000e-02 : f32
    %20 = vector.broadcast %cst_12 : f32 to vector<8x1xf32>
    %21 = arith.mulf %19, %20 : vector<8x1xf32>
    %cst_13 = arith.constant 9.99999997E-7 : f32
    %22 = vector.broadcast %cst_13 : f32 to vector<8x1xf32>
    %23 = arith.addf %21, %22 : vector<8x1xf32>
    %24 = math.rsqrt %23 : vector<8x1xf32>
    %25 = vector.broadcast %24 : vector<8x1xf32> to vector<8x128xf32>
    %26 = arith.mulf %2, %25 : vector<8x128xf32>
    %27 = vector.broadcast %16 : vector<1x128xf32> to vector<8x128xf32>
    %28 = arith.mulf %26, %27 : vector<8x128xf32>
    %c0_14 = arith.constant 0 : index
    %c0_15 = arith.constant 0 : index
    %c0_16 = arith.constant 0 : index
    %29 = vector.load %arg6[%c0_14, %c0_15, %c0_16] : memref<2x128x16xbf16, #tpu.memory_space<vmem>>, vector<2x128x16xbf16>
    %c0_17 = arith.constant 0 : index
    %c0_18 = arith.constant 0 : index
    %c0_19 = arith.constant 0 : index
    %30 = vector.load %arg7[%c0_17, %c0_18, %c0_19] : memref<2x128x16xbf16, #tpu.memory_space<vmem>>, vector<2x128x16xbf16>
    %c0_20 = arith.constant 0 : index
    %c0_21 = arith.constant 0 : index
    %c0_22 = arith.constant 0 : index
    %31 = vector.load %arg8[%c0_20, %c0_21, %c0_22] : memref<2x128x16xbf16, #tpu.memory_space<vmem>>, vector<2x128x16xbf16>
    %c0_23 = arith.constant 0 : index
    %c0_24 = arith.constant 0 : index
    %c0_25 = arith.constant 0 : index
    %32 = vector.load %arg9[%c0_23, %c0_24, %c0_25] : memref<2x16x128xbf16, #tpu.memory_space<vmem>>, vector<2x16x128xbf16>
    %33 = arith.truncf %28 : vector<8x128xf32> to vector<8x128xbf16>
    %34 = vector.shape_cast %33 : vector<8x128xbf16> to vector<1x8x128xbf16>
    %35 = vector.shape_cast %34 : vector<1x8x128xbf16> to vector<1x8x128xbf16>
    %36 = vector.broadcast %35 : vector<1x8x128xbf16> to vector<2x8x128xbf16>
    %37 = arith.truncf %28 : vector<8x128xf32> to vector<8x128xbf16>
    %38 = vector.shape_cast %37 : vector<8x128xbf16> to vector<1x8x128xbf16>
    %39 = vector.shape_cast %38 : vector<1x8x128xbf16> to vector<1x8x128xbf16>
    %40 = vector.broadcast %39 : vector<1x8x128xbf16> to vector<2x8x128xbf16>
    "tpu.trace_start"() <{level = 10 : i32, message = "hsd,hdf->hsf"}> : () -> ()
    %cst_26 = arith.constant dense<0.000000e+00> : vector<2x8x16xf32>
    %41 = tpu.matmul %36, %29, %cst_26 {dimension_numbers = #tpu.dot_dimension_numbers<[2], [1], [1], [2], [0, 0, 0, 1, 1, 2], [0], [0]>} : vector<2x8x128xbf16>, vector<2x128x16xbf16>, vector<2x8x16xf32> -> vector<2x8x16xf32>
    %cst_27 = arith.constant dense<0.000000e+00> : vector<2x8x16xf32>
    %42 = tpu.matmul %40, %30, %cst_27 {dimension_numbers = #tpu.dot_dimension_numbers<[2], [1], [1], [2], [0, 0, 0, 1, 1, 2], [0], [0]>} : vector<2x8x128xbf16>, vector<2x128x16xbf16>, vector<2x8x16xf32> -> vector<2x8x16xf32>
    %cst_28 = arith.constant dense<0.000000e+00> : vector<2x8x16xf32>
    %43 = tpu.matmul %40, %31, %cst_28 {dimension_numbers = #tpu.dot_dimension_numbers<[2], [1], [1], [2], [0, 0, 0, 1, 1, 2], [0], [0]>} : vector<2x8x128xbf16>, vector<2x128x16xbf16>, vector<2x8x16xf32> -> vector<2x8x16xf32>
    "tpu.trace_stop"() : () -> ()
    %44 = arith.truncf %41 : vector<2x8x16xf32> to vector<2x8x16xbf16>
    %45 = arith.truncf %42 : vector<2x8x16xf32> to vector<2x8x16xbf16>
    "tpu.trace_start"() <{level = 10 : i32, message = "hqd,hkd->hqk"}> : () -> ()
    %cst_29 = arith.constant dense<0.000000e+00> : vector<2x8x8xf32>
    %46 = tpu.matmul %44, %45, %cst_29 {dimension_numbers = #tpu.dot_dimension_numbers<[2], [2], [1], [1], [0, 0, 0, 1, 1, 1], [0], [0]>} : vector<2x8x16xbf16>, vector<2x8x16xbf16>, vector<2x8x8xf32> -> vector<2x8x8xf32>
    "tpu.trace_stop"() : () -> ()
    %47 = arith.addf %46, %15 : vector<2x8x8xf32>
    %cst_30 = arith.constant dense<0xFF800000> : vector<2x8xf32>
    %48 = vector.multi_reduction <maximumf>, %47, %cst_30 [2] : vector<2x8x8xf32> to vector<2x8xf32>
    %49 = vector.shape_cast %48 : vector<2x8xf32> to vector<2x8x1xf32>
    %50 = vector.broadcast %49 : vector<2x8x1xf32> to vector<2x8x8xf32>
    %51 = arith.subf %47, %50 : vector<2x8x8xf32>
    %52 = math.exp %51 : vector<2x8x8xf32>
    %cst_31 = arith.constant dense<0.000000e+00> : vector<2x8xf32>
    %53 = vector.multi_reduction <add>, %52, %cst_31 [2] : vector<2x8x8xf32> to vector<2x8xf32>
    %54 = vector.shape_cast %53 : vector<2x8xf32> to vector<2x8x1xf32>
    %55 = tpu.reciprocal %54 {approx = true} : vector<2x8x1xf32> -> vector<2x8x1xf32>
    %56 = vector.broadcast %55 : vector<2x8x1xf32> to vector<2x8x8xf32>
    %57 = arith.mulf %52, %56 : vector<2x8x8xf32>
    %58 = arith.truncf %57 : vector<2x8x8xf32> to vector<2x8x8xbf16>
    %59 = arith.truncf %43 : vector<2x8x16xf32> to vector<2x8x16xbf16>
    "tpu.trace_start"() <{level = 10 : i32, message = "hqk,hkd->hqd"}> : () -> ()
    %cst_32 = arith.constant dense<0.000000e+00> : vector<2x8x16xf32>
    %60 = tpu.matmul %58, %59, %cst_32 {dimension_numbers = #tpu.dot_dimension_numbers<[2], [1], [1], [2], [0, 0, 0, 1, 1, 2], [0], [0]>} : vector<2x8x8xbf16>, vector<2x8x16xbf16>, vector<2x8x16xf32> -> vector<2x8x16xf32>
    "tpu.trace_stop"() : () -> ()
    %61 = arith.truncf %60 : vector<2x8x16xf32> to vector<2x8x16xbf16>
    "tpu.trace_start"() <{level = 10 : i32, message = "hsd,hdo->hso"}> : () -> ()
    %cst_33 = arith.constant dense<0.000000e+00> : vector<2x8x128xf32>
    %62 = tpu.matmul %61, %32, %cst_33 {dimension_numbers = #tpu.dot_dimension_numbers<[2], [1], [1], [2], [0, 0, 0, 1, 1, 2], [0], [0]>} : vector<2x8x16xbf16>, vector<2x16x128xbf16>, vector<2x8x128xf32> -> vector<2x8x128xf32>
    "tpu.trace_stop"() : () -> ()
    %cst_34 = arith.constant dense<0.000000e+00> : vector<8x128xf32>
    %63 = vector.multi_reduction <add>, %62, %cst_34 [0] : vector<2x8x128xf32> to vector<8x128xf32>
    %64 = arith.addf %2, %63 : vector<8x128xf32>
    %c0_35 = arith.constant 0 : index
    %c0_36 = arith.constant 0 : index
    %65 = vector.load %arg10[%c0_35, %c0_36] : memref<1x128xf32, #tpu.memory_space<vmem>>, vector<1x128xf32>
    %66 = arith.mulf %64, %64 : vector<8x128xf32>
    %cst_37 = arith.constant dense<0.000000e+00> : vector<8xf32>
    %67 = vector.multi_reduction <add>, %66, %cst_37 [1] : vector<8x128xf32> to vector<8xf32>
    %68 = vector.shape_cast %67 : vector<8xf32> to vector<8x1xf32>
    %cst_38 = arith.constant 3.125000e-02 : f32
    %69 = vector.broadcast %cst_38 : f32 to vector<8x1xf32>
    %70 = arith.mulf %68, %69 : vector<8x1xf32>
    %cst_39 = arith.constant 9.99999997E-7 : f32
    %71 = vector.broadcast %cst_39 : f32 to vector<8x1xf32>
    %72 = arith.addf %70, %71 : vector<8x1xf32>
    %73 = math.rsqrt %72 : vector<8x1xf32>
    %74 = vector.broadcast %73 : vector<8x1xf32> to vector<8x128xf32>
    %75 = arith.mulf %64, %74 : vector<8x128xf32>
    %76 = vector.broadcast %65 : vector<1x128xf32> to vector<8x128xf32>
    %77 = arith.mulf %75, %76 : vector<8x128xf32>
    %c0_40 = arith.constant 0 : index
    %c0_41 = arith.constant 0 : index
    %c0_42 = arith.constant 0 : index
    %78 = vector.load %arg11[%c0_40, %c0_41, %c0_42] : memref<2x128x16xbf16, #tpu.memory_space<vmem>>, vector<2x128x16xbf16>
    %c0_43 = arith.constant 0 : index
    %c0_44 = arith.constant 0 : index
    %c0_45 = arith.constant 0 : index
    %79 = vector.load %arg12[%c0_43, %c0_44, %c0_45] : memref<2x128x16xbf16, #tpu.memory_space<vmem>>, vector<2x128x16xbf16>
    %c0_46 = arith.constant 0 : index
    %c0_47 = arith.constant 0 : index
    %c0_48 = arith.constant 0 : index
    %80 = vector.load %arg13[%c0_46, %c0_47, %c0_48] : memref<2x128x16xbf16, #tpu.memory_space<vmem>>, vector<2x128x16xbf16>
    %c0_49 = arith.constant 0 : index
    %c0_50 = arith.constant 0 : index
    %c0_51 = arith.constant 0 : index
    %81 = vector.load %arg14[%c0_49, %c0_50, %c0_51] : memref<2x16x128xbf16, #tpu.memory_space<vmem>>, vector<2x16x128xbf16>
    %c0_52 = arith.constant 0 : index
    %c0_53 = arith.constant 0 : index
    %c0_54 = arith.constant 0 : index
    %82 = vector.load %arg3[%c0_52, %c0_53, %c0_54] : memref<1x1x8xf32, #tpu.memory_space<vmem>>, vector<1x1x8xf32>
    %83 = arith.truncf %77 : vector<8x128xf32> to vector<8x128xbf16>
    %84 = vector.shape_cast %83 : vector<8x128xbf16> to vector<1x8x128xbf16>
    %85 = vector.shape_cast %84 : vector<1x8x128xbf16> to vector<1x8x128xbf16>
    %86 = vector.broadcast %85 : vector<1x8x128xbf16> to vector<2x8x128xbf16>
    %87 = arith.truncf %5 : vector<8x128xf32> to vector<8x128xbf16>
    %88 = vector.shape_cast %87 : vector<8x128xbf16> to vector<1x8x128xbf16>
    %89 = vector.shape_cast %88 : vector<1x8x128xbf16> to vector<1x8x128xbf16>
    %90 = vector.broadcast %89 : vector<1x8x128xbf16> to vector<2x8x128xbf16>
    "tpu.trace_start"() <{level = 10 : i32, message = "hsd,hdf->hsf"}> : () -> ()
    %cst_55 = arith.constant dense<0.000000e+00> : vector<2x8x16xf32>
    %91 = tpu.matmul %86, %78, %cst_55 {dimension_numbers = #tpu.dot_dimension_numbers<[2], [1], [1], [2], [0, 0, 0, 1, 1, 2], [0], [0]>} : vector<2x8x128xbf16>, vector<2x128x16xbf16>, vector<2x8x16xf32> -> vector<2x8x16xf32>
    %cst_56 = arith.constant dense<0.000000e+00> : vector<2x8x16xf32>
    %92 = tpu.matmul %90, %79, %cst_56 {dimension_numbers = #tpu.dot_dimension_numbers<[2], [1], [1], [2], [0, 0, 0, 1, 1, 2], [0], [0]>} : vector<2x8x128xbf16>, vector<2x128x16xbf16>, vector<2x8x16xf32> -> vector<2x8x16xf32>
    %cst_57 = arith.constant dense<0.000000e+00> : vector<2x8x16xf32>
    %93 = tpu.matmul %90, %80, %cst_57 {dimension_numbers = #tpu.dot_dimension_numbers<[2], [1], [1], [2], [0, 0, 0, 1, 1, 2], [0], [0]>} : vector<2x8x128xbf16>, vector<2x128x16xbf16>, vector<2x8x16xf32> -> vector<2x8x16xf32>
    "tpu.trace_stop"() : () -> ()
    %94 = arith.truncf %91 : vector<2x8x16xf32> to vector<2x8x16xbf16>
    %95 = arith.truncf %92 : vector<2x8x16xf32> to vector<2x8x16xbf16>
    "tpu.trace_start"() <{level = 10 : i32, message = "hqd,hkd->hqk"}> : () -> ()
    %cst_58 = arith.constant dense<0.000000e+00> : vector<2x8x8xf32>
    %96 = tpu.matmul %94, %95, %cst_58 {dimension_numbers = #tpu.dot_dimension_numbers<[2], [2], [1], [1], [0, 0, 0, 1, 1, 1], [0], [0]>} : vector<2x8x16xbf16>, vector<2x8x16xbf16>, vector<2x8x8xf32> -> vector<2x8x8xf32>
    "tpu.trace_stop"() : () -> ()
    %97 = vector.broadcast %82 : vector<1x1x8xf32> to vector<2x8x8xf32>
    %98 = arith.addf %96, %97 : vector<2x8x8xf32>
    %cst_59 = arith.constant dense<0xFF800000> : vector<2x8xf32>
    %99 = vector.multi_reduction <maximumf>, %98, %cst_59 [2] : vector<2x8x8xf32> to vector<2x8xf32>
    %100 = vector.shape_cast %99 : vector<2x8xf32> to vector<2x8x1xf32>
    %101 = vector.broadcast %100 : vector<2x8x1xf32> to vector<2x8x8xf32>
    %102 = arith.subf %98, %101 : vector<2x8x8xf32>
    %103 = math.exp %102 : vector<2x8x8xf32>
    %cst_60 = arith.constant dense<0.000000e+00> : vector<2x8xf32>
    %104 = vector.multi_reduction <add>, %103, %cst_60 [2] : vector<2x8x8xf32> to vector<2x8xf32>
    %105 = vector.shape_cast %104 : vector<2x8xf32> to vector<2x8x1xf32>
    %106 = tpu.reciprocal %105 {approx = true} : vector<2x8x1xf32> -> vector<2x8x1xf32>
    %107 = vector.broadcast %106 : vector<2x8x1xf32> to vector<2x8x8xf32>
    %108 = arith.mulf %103, %107 : vector<2x8x8xf32>
    %109 = arith.truncf %108 : vector<2x8x8xf32> to vector<2x8x8xbf16>
    %110 = arith.truncf %93 : vector<2x8x16xf32> to vector<2x8x16xbf16>
    "tpu.trace_start"() <{level = 10 : i32, message = "hqk,hkd->hqd"}> : () -> ()
    %cst_61 = arith.constant dense<0.000000e+00> : vector<2x8x16xf32>
    %111 = tpu.matmul %109, %110, %cst_61 {dimension_numbers = #tpu.dot_dimension_numbers<[2], [1], [1], [2], [0, 0, 0, 1, 1, 2], [0], [0]>} : vector<2x8x8xbf16>, vector<2x8x16xbf16>, vector<2x8x16xf32> -> vector<2x8x16xf32>
    "tpu.trace_stop"() : () -> ()
    %112 = arith.truncf %111 : vector<2x8x16xf32> to vector<2x8x16xbf16>
    "tpu.trace_start"() <{level = 10 : i32, message = "hsd,hdo->hso"}> : () -> ()
    %cst_62 = arith.constant dense<0.000000e+00> : vector<2x8x128xf32>
    %113 = tpu.matmul %112, %81, %cst_62 {dimension_numbers = #tpu.dot_dimension_numbers<[2], [1], [1], [2], [0, 0, 0, 1, 1, 2], [0], [0]>} : vector<2x8x16xbf16>, vector<2x16x128xbf16>, vector<2x8x128xf32> -> vector<2x8x128xf32>
    "tpu.trace_stop"() : () -> ()
    %cst_63 = arith.constant dense<0.000000e+00> : vector<8x128xf32>
    %114 = vector.multi_reduction <add>, %113, %cst_63 [0] : vector<2x8x128xf32> to vector<8x128xf32>
    %115 = arith.addf %64, %114 : vector<8x128xf32>
    %c0_64 = arith.constant 0 : index
    %c0_65 = arith.constant 0 : index
    %116 = vector.load %arg15[%c0_64, %c0_65] : memref<1x128xf32, #tpu.memory_space<vmem>>, vector<1x128xf32>
    %117 = arith.mulf %115, %115 : vector<8x128xf32>
    %cst_66 = arith.constant dense<0.000000e+00> : vector<8xf32>
    %118 = vector.multi_reduction <add>, %117, %cst_66 [1] : vector<8x128xf32> to vector<8xf32>
    %119 = vector.shape_cast %118 : vector<8xf32> to vector<8x1xf32>
    %cst_67 = arith.constant 3.125000e-02 : f32
    %120 = vector.broadcast %cst_67 : f32 to vector<8x1xf32>
    %121 = arith.mulf %119, %120 : vector<8x1xf32>
    %cst_68 = arith.constant 9.99999997E-7 : f32
    %122 = vector.broadcast %cst_68 : f32 to vector<8x1xf32>
    %123 = arith.addf %121, %122 : vector<8x1xf32>
    %124 = math.rsqrt %123 : vector<8x1xf32>
    %125 = vector.broadcast %124 : vector<8x1xf32> to vector<8x128xf32>
    %126 = arith.mulf %115, %125 : vector<8x128xf32>
    %127 = vector.broadcast %116 : vector<1x128xf32> to vector<8x128xf32>
    %128 = arith.mulf %126, %127 : vector<8x128xf32>
    %129 = arith.truncf %128 : vector<8x128xf32> to vector<8x128xbf16>
    %c0_69 = arith.constant 0 : index
    %c0_70 = arith.constant 0 : index
    %130 = vector.load %arg16[%c0_69, %c0_70] : memref<128x64xbf16, #tpu.memory_space<vmem>>, vector<128x64xbf16>
    %cst_71 = arith.constant dense<0.000000e+00> : vector<8x64xf32>
    %131 = tpu.matmul %129, %130, %cst_71 {dimension_numbers = #tpu.dot_dimension_numbers<[1], [0], [0], [1], [0, 0, 1, 1], [], []>} : vector<8x128xbf16>, vector<128x64xbf16>, vector<8x64xf32> -> vector<8x64xf32>
    %cst_72 = arith.constant 0.000000e+00 : f32
    %132 = vector.broadcast %cst_72 : f32 to vector<8x64xf32>
    %133 = arith.maximumf %131, %132 : vector<8x64xf32>
    %134 = arith.truncf %133 : vector<8x64xf32> to vector<8x64xbf16>
    %c0_73 = arith.constant 0 : index
    %c0_74 = arith.constant 0 : index
    %135 = vector.load %arg17[%c0_73, %c0_74] : memref<64x128xbf16, #tpu.memory_space<vmem>>, vector<64x128xbf16>
    %cst_75 = arith.constant dense<0.000000e+00> : vector<8x128xf32>
    %136 = tpu.matmul %134, %135, %cst_75 {dimension_numbers = #tpu.dot_dimension_numbers<[1], [0], [0], [1], [0, 0, 1, 1], [], []>} : vector<8x64xbf16>, vector<64x128xbf16>, vector<8x128xf32> -> vector<8x128xf32>
    %137 = arith.addf %115, %136 : vector<8x128xf32>
    %138 = arith.truncf %137 : vector<8x128xf32> to vector<8x128xbf16>
    %c0_76 = arith.constant 0 : index
    %c0_77 = arith.constant 0 : index
    %c0_78 = arith.constant 0 : index
    %139 = vector.load %arg18[%c0_76, %c0_77, %c0_78] : memref<1x8x128xbf16, #tpu.memory_space<vmem>>, vector<1x8x128xbf16>
    %140 = vector.shape_cast %139 : vector<1x8x128xbf16> to vector<8x128xbf16>
    %141 = vector.shape_cast %138 : vector<8x128xbf16> to vector<1x8x128xbf16>
    tpu.vector_store %arg18[%c0_76, %c0_77, %c0_78], %141 {strides = array<i32>} : memref<1x8x128xbf16, #tpu.memory_space<vmem>>, vector<1x8x128xbf16>,
    return
  }
  func.func @transform_0(%arg0: i32) -> (i32, i32, i32) {
    %c0_i32 = arith.constant 0 : i32
    %c0_i32_0 = arith.constant 0 : i32
    %c0_i32_1 = arith.constant 0 : i32
    return %arg0, %c0_i32, %c0_i32_0 : i32, i32, i32
  }
  func.func @transform_1(%arg0: i32) -> (i32, i32, i32) {
    %c0_i32 = arith.constant 0 : i32
    %c0_i32_0 = arith.constant 0 : i32
    %c0_i32_1 = arith.constant 0 : i32
    return %arg0, %c0_i32, %c0_i32_0 : i32, i32, i32
  }
  func.func @transform_2(%arg0: i32) -> (i32, i32, i32) {
    %c0_i32 = arith.constant 0 : i32
    %c0_i32_0 = arith.constant 0 : i32
    %c0_i32_1 = arith.constant 0 : i32
    return %arg0, %c0_i32, %c0_i32_0 : i32, i32, i32
  }
  func.func @transform_3(%arg0: i32) -> (i32, i32, i32) {
    %c0_i32 = arith.constant 0 : i32
    %c0_i32_0 = arith.constant 0 : i32
    %c0_i32_1 = arith.constant 0 : i32
    %c0_i32_2 = arith.constant 0 : i32
    return %c0_i32, %c0_i32_0, %c0_i32_1 : i32, i32, i32
  }
  func.func @transform_4(%arg0: i32) -> (i32, i32) {
    %c0_i32 = arith.constant 0 : i32
    %c0_i32_0 = arith.constant 0 : i32
    %c0_i32_1 = arith.constant 0 : i32
    return %c0_i32, %c0_i32_0 : i32, i32
  }
  func.func @transform_5(%arg0: i32) -> (i32, i32, i32) {
    %c0_i32 = arith.constant 0 : i32
    %c0_i32_0 = arith.constant 0 : i32
    %c0_i32_1 = arith.constant 0 : i32
    %c0_i32_2 = arith.constant 0 : i32
    return %c0_i32, %c0_i32_0, %c0_i32_1 : i32, i32, i32
  }
  func.func @transform_6(%arg0: i32) -> (i32, i32, i32) {
    %c0_i32 = arith.constant 0 : i32
    %c0_i32_0 = arith.constant 0 : i32
    %c0_i32_1 = arith.constant 0 : i32
    %c0_i32_2 = arith.constant 0 : i32
    return %c0_i32, %c0_i32_0, %c0_i32_1 : i32, i32, i32
  }
  func.func @transform_7(%arg0: i32) -> (i32, i32, i32) {
    %c0_i32 = arith.constant 0 : i32
    %c0_i32_0 = arith.constant 0 : i32
    %c0_i32_1 = arith.constant 0 : i32
    %c0_i32_2 = arith.constant 0 : i32
    return %c0_i32, %c0_i32_0, %c0_i32_1 : i32, i32, i32
  }
  func.func @transform_8(%arg0: i32) -> (i32, i32, i32) {
    %c0_i32 = arith.constant 0 : i32
    %c0_i32_0 = arith.constant 0 : i32
    %c0_i32_1 = arith.constant 0 : i32
    %c0_i32_2 = arith.constant 0 : i32
    return %c0_i32, %c0_i32_0, %c0_i32_1 : i32, i32, i32
  }
  func.func @transform_9(%arg0: i32) -> (i32, i32) {
    %c0_i32 = arith.constant 0 : i32
    %c0_i32_0 = arith.constant 0 : i32
    %c0_i32_1 = arith.constant 0 : i32
    return %c0_i32, %c0_i32_0 : i32, i32
  }
  func.func @transform_10(%arg0: i32) -> (i32, i32, i32) {
    %c0_i32 = arith.constant 0 : i32
    %c0_i32_0 = arith.constant 0 : i32
    %c0_i32_1 = arith.constant 0 : i32
    %c0_i32_2 = arith.constant 0 : i32
    return %c0_i32, %c0_i32_0, %c0_i32_1 : i32, i32, i32
  }
  func.func @transform_11(%arg0: i32) -> (i32, i32, i32) {
    %c0_i32 = arith.constant 0 : i32
    %c0_i32_0 = arith.constant 0 : i32
    %c0_i32_1 = arith.constant 0 : i32
    %c0_i32_2 = arith.constant 0 : i32
    return %c0_i32, %c0_i32_0, %c0_i32_1 : i32, i32, i32
  }
  func.func @transform_12(%arg0: i32) -> (i32, i32, i32) {
    %c0_i32 = arith.constant 0 : i32
    %c0_i32_0 = arith.constant 0 : i32
    %c0_i32_1 = arith.constant 0 : i32
    %c0_i32_2 = arith.constant 0 : i32
    return %c0_i32, %c0_i32_0, %c0_i32_1 : i32, i32, i32
  }
  func.func @transform_13(%arg0: i32) -> (i32, i32, i32) {
    %c0_i32 = arith.constant 0 : i32
    %c0_i32_0 = arith.constant 0 : i32
    %c0_i32_1 = arith.constant 0 : i32
    %c0_i32_2 = arith.constant 0 : i32
    return %c0_i32, %c0_i32_0, %c0_i32_1 : i32, i32, i32
  }
  func.func @transform_14(%arg0: i32) -> (i32, i32) {
    %c0_i32 = arith.constant 0 : i32
    %c0_i32_0 = arith.constant 0 : i32
    %c0_i32_1 = arith.constant 0 : i32
    return %c0_i32, %c0_i32_0 : i32, i32
  }
  func.func @transform_15(%arg0: i32) -> (i32, i32) {
    %c0_i32 = arith.constant 0 : i32
    %c0_i32_0 = arith.constant 0 : i32
    %c0_i32_1 = arith.constant 0 : i32
    return %c0_i32, %c0_i32_0 : i32, i32
  }
  func.func @transform_16(%arg0: i32) -> (i32, i32) {
    %c0_i32 = arith.constant 0 : i32
    %c0_i32_0 = arith.constant 0 : i32
    %c0_i32_1 = arith.constant 0 : i32
    return %c0_i32, %c0_i32_0 : i32, i32
  }
  func.func @transform_17(%arg0: i32) -> (i32, i32, i32) {
    %c0_i32 = arith.constant 0 : i32
    %c0_i32_0 = arith.constant 0 : i32
    %c0_i32_1 = arith.constant 0 : i32
    return %arg0, %c0_i32, %c0_i32_0 : i32, i32, i32
  }
}

module attributes {stable_mosaic.version = 11 : i64} {
  func.func @_lmhead_ce_kernel(%arg0: i32, %arg1: memref<16x128xbf16, #tpu.memory_space<vmem>>, %arg2: memref<1x128xf32, #tpu.memory_space<vmem>>, %arg3: memref<128x128xbf16, #tpu.memory_space<vmem>>, %arg4: memref<16x1xi32, #tpu.memory_space<vmem>>, %arg5: memref<1x1xf32, #tpu.memory_space<vmem>>, %arg6: memref<16x128xf32, #tpu.memory_space<vmem>>) attributes {dimension_semantics = [#tpu.dimension_semantics<arbitrary>], iteration_bounds = array<i64: 1>, scalar_prefetch = 0 : i64, scratch_operands = 0 : i64, tpu.core_type = #tpu.core_type<tc>, window_params = [{pipeline_mode = #tpu.pipeline_mode<synchronous>, transform_indices = @transform_0, window_bounds = array<i64: 16, 128>}, {pipeline_mode = #tpu.pipeline_mode<synchronous>, transform_indices = @transform_1, window_bounds = array<i64: 1, 128>}, {pipeline_mode = #tpu.pipeline_mode<synchronous>, transform_indices = @transform_2, window_bounds = array<i64: 128, 128>}, {pipeline_mode = #tpu.pipeline_mode<synchronous>, transform_indices = @transform_3, window_bounds = array<i64: 16, 1>}, {pipeline_mode = #tpu.pipeline_mode<synchronous>, transform_indices = @transform_4, window_bounds = array<i64: 1, 1>}, {pipeline_mode = #tpu.pipeline_mode<synchronous>, transform_indices = @transform_5, window_bounds = array<i64: 16, 128>}]} {
    %c0 = arith.constant 0 : index
    %c0_0 = arith.constant 0 : index
    %0 = vector.load %arg1[%c0, %c0_0] : memref<16x128xbf16, #tpu.memory_space<vmem>>, vector<16x128xbf16>
    %c0_1 = arith.constant 0 : index
    %c0_2 = arith.constant 0 : index
    %1 = vector.load %arg2[%c0_1, %c0_2] : memref<1x128xf32, #tpu.memory_space<vmem>>, vector<1x128xf32>
    %2 = arith.extf %0 : vector<16x128xbf16> to vector<16x128xf32>
    %3 = arith.mulf %2, %2 : vector<16x128xf32>
    %cst = arith.constant dense<0.000000e+00> : vector<16xf32>
    %4 = vector.multi_reduction <add>, %3, %cst [1] : vector<16x128xf32> to vector<16xf32>
    %5 = vector.shape_cast %4 : vector<16xf32> to vector<16x1xf32>
    %cst_3 = arith.constant 3.125000e-02 : f32
    %6 = vector.broadcast %cst_3 : f32 to vector<16x1xf32>
    %7 = arith.mulf %5, %6 : vector<16x1xf32>
    %cst_4 = arith.constant 9.99999997E-7 : f32
    %8 = vector.broadcast %cst_4 : f32 to vector<16x1xf32>
    %9 = arith.addf %7, %8 : vector<16x1xf32>
    %10 = math.rsqrt %9 : vector<16x1xf32>
    %11 = vector.broadcast %10 : vector<16x1xf32> to vector<16x128xf32>
    %12 = arith.mulf %2, %11 : vector<16x128xf32>
    %13 = vector.broadcast %1 : vector<1x128xf32> to vector<16x128xf32>
    %14 = arith.mulf %12, %13 : vector<16x128xf32>
    %cst_5 = arith.constant 0.176776692 : f32
    %15 = vector.broadcast %cst_5 : f32 to vector<16x128xf32>
    %16 = arith.mulf %14, %15 : vector<16x128xf32>
    %17 = arith.truncf %16 : vector<16x128xf32> to vector<16x128xbf16>
    %c0_6 = arith.constant 0 : index
    %c0_7 = arith.constant 0 : index
    %18 = vector.load %arg3[%c0_6, %c0_7] : memref<128x128xbf16, #tpu.memory_space<vmem>>, vector<128x128xbf16>
    %cst_8 = arith.constant dense<0.000000e+00> : vector<16x128xf32>
    %19 = tpu.matmul %17, %18, %cst_8 {dimension_numbers = #tpu.dot_dimension_numbers<[1], [1], [0], [0], [0, 0, 1, 0], [], []>} : vector<16x128xbf16>, vector<128x128xbf16>, vector<16x128xf32> -> vector<16x128xf32>
    %c0_9 = arith.constant 0 : index
    %c0_10 = arith.constant 0 : index
    %20 = vector.load %arg6[%c0_9, %c0_10] : memref<16x128xf32, #tpu.memory_space<vmem>>, vector<16x128xf32>
    tpu.vector_store %arg6[%c0_9, %c0_10], %19 {strides = array<i32>} : memref<16x128xf32, #tpu.memory_space<vmem>>, vector<16x128xf32>,
    %c0_11 = arith.constant 0 : index
    %c0_12 = arith.constant 0 : index
    %21 = vector.load %arg4[%c0_11, %c0_12] : memref<16x1xi32, #tpu.memory_space<vmem>>, vector<16x1xi32>
    %22 = tpu.iota {dimensions = array<i32: 1>} : vector<16x128xi32>
    %23 = vector.broadcast %21 : vector<16x1xi32> to vector<16x128xi32>
    %24 = arith.cmpi eq, %22, %23 : vector<16x128xi32>
    %25 = arith.extui %24 : vector<16x128xi1> to vector<16x128xi32>
    %26 = arith.sitofp %25 : vector<16x128xi32> to vector<16x128xf32>
    %cst_13 = arith.constant dense<0xFF800000> : vector<16xf32>
    %27 = vector.multi_reduction <maximumf>, %19, %cst_13 [1] : vector<16x128xf32> to vector<16xf32>
    %28 = vector.shape_cast %27 : vector<16xf32> to vector<16x1xf32>
    %29 = vector.broadcast %28 : vector<16x1xf32> to vector<16x128xf32>
    %30 = arith.subf %19, %29 : vector<16x128xf32>
    %31 = math.exp %30 : vector<16x128xf32>
    %cst_14 = arith.constant dense<0.000000e+00> : vector<16xf32>
    %32 = vector.multi_reduction <add>, %31, %cst_14 [1] : vector<16x128xf32> to vector<16xf32>
    %33 = vector.shape_cast %32 : vector<16xf32> to vector<16x1xf32>
    %34 = math.log %33 : vector<16x1xf32>
    %35 = arith.addf %34, %28 : vector<16x1xf32>
    %36 = arith.mulf %19, %26 : vector<16x128xf32>
    %cst_15 = arith.constant dense<0.000000e+00> : vector<16xf32>
    %37 = vector.multi_reduction <add>, %36, %cst_15 [1] : vector<16x128xf32> to vector<16xf32>
    %38 = vector.shape_cast %37 : vector<16xf32> to vector<16x1xf32>
    %39 = arith.subf %35, %38 : vector<16x1xf32>
    %40 = vector.shape_cast %39 : vector<16x1xf32> to vector<1x16x1xf32>
    %cst_16 = arith.constant dense<0.000000e+00> : vector<1xf32>
    %41 = vector.multi_reduction <add>, %40, %cst_16 [1, 2] : vector<1x16x1xf32> to vector<1xf32>
    %42 = vector.shape_cast %41 : vector<1xf32> to vector<1x1x1xf32>
    %43 = vector.extract %42[0, 0, 0] : f32 from vector<1x1x1xf32>
    %44 = vector.broadcast %43 : f32 to vector<1x1xf32>
    %cst_17 = arith.constant 1.600000e+01 : f32
    %45 = vector.broadcast %cst_17 : f32 to vector<1x1xf32>
    %46 = arith.divf %44, %45 : vector<1x1xf32>
    %c0_18 = arith.constant 0 : index
    %c0_19 = arith.constant 0 : index
    %47 = vector.load %arg5[%c0_18, %c0_19] : memref<1x1xf32, #tpu.memory_space<vmem>>, vector<1x1xf32>
    tpu.vector_store %arg5[%c0_18, %c0_19], %46 {strides = array<i32>} : memref<1x1xf32, #tpu.memory_space<vmem>>, vector<1x1xf32>,
    return
  }
  func.func @transform_0(%arg0: i32) -> (i32, i32) {
    %c0_i32 = arith.constant 0 : i32
    %c0_i32_0 = arith.constant 0 : i32
    %c0_i32_1 = arith.constant 0 : i32
    return %c0_i32, %c0_i32_0 : i32, i32
  }
  func.func @transform_1(%arg0: i32) -> (i32, i32) {
    %c0_i32 = arith.constant 0 : i32
    %c0_i32_0 = arith.constant 0 : i32
    %c0_i32_1 = arith.constant 0 : i32
    return %c0_i32, %c0_i32_0 : i32, i32
  }
  func.func @transform_2(%arg0: i32) -> (i32, i32) {
    %c0_i32 = arith.constant 0 : i32
    %c0_i32_0 = arith.constant 0 : i32
    %c0_i32_1 = arith.constant 0 : i32
    return %c0_i32, %c0_i32_0 : i32, i32
  }
  func.func @transform_3(%arg0: i32) -> (i32, i32) {
    %c0_i32 = arith.constant 0 : i32
    %c0_i32_0 = arith.constant 0 : i32
    %c0_i32_1 = arith.constant 0 : i32
    return %c0_i32, %c0_i32_0 : i32, i32
  }
  func.func @transform_4(%arg0: i32) -> (i32, i32) {
    %c0_i32 = arith.constant 0 : i32
    %c0_i32_0 = arith.constant 0 : i32
    %c0_i32_1 = arith.constant 0 : i32
    return %c0_i32, %c0_i32_0 : i32, i32
  }
  func.func @transform_5(%arg0: i32) -> (i32, i32) {
    %c0_i32 = arith.constant 0 : i32
    %c0_i32_0 = arith.constant 0 : i32
    %c0_i32_1 = arith.constant 0 : i32
    return %c0_i32, %c0_i32_0 : i32, i32
  }
}

</mosaic_0001>

<llo_original>
// kernel: forward.5
$region0: #{forward.5}
  #allocation0 [shape = 'u32[]', space=smem, size = 0x4, offset = 0x4, fixed_abs, tag = 'smem constant byte address 0x4 - core index']
  #allocation1 [shape = 'u32[72,128]{1,0:T(1,128)}', space=vmem, size = 0x9000, scoped, tag = 'internal scratch']
  %s0 = inlined_call_operand.vmem [shape: bf16[16,128], index: 0, kind: input, shape index: {}]
  %s1 = inlined_call_operand.vmem [shape: f32[1,128], index: 1, kind: input, shape index: {}]
  %s2 = inlined_call_operand.vmem [shape: bf16[128,128], index: 2, kind: input, shape index: {}]
  %s3 = inlined_call_operand.vmem [shape: s32[16,1], index: 3, kind: input, shape index: {}]
  %s4 = inlined_call_operand.hbm [shape: f32[1,1], index: 4, kind: output, shape index: {0}]
  %s5 = inlined_call_operand.hbm [shape: f32[16,128], index: 5, kind: output, shape index: {1}]
  %6 = xla_tuple %s4, %s5
  %s7 = sld [smem:[#allocation0]]
  $region34: #{forward.5} parent=0
    _
  %s9 = ssub.s32 1, %s7
  %s10 = scalar_select 0, %s9, %s7
  $region1: #{forward.5} parent=0
    #allocation2 [shape = 'u8[512]{0}', space=vmem, size = 0x400, scoped, tag = 'output window, operand 0, single buffered']
    #allocation3 [shape = 's32[1]{0}', space=sflag, size = 0x4, scoped, tag = 'scoped memory for forward.5']
    #allocation4 [shape = 'u8[8192]{0}', space=vmem, size = 0x2000, scoped, tag = 'output window, operand 1, single buffered']
    #allocation5 [shape = 's32[1]{0}', space=sflag, size = 0x4, scoped, tag = 'scoped memory for forward.5']
    %11 = vsyncpa [#allocation3], 0
    %12 = vsyncpa [#allocation5], 0
    // Predicated region
    $region2: #{forward.5} parent=1 // pred_check
      _
    $region3: #{forward.5} parent=1 // pred_check_branch
      %14 = sbr.rel (0) target = $region5
    $region4: #{forward.5} parent=1 // pred_region
      _
    $region5: #{forward.5} parent=1 // pred_fallthru
      _
    // Predicated region
    $region6: #{forward.5} parent=1 // pred_check
      _
    $region7: #{forward.5} parent=1 // pred_check_branch
      %16 = sbr.rel (0) target = $region9
    $region8: #{forward.5} parent=1 // pred_region
      _
    $region9: #{forward.5} parent=1 // pred_fallthru
      _
    // Predicated region
    $region10: #{forward.5} parent=1 // pred_check
      _
    $region11: #{forward.5} parent=1 // pred_check_branch
      %18 = sbr.rel (0) target = $region13
    $region12: #{forward.5} parent=1 // pred_region
      _
    $region13: #{forward.5} parent=1 // pred_fallthru
      _
    // Predicated region
    $region14: #{forward.5} parent=1 // pred_check
      _
    $region15: #{forward.5} parent=1 // pred_check_branch
      %20 = sbr.rel (0) target = $region17
    $region16: #{forward.5} parent=1 // pred_region
      _
    $region17: #{forward.5} parent=1 // pred_fallthru
      _
    %v21 = vld [vmem:[%s0] sm:$0xf]
    %v22 = vld [vmem:[%s0 + $0x4] sm:$0xf]
    %v23 = vld [vmem:[%s1] sm:$0x1]
    %v24 = vunpack.c.l.bf16 %v21
    %v25 = vunpack.c.l.bf16 %v22
    %v26 = vmul.f32 %v24, %v24
    %v27 = vmul.f32 %v25, %v25
    %28 = vadd.xlane.f32.xlu0 %v26
    %v29 = vpop.xlane.xlu0 %28
    %30 = vadd.xlane.f32.xlu0 %v27
    %v31 = vpop.xlane.xlu0 %30
    %v32 = vmul.f32 %v29, 0.03125
    %v33 = vmul.f32 %v31, 0.03125
    %v34 = vadd.f32 %v32, 1e-06
    %v35 = vadd.f32 %v33, 1e-06
    %v36 = vrsqrt.pop %v34
    %v37 = vmul.f32 %v36, %v34
    %v38 = vmul.f32 %v37, %v36
    %v39 = vmul.f32 0.5, %v38
    %v40 = vsub.f32 1.5, %v39
    %v41 = vmul.f32 %v36, %v40
    %vm42 = vweird.f32 %v34
    %vm43 = vweird.f32 %v36
    %vm44 = vmor %vm42, %vm43
    %v45 = vsel %vm44, %v36, %v41
    %v46 = vrsqrt.pop %v35
    %v47 = vmul.f32 %v46, %v35
    %v48 = vmul.f32 %v47, %v46
    %v49 = vmul.f32 0.5, %v48
    %v50 = vsub.f32 1.5, %v49
    %v51 = vmul.f32 %v46, %v50
    %vm52 = vweird.f32 %v35
    %vm53 = vweird.f32 %v46
    %vm54 = vmor %vm52, %vm53
    %v55 = vsel %vm54, %v46, %v51
    %v56 = vmul.f32 %v24, %v45
    %v57 = vmul.f32 %v25, %v55
    %v59 = vperm.slane %v23, 0
    %v61 = vmul.f32 %v56, %v59
    %v62 = vmul.f32 %v57, %v59
    %v63 = vmul.f32 %v61, 0.17677669
    %v64 = vmul.f32 %v62, 0.17677669
    %v65 = vpack.c.bf16 %v64, %v63
    %v66 = vld [vmem:[%s2] sm:$0xf]
    %v67 = vld [vmem:[%s2 + $0x4] sm:$0xf]
    %v68 = vld [vmem:[%s2 + $0x8] sm:$0xf]
    %v69 = vld [vmem:[%s2 + $0xc] sm:$0xf]
    %v70 = vld [vmem:[%s2 + $0x10] sm:$0xf]
    %v71 = vld [vmem:[%s2 + $0x14] sm:$0xf]
    %v72 = vld [vmem:[%s2 + $0x18] sm:$0xf]
    %v73 = vld [vmem:[%s2 + $0x1c] sm:$0xf]
    %v74 = vld [vmem:[%s2 + $0x20] sm:$0xf]
    %v75 = vld [vmem:[%s2 + $0x24] sm:$0xf]
    %v76 = vld [vmem:[%s2 + $0x28] sm:$0xf]
    %v77 = vld [vmem:[%s2 + $0x2c] sm:$0xf]
    %v78 = vld [vmem:[%s2 + $0x30] sm:$0xf]
    %v79 = vld [vmem:[%s2 + $0x34] sm:$0xf]
    %v80 = vld [vmem:[%s2 + $0x38] sm:$0xf]
    %v81 = vld [vmem:[%s2 + $0x3c] sm:$0xf]
    %v98 = vunpack.c.l.b16 %v66
    %v99 = vunpack.c.l.b16 %v67
    %v100 = vunpack.c.l.b16 %v68
    %v101 = vunpack.c.l.b16 %v69
    %v102 = vunpack.c.l.b16 %v70
    %v103 = vunpack.c.l.b16 %v71
    %v104 = vunpack.c.l.b16 %v72
    %v105 = vunpack.c.l.b16 %v73
    %v106 = vunpack.c.l.b16 %v74
    %v107 = vunpack.c.l.b16 %v75
    %v108 = vunpack.c.l.b16 %v76
    %v109 = vunpack.c.l.b16 %v77
    %v110 = vunpack.c.l.b16 %v78
    %v111 = vunpack.c.l.b16 %v79
    %v112 = vunpack.c.l.b16 %v80
    %v113 = vunpack.c.l.b16 %v81
    %v114 = vpack.c.b16 %v99, %v98
    %v115 = vpack.c.b16 %v101, %v100
    %v116 = vpack.c.b16 %v103, %v102
    %v117 = vpack.c.b16 %v105, %v104
    %v118 = vpack.c.b16 %v107, %v106
    %v119 = vpack.c.b16 %v109, %v108
    %v120 = vpack.c.b16 %v111, %v110
    %v121 = vpack.c.b16 %v113, %v112
    %130 = vmatpush.bf16.xpose.msra.mxu0 %v121
    %131 = vmatpush.bf16.xpose.msra.mxu0 %v120
    %132 = vmatpush.bf16.xpose.msra.mxu0 %v119
    %133 = vmatpush.bf16.xpose.msra.mxu0 %v118
    %134 = vmatpush.bf16.xpose.msra.mxu0 %v117
    %135 = vmatpush.bf16.xpose.msra.mxu0 %v116
    %136 = vmatpush.bf16.xpose.msra.mxu0 %v115
    %137 = vmatpush.bf16.xpose.msra.mxu0 %v114
    %138 = vmatmul.bf16.gmra.mxu0 %v65
    %v139 = vpop.f32.mrf.mxu0
    %v140 = vadd.f32 0.0, %v139
    %v141 = vpop.f32.mrf.mxu0
    %v142 = vadd.f32 0.0, %v141
    %143 = vdwg.mxu0
    %144 = vst [vmem:[#allocation4] sm:$0xff] %v140
    %145 = vst [vmem:[#allocation4 + $0x8] sm:$0xff] %v142
    %v146 = vld [vmem:[%s3] sm:$0xff]
    %v147 = vld [vmem:[%s3 + $0x8] sm:$0xff]
    %v148 = vlaneseq
    %v149 = vand.u32 %v148, 127
    %150 = vset.pattern.permute.xlu0 0
    %151 = vperm.xlu0 %150, %v146
    %v152 = vpop.permute.xlu0 %151
    %153 = vset.pattern.permute.xlu0 0
    %154 = vperm.xlu0 %153, %v147
    %v155 = vpop.permute.xlu0 %154
    %vm156 = vcmp.eq.s32.totalorder %v149, %v152
    %vm157 = vcmp.eq.s32.totalorder %v149, %v155
    %v158 = vsel %vm156, 1, 0
    %v159 = vsel %vm157, 1, 0
    %v160 = vcvt.s32.f32 %v158
    %v161 = vcvt.s32.f32 %v159
    %162 = vmax.xlane.f32.xlu0 %v140
    %v163 = vpop.xlane.xlu0 %162
    %164 = vmax.xlane.f32.xlu0 %v142
    %v165 = vpop.xlane.xlu0 %164
    %v166 = vsub.f32 %v140, %v163
    %v167 = vsub.f32 %v142, %v165
    %v168 = vmul.f32 %v166, 1.442695
    %v169 = vpow.pop %v168
    %v170 = vmul.f32 %v167, 1.442695
    %v171 = vpow.pop %v170
    %172 = vadd.xlane.f32.xlu0 %v169
    %v173 = vpop.xlane.xlu0 %172
    %174 = vadd.xlane.f32.xlu0 %v171
    %v175 = vpop.xlane.xlu0 %174
    %v176 = vlog2.pop %v173
    %v177 = vmul.f32 %v176, 0.6931472
    %v178 = vlog2.pop %v175
    %v179 = vmul.f32 %v178, 0.6931472
    %v180 = vadd.f32 %v177, %v163
    %v181 = vadd.f32 %v179, %v165
    %v182 = vmul.f32 %v140, %v160
    %v183 = vmul.f32 %v142, %v161
    %184 = vadd.xlane.f32.xlu0 %v182
    %v185 = vpop.xlane.xlu0 %184
    %186 = vadd.xlane.f32.xlu0 %v183
    %v187 = vpop.xlane.xlu0 %186
    %v188 = vsub.f32 %v180, %v185
    %v189 = vsub.f32 %v181, %v187
    %vm190 = vcmask 7168
    %v191 = vsel %vm190, %v188, 0.0
    %v192 = vsel %vm190, %v189, 0.0
    %v193 = vadd.f32 %v191, %v192
    %194 = vadd.xlane.f32.xlu0 %v193
    %v195 = vpop.xlane.xlu0 %194
    %v196 = vrot.slane %v195, 4
    %v197 = vadd.f32 %v195, %v196
    %v198 = vrot.slane %v197, 2
    %v199 = vadd.f32 %v197, %v198
    %v200 = vrot.slane %v199, 1
    %v201 = vadd.f32 %v199, %v200
    %s202 = vtos %v201
    %v203 = vstv %s202
    %v204 = vrcp.pop 16.0
    %v205 = vmul.f32 16.0, %v204
    %v206 = vsub.f32 1.0, %v205
    %v207 = vmul.f32 %v204, %v206
    %v208 = vadd.f32 %v204, %v207
    %vm209 = vweird.f32 %v204
    %v210 = vsel %vm209, %v204, %v208
    %v211 = vmul.f32 %v203, %v210
    %vm212 = vcmask 0
    %213 = vst.msk [vmem:[#allocation2] sm:$0x1] %vm212, %v211
    // Predicated region
    $region18: #{forward.5} parent=1 // pred_check
      _
    $region19: #{forward.5} parent=1 // pred_check_branch
      %215 = sbr.rel (0) target = $region21
    $region20: #{forward.5} parent=1 // pred_region
      %217 = vsyncadd [#allocation3], 0
      %s219 = sshll.u32 [#allocation2], 4
      %s220 = int_to_ptr.vmem [resolvable:$true] %s219
      %s221 = sshll.u32 %s4, 4
      %s222 = int_to_ptr.hbm [resolvable:$true] %s221
      %224 = dma.vmem_to_hbm [thread:$0]  %s220, 16, %s222, [#allocation3]
    $region21: #{forward.5} parent=1 // pred_fallthru
      _
    // Predicated region
    $region22: #{forward.5} parent=1 // pred_check
      _
    $region23: #{forward.5} parent=1 // pred_check_branch
      %226 = sbr.rel (0) target = $region25
    $region24: #{forward.5} parent=1 // pred_region
      %228 = vsyncadd [#allocation5], 0
      %s229 = sshll.u32 [#allocation4], 4
      %s230 = int_to_ptr.vmem [resolvable:$true] %s229
      %s231 = sshll.u32 %s5, 4
      %s232 = int_to_ptr.hbm [resolvable:$true] %s231
      %237 = dma.vmem_to_hbm [thread:$0]  %s230, 256, %s232, [#allocation5], 128, 128, 8
    $region25: #{forward.5} parent=1 // pred_fallthru
      _
    // Predicated region
    $region26: #{forward.5} parent=1 // pred_check
      _
    $region27: #{forward.5} parent=1 // pred_check_branch
      %239 = sbr.rel (0) target = $region29
    $region28: #{forward.5} parent=1 // pred_region
      %241 = dma.done [#allocation3], 16
    $region29: #{forward.5} parent=1 // pred_fallthru
      _
    // Predicated region
    $region30: #{forward.5} parent=1 // pred_check
      _
    $region31: #{forward.5} parent=1 // pred_check_branch
      %243 = sbr.rel (0) target = $region33
    $region32: #{forward.5} parent=1 // pred_region
      %245 = dma.done [#allocation5], 256
    $region33: #{forward.5} parent=1 // pred_fallthru
      _
    %246 = vsyncpa [#allocation3], 1
    %247 = vsyncpa [#allocation5], 1

// kernel: forward.3
$region0: #{forward.3}
  #allocation0 [shape = 'u32[]', space=smem, size = 0x4, offset = 0x4, fixed_abs, tag = 'smem constant byte address 0x4 - core index']
  #allocation1 [shape = 'u32[72,128]{1,0:T(1,128)}', space=vmem, size = 0x9000, scoped, tag = 'internal scratch']
  %s0 = inlined_call_operand.vmem [shape: bf16[2,8,128], index: 0, kind: input, shape index: {}]
  %s1 = inlined_call_operand.vmem [shape: f32[2,1,8], index: 1, kind: input, shape index: {}]
  %s2 = inlined_call_operand.vmem [shape: f32[2,8,8], index: 2, kind: input, shape index: {}]
  %s3 = inlined_call_operand.vmem [shape: f32[1,128], index: 3, kind: input, shape index: {}]
  %s4 = inlined_call_operand.vmem [shape: bf16[2,128,16], index: 4, kind: input, shape index: {}]
  %s5 = inlined_call_operand.vmem [shape: bf16[2,128,16], index: 5, kind: input, shape index: {}]
  %s6 = inlined_call_operand.vmem [shape: bf16[2,128,16], index: 6, kind: input, shape index: {}]
  %s7 = inlined_call_operand.vmem [shape: bf16[2,16,128], index: 7, kind: input, shape index: {}]
  %s8 = inlined_call_operand.vmem [shape: f32[1,128], index: 8, kind: input, shape index: {}]
  %s9 = inlined_call_operand.vmem [shape: bf16[128,64], index: 9, kind: input, shape index: {}]
  %s10 = inlined_call_operand.vmem [shape: bf16[64,128], index: 10, kind: input, shape index: {}]
  %s11 = inlined_call_operand.vmem [shape: f32[1,128], index: 11, kind: input, shape index: {}]
  %s12 = inlined_call_operand.vmem [shape: bf16[2,8,128], index: 12, kind: output, shape index: {}]
  %s13 = sld [smem:[#allocation0]]
  $region81: #{forward.3} parent=0
    _
  %s15 = ssub.s32 1, %s13
  %s16 = scalar_select 0, %s15, %s13
  loop: start=0, step=1, limit=4
  $region2: #{forward.3} parent=0 // loop_pre_header
    _
  $region3: #{forward.3} parent=0 // loop_header
    %s18 = sphi 0, %s22
    %p19 = scmp.ge.s32.totalorder %s18, 4
    %s28 = sphi 0, %s30
    %s31 = sphi 0, %s28
    %s32 = sphi 0, %s31
    %s48 = sphi 0, %s32
    %s54 = sphi 0, %s56
    %s57 = sphi 0, %s54
    %s58 = sphi 0, %s57
    %s74 = sphi 0, %s58
    %s78 = sphi 0, %s78
    %s80 = sphi 0, %s78
    %s81 = sphi 0, %s80
    %s95 = sphi 0, %s81
    %s99 = sphi 0, %s99
    %s101 = sphi 0, %s99
    %s102 = sphi 0, %s101
    %s116 = sphi 0, %s102
    %s120 = sphi 0, %s120
    %s122 = sphi 0, %s120
    %s123 = sphi 0, %s122
    %s137 = sphi 0, %s123
    %s141 = sphi 0, %s141
    %s143 = sphi 0, %s141
    %s144 = sphi 0, %s143
    %s158 = sphi 0, %s144
    %s162 = sphi 0, %s162
    %s164 = sphi 0, %s162
    %s165 = sphi 0, %s164
    %s179 = sphi 0, %s165
    %s183 = sphi 0, %s183
    %s185 = sphi 0, %s183
    %s186 = sphi 0, %s185
    %s200 = sphi 0, %s186
    %s204 = sphi 0, %s204
    %s206 = sphi 0, %s204
    %s207 = sphi 0, %s206
    %s221 = sphi 0, %s207
    %s225 = sphi 0, %s225
    %s227 = sphi 0, %s225
    %s228 = sphi 0, %s227
    %s242 = sphi 0, %s228
    %s246 = sphi 0, %s246
    %s248 = sphi 0, %s246
    %s249 = sphi 0, %s248
    %s263 = sphi 0, %s249
    %s267 = sphi 0, %s267
    %s269 = sphi 0, %s267
    %s270 = sphi 0, %s269
    %s284 = sphi 0, %s270
    %s290 = sphi 0, %s292
    %s293 = sphi 0, %s290
    %s294 = sphi 0, %s293
    %s310 = sphi 0, %s294
  $region4: #{forward.3} parent=0 // loop_header_branch
    %21 = sbr.rel (%p19) target = $region8
  $region5: #{forward.3} parent=0 // loop_body
    %s23 = ssub.s32 %s18, 1
    %s24 = ssub.s32 %s18, 2
    %s25 = sadd.s32 %s18, 1
    %s26 = ssub.s32 %s18, %s25
    %p27 = scmp.eq.s32.totalorder %s26, 0
    %s29 = sadd.s32 %s28, 1
    %s30 = scalar_select %p27, %s28, %s29
    %p33 = pneg %p27
    %p34 = scmp.eq.s32.totalorder %s18, 1
    %p35 = por %p33, %p34
    %p36 = scmp.ne.s32.totalorder %s28, %s31
    %p37 = scmp.eq.s32.totalorder %s18, 0
    %p38 = por %p36, %p37
    %p39 = scmp.ne.s32.totalorder %s28, %s31
    %p40 = scmp.eq.s32.totalorder %s23, 1
    %p41 = por %p39, %p40
    %p42 = scmp.ne.s32.totalorder %s31, %s32
    %p43 = scmp.eq.s32.totalorder %s23, 0
    %p44 = por %p42, %p43
    %p45 = scmp.ne.s32.totalorder %s31, %s32
    %p46 = scmp.eq.s32.totalorder %s24, 1
    %p47 = por %p45, %p46
    %p49 = scmp.ne.s32.totalorder %s32, %s48
    %p50 = scmp.eq.s32.totalorder %s24, 0
    %p51 = por %p49, %p50
    %s52 = ssub.s32 %s18, %s25
    %p53 = scmp.eq.s32.totalorder %s52, 0
    %s55 = sadd.s32 %s54, 1
    %s56 = scalar_select %p53, %s54, %s55
    %p59 = pneg %p53
    %p60 = scmp.eq.s32.totalorder %s18, 1
    %p61 = por %p59, %p60
    %p62 = scmp.ne.s32.totalorder %s54, %s57
    %p63 = scmp.eq.s32.totalorder %s18, 0
    %p64 = por %p62, %p63
    %p65 = scmp.ne.s32.totalorder %s54, %s57
    %p66 = scmp.eq.s32.totalorder %s23, 1
    %p67 = por %p65, %p66
    %p68 = scmp.ne.s32.totalorder %s57, %s58
    %p69 = scmp.eq.s32.totalorder %s23, 0
    %p70 = por %p68, %p69
    %p71 = scmp.ne.s32.totalorder %s57, %s58
    %p72 = scmp.eq.s32.totalorder %s24, 1
    %p73 = por %p71, %p72
    %p75 = scmp.ne.s32.totalorder %s58, %s74
    %p76 = scmp.eq.s32.totalorder %s24, 0
    %p77 = por %p75, %p76
    %s79 = sadd.s32 %s78, 1
    %p82 = scmp.eq.s32.totalorder %s18, 1
    %p83 = scmp.ne.s32.totalorder %s78, %s80
    %p84 = scmp.eq.s32.totalorder %s18, 0
    %p85 = por %p83, %p84
    %p86 = scmp.ne.s32.totalorder %s78, %s80
    %p87 = scmp.eq.s32.totalorder %s23, 1
    %p88 = por %p86, %p87
    %p89 = scmp.ne.s32.totalorder %s80, %s81
    %p90 = scmp.eq.s32.totalorder %s23, 0
    %p91 = por %p89, %p90
    %p92 = scmp.ne.s32.totalorder %s80, %s81
    %p93 = scmp.eq.s32.totalorder %s24, 1
    %p94 = por %p92, %p93
    %p96 = scmp.ne.s32.totalorder %s81, %s95
    %p97 = scmp.eq.s32.totalorder %s24, 0
    %p98 = por %p96, %p97
    %s100 = sadd.s32 %s99, 1
    %p103 = scmp.eq.s32.totalorder %s18, 1
    %p104 = scmp.ne.s32.totalorder %s99, %s101
    %p105 = scmp.eq.s32.totalorder %s18, 0
    %p106 = por %p104, %p105
    %p107 = scmp.ne.s32.totalorder %s99, %s101
    %p108 = scmp.eq.s32.totalorder %s23, 1
    %p109 = por %p107, %p108
    %p110 = scmp.ne.s32.totalorder %s101, %s102
    %p111 = scmp.eq.s32.totalorder %s23, 0
    %p112 = por %p110, %p111
    %p113 = scmp.ne.s32.totalorder %s101, %s102
    %p114 = scmp.eq.s32.totalorder %s24, 1
    %p115 = por %p113, %p114
    %p117 = scmp.ne.s32.totalorder %s102, %s116
    %p118 = scmp.eq.s32.totalorder %s24, 0
    %p119 = por %p117, %p118
    %s121 = sadd.s32 %s120, 1
    %p124 = scmp.eq.s32.totalorder %s18, 1
    %p125 = scmp.ne.s32.totalorder %s120, %s122
    %p126 = scmp.eq.s32.totalorder %s18, 0
    %p127 = por %p125, %p126
    %p128 = scmp.ne.s32.totalorder %s120, %s122
    %p129 = scmp.eq.s32.totalorder %s23, 1
    %p130 = por %p128, %p129
    %p131 = scmp.ne.s32.totalorder %s122, %s123
    %p132 = scmp.eq.s32.totalorder %s23, 0
    %p133 = por %p131, %p132
    %p134 = scmp.ne.s32.totalorder %s122, %s123
    %p135 = scmp.eq.s32.totalorder %s24, 1
    %p136 = por %p134, %p135
    %p138 = scmp.ne.s32.totalorder %s123, %s137
    %p139 = scmp.eq.s32.totalorder %s24, 0
    %p140 = por %p138, %p139
    %s142 = sadd.s32 %s141, 1
    %p145 = scmp.eq.s32.totalorder %s18, 1
    %p146 = scmp.ne.s32.totalorder %s141, %s143
    %p147 = scmp.eq.s32.totalorder %s18, 0
    %p148 = por %p146, %p147
    %p149 = scmp.ne.s32.totalorder %s141, %s143
    %p150 = scmp.eq.s32.totalorder %s23, 1
    %p151 = por %p149, %p150
    %p152 = scmp.ne.s32.totalorder %s143, %s144
    %p153 = scmp.eq.s32.totalorder %s23, 0
    %p154 = por %p152, %p153
    %p155 = scmp.ne.s32.totalorder %s143, %s144
    %p156 = scmp.eq.s32.totalorder %s24, 1
    %p157 = por %p155, %p156
    %p159 = scmp.ne.s32.totalorder %s144, %s158
    %p160 = scmp.eq.s32.totalorder %s24, 0
    %p161 = por %p159, %p160
    %s163 = sadd.s32 %s162, 1
    %p166 = scmp.eq.s32.totalorder %s18, 1
    %p167 = scmp.ne.s32.totalorder %s162, %s164
    %p168 = scmp.eq.s32.totalorder %s18, 0
    %p169 = por %p167, %p168
    %p170 = scmp.ne.s32.totalorder %s162, %s164
    %p171 = scmp.eq.s32.totalorder %s23, 1
    %p172 = por %p170, %p171
    %p173 = scmp.ne.s32.totalorder %s164, %s165
    %p174 = scmp.eq.s32.totalorder %s23, 0
    %p175 = por %p173, %p174
    %p176 = scmp.ne.s32.totalorder %s164, %s165
    %p177 = scmp.eq.s32.totalorder %s24, 1
    %p178 = por %p176, %p177
    %p180 = scmp.ne.s32.totalorder %s165, %s179
    %p181 = scmp.eq.s32.totalorder %s24, 0
    %p182 = por %p180, %p181
    %s184 = sadd.s32 %s183, 1
    %p187 = scmp.eq.s32.totalorder %s18, 1
    %p188 = scmp.ne.s32.totalorder %s183, %s185
    %p189 = scmp.eq.s32.totalorder %s18, 0
    %p190 = por %p188, %p189
    %p191 = scmp.ne.s32.totalorder %s183, %s185
    %p192 = scmp.eq.s32.totalorder %s23, 1
    %p193 = por %p191, %p192
    %p194 = scmp.ne.s32.totalorder %s185, %s186
    %p195 = scmp.eq.s32.totalorder %s23, 0
    %p196 = por %p194, %p195
    %p197 = scmp.ne.s32.totalorder %s185, %s186
    %p198 = scmp.eq.s32.totalorder %s24, 1
    %p199 = por %p197, %p198
    %p201 = scmp.ne.s32.totalorder %s186, %s200
    %p202 = scmp.eq.s32.totalorder %s24, 0
    %p203 = por %p201, %p202
    %s205 = sadd.s32 %s204, 1
    %p208 = scmp.eq.s32.totalorder %s18, 1
    %p209 = scmp.ne.s32.totalorder %s204, %s206
    %p210 = scmp.eq.s32.totalorder %s18, 0
    %p211 = por %p209, %p210
    %p212 = scmp.ne.s32.totalorder %s204, %s206
    %p213 = scmp.eq.s32.totalorder %s23, 1
    %p214 = por %p212, %p213
    %p215 = scmp.ne.s32.totalorder %s206, %s207
    %p216 = scmp.eq.s32.totalorder %s23, 0
    %p217 = por %p215, %p216
    %p218 = scmp.ne.s32.totalorder %s206, %s207
    %p219 = scmp.eq.s32.totalorder %s24, 1
    %p220 = por %p218, %p219
    %p222 = scmp.ne.s32.totalorder %s207, %s221
    %p223 = scmp.eq.s32.totalorder %s24, 0
    %p224 = por %p222, %p223
    %s226 = sadd.s32 %s225, 1
    %p229 = scmp.eq.s32.totalorder %s18, 1
    %p230 = scmp.ne.s32.totalorder %s225, %s227
    %p231 = scmp.eq.s32.totalorder %s18, 0
    %p232 = por %p230, %p231
    %p233 = scmp.ne.s32.totalorder %s225, %s227
    %p234 = scmp.eq.s32.totalorder %s23, 1
    %p235 = por %p233, %p234
    %p236 = scmp.ne.s32.totalorder %s227, %s228
    %p237 = scmp.eq.s32.totalorder %s23, 0
    %p238 = por %p236, %p237
    %p239 = scmp.ne.s32.totalorder %s227, %s228
    %p240 = scmp.eq.s32.totalorder %s24, 1
    %p241 = por %p239, %p240
    %p243 = scmp.ne.s32.totalorder %s228, %s242
    %p244 = scmp.eq.s32.totalorder %s24, 0
    %p245 = por %p243, %p244
    %s247 = sadd.s32 %s246, 1
    %p250 = scmp.eq.s32.totalorder %s18, 1
    %p251 = scmp.ne.s32.totalorder %s246, %s248
    %p252 = scmp.eq.s32.totalorder %s18, 0
    %p253 = por %p251, %p252
    %p254 = scmp.ne.s32.totalorder %s246, %s248
    %p255 = scmp.eq.s32.totalorder %s23, 1
    %p256 = por %p254, %p255
    %p257 = scmp.ne.s32.totalorder %s248, %s249
    %p258 = scmp.eq.s32.totalorder %s23, 0
    %p259 = por %p257, %p258
    %p260 = scmp.ne.s32.totalorder %s248, %s249
    %p261 = scmp.eq.s32.totalorder %s24, 1
    %p262 = por %p260, %p261
    %p264 = scmp.ne.s32.totalorder %s249, %s263
    %p265 = scmp.eq.s32.totalorder %s24, 0
    %p266 = por %p264, %p265
    %s268 = sadd.s32 %s267, 1
    %p271 = scmp.eq.s32.totalorder %s18, 1
    %p272 = scmp.ne.s32.totalorder %s267, %s269
    %p273 = scmp.eq.s32.totalorder %s18, 0
    %p274 = por %p272, %p273
    %p275 = scmp.ne.s32.totalorder %s267, %s269
    %p276 = scmp.eq.s32.totalorder %s23, 1
    %p277 = por %p275, %p276
    %p278 = scmp.ne.s32.totalorder %s269, %s270
    %p279 = scmp.eq.s32.totalorder %s23, 0
    %p280 = por %p278, %p279
    %p281 = scmp.ne.s32.totalorder %s269, %s270
    %p282 = scmp.eq.s32.totalorder %s24, 1
    %p283 = por %p281, %p282
    %p285 = scmp.ne.s32.totalorder %s270, %s284
    %p286 = scmp.eq.s32.totalorder %s24, 0
    %p287 = por %p285, %p286
    %s288 = ssub.s32 %s18, %s25
    %p289 = scmp.eq.s32.totalorder %s288, 0
    %s291 = sadd.s32 %s290, 1
    %s292 = scalar_select %p289, %s290, %s291
    %p295 = pneg %p289
    %p296 = scmp.eq.s32.totalorder %s18, 1
    %p297 = por %p295, %p296
    %p298 = scmp.ne.s32.totalorder %s290, %s293
    %p299 = scmp.eq.s32.totalorder %s18, 0
    %p300 = por %p298, %p299
    %p301 = scmp.ne.s32.totalorder %s290, %s293
    %p302 = scmp.eq.s32.totalorder %s23, 1
    %p303 = por %p301, %p302
    %p304 = scmp.ne.s32.totalorder %s293, %s294
    %p305 = scmp.eq.s32.totalorder %s23, 0
    %p306 = por %p304, %p305
    %p307 = scmp.ne.s32.totalorder %s293, %s294
    %p308 = scmp.eq.s32.totalorder %s24, 1
    %p309 = por %p307, %p308
    %p311 = scmp.ne.s32.totalorder %s294, %s310
    %p312 = scmp.eq.s32.totalorder %s24, 0
    %p313 = por %p311, %p312
    %p314 = scmp.le.s32.totalorder 1, %s18
    %p315 = scmp.lt.s32.totalorder %s18, 3
    %p316 = pnand %p314, %p315
    %p317 = pneg %p316
    // Predicated region
    $region9: #{forward.3} parent=5 // pred_check
      _
    $region10: #{forward.3} parent=5 // pred_check_branch
      %319 = sbr.rel (%p316) target = $region12
    $region11: #{forward.3} parent=5 // pred_region
      %s320 = ssub.s32 %s18, 1
      // Predicated region
      $region13: #{forward.3} parent=11 // pred_check
        %p321 = pneg %p91
      $region14: #{forward.3} parent=11 // pred_check_branch
        %323 = sbr.rel (%p321) target = $region16
      $region15: #{forward.3} parent=11 // pred_region
        _
      $region16: #{forward.3} parent=11 // pred_fallthru
        _
      // Predicated region
      $region17: #{forward.3} parent=11 // pred_check
        %p324 = pneg %p112
      $region18: #{forward.3} parent=11 // pred_check_branch
        %326 = sbr.rel (%p324) target = $region20
      $region19: #{forward.3} parent=11 // pred_region
        _
      $region20: #{forward.3} parent=11 // pred_fallthru
        _
      // Predicated region
      $region21: #{forward.3} parent=11 // pred_check
        %p327 = pneg %p133
      $region22: #{forward.3} parent=11 // pred_check_branch
        %329 = sbr.rel (%p327) target = $region24
      $region23: #{forward.3} parent=11 // pred_region
        _
      $region24: #{forward.3} parent=11 // pred_fallthru
        _
      // Predicated region
      $region25: #{forward.3} parent=11 // pred_check
        %p330 = pneg %p154
      $region26: #{forward.3} parent=11 // pred_check_branch
        %332 = sbr.rel (%p330) target = $region28
      $region27: #{forward.3} parent=11 // pred_region
        _
      $region28: #{forward.3} parent=11 // pred_fallthru
        _
      // Predicated region
      $region29: #{forward.3} parent=11 // pred_check
        %p333 = pneg %p175
      $region30: #{forward.3} parent=11 // pred_check_branch
        %335 = sbr.rel (%p333) target = $region32
      $region31: #{forward.3} parent=11 // pred_region
        _
      $region32: #{forward.3} parent=11 // pred_fallthru
        _
      // Predicated region
      $region33: #{forward.3} parent=11 // pred_check
        %p336 = pneg %p196
      $region34: #{forward.3} parent=11 // pred_check_branch
        %338 = sbr.rel (%p336) target = $region36
      $region35: #{forward.3} parent=11 // pred_region
        _
      $region36: #{forward.3} parent=11 // pred_fallthru
        _
      // Predicated region
      $region37: #{forward.3} parent=11 // pred_check
        %p339 = pneg %p217
      $region38: #{forward.3} parent=11 // pred_check_branch
        %341 = sbr.rel (%p339) target = $region40
      $region39: #{forward.3} parent=11 // pred_region
        _
      $region40: #{forward.3} parent=11 // pred_fallthru
        _
      // Predicated region
      $region41: #{forward.3} parent=11 // pred_check
        %p342 = pneg %p238
      $region42: #{forward.3} parent=11 // pred_check_branch
        %344 = sbr.rel (%p342) target = $region44
      $region43: #{forward.3} parent=11 // pred_region
        _
      $region44: #{forward.3} parent=11 // pred_fallthru
        _
      // Predicated region
      $region45: #{forward.3} parent=11 // pred_check
        %p345 = pneg %p259
      $region46: #{forward.3} parent=11 // pred_check_branch
        %347 = sbr.rel (%p345) target = $region48
      $region47: #{forward.3} parent=11 // pred_region
        _
      $region48: #{forward.3} parent=11 // pred_fallthru
        _
      // Predicated region
      $region49: #{forward.3} parent=11 // pred_check
        %p348 = pneg %p280
      $region50: #{forward.3} parent=11 // pred_check_branch
        %350 = sbr.rel (%p348) target = $region52
      $region51: #{forward.3} parent=11 // pred_region
        _
      $region52: #{forward.3} parent=11 // pred_fallthru
        _
    $region12: #{forward.3} parent=5 // pred_fallthru
      _
    %p351 = scmp.lt.s32.totalorder %s18, 2
    // Predicated region
    $region53: #{forward.3} parent=5 // pred_check
      %p352 = pneg %p351
    $region54: #{forward.3} parent=5 // pred_check_branch
      %354 = sbr.rel (%p352) target = $region56
    $region55: #{forward.3} parent=5 // pred_region
      // Predicated region
      $region57: #{forward.3} parent=55 // pred_check
        %p355 = pneg %p38
      $region58: #{forward.3} parent=55 // pred_check_branch
        %357 = sbr.rel (%p355) target = $region60
      $region59: #{forward.3} parent=55 // pred_region
        %p358 = scmp.lt.s32.totalorder %s18, 1
        %s359 = scalar_select %p358, %s18, 1
        %s360 = smul.addr %s359, 4
        %s361 = scalar_lea.vmem %s0, %s360
      $region60: #{forward.3} parent=55 // pred_fallthru
        _
      // Predicated region
      $region61: #{forward.3} parent=55 // pred_check
        %p362 = pneg %p64
      $region62: #{forward.3} parent=55 // pred_check_branch
        %364 = sbr.rel (%p362) target = $region64
      $region63: #{forward.3} parent=55 // pred_region
        %p365 = scmp.lt.s32.totalorder %s18, 1
        %s366 = scalar_select %p365, %s18, 1
        %s367 = scalar_lea.vmem %s1, %s366
      $region64: #{forward.3} parent=55 // pred_fallthru
        _
    $region56: #{forward.3} parent=5 // pred_fallthru
      _
    %p368 = scmp.le.s32.totalorder 1, %s18
    %p369 = scmp.lt.s32.totalorder %s18, 3
    %p370 = pnand %p368, %p369
    %p371 = pneg %p370
    // Predicated region
    $region65: #{forward.3} parent=5 // pred_check
      _
    $region66: #{forward.3} parent=5 // pred_check_branch
      %373 = sbr.rel (%p370) target = $region68
    $region67: #{forward.3} parent=5 // pred_region
      %s374 = ssub.s32 %s18, 1
      %p375 = scmp.lt.s32.totalorder %s23, 1
      %s376 = scalar_select %p375, %s23, 1
      %s377 = smul.addr %s376, 4
      %s378 = scalar_lea.vmem %s0, %s377
      %p379 = pneg %p44
      %p380 = pneg %p41
      %p381 = scmp.lt.s32.totalorder %s23, 1
      %s382 = scalar_select %p381, %s23, 1
      %s383 = scalar_lea.vmem %s1, %s382
      %p384 = pneg %p70
      %p385 = pneg %p67
      %p386 = pneg %p91
      %p387 = pneg %p88
      %p388 = pneg %p112
      %p389 = pneg %p109
      %p390 = pneg %p133
      %p391 = pneg %p130
      %p392 = pneg %p154
      %p393 = pneg %p151
      %p394 = pneg %p175
      %p395 = pneg %p172
      %p396 = pneg %p196
      %p397 = pneg %p193
      %p398 = pneg %p217
      %p399 = pneg %p214
      %p400 = pneg %p238
      %p401 = pneg %p235
      %p402 = pneg %p259
      %p403 = pneg %p256
      %p404 = pneg %p280
      %p405 = pneg %p277
      %p406 = pneg %p306
      %p407 = pneg %p303
      %p408 = scmp.lt.s32.totalorder %s23, 1
      %s409 = scalar_select %p408, %s23, 1
      %s410 = smul.addr %s409, 4
      %s411 = scalar_lea.vmem %s12, %s410
      %p412 = scmp.lt.s32.totalorder %s23, 1
      %s413 = scalar_select %p412, %s23, 1
      %s414 = smul.addr %s413, 4
      %s415 = scalar_lea.vmem %s0, %s414
      %p416 = scmp.lt.s32.totalorder %s23, 1
      %s417 = scalar_select %p416, %s23, 1
      %s418 = scalar_lea.vmem %s1, %s417
      %p419 = scmp.lt.s32.totalorder %s23, 1
      %s420 = scalar_select %p419, %s23, 1
      %s421 = smul.addr %s420, 4
      %s422 = scalar_lea.vmem %s12, %s421
      %v424 = vld [vmem:[%s415] sm:$0xf]
      %v425 = vunpack.c.l.bf16 %v424
      %v426 = vld [vmem:[%s2] sm:$0xff]
      %v427 = vld [vmem:[%s2 + $0x8] sm:$0xff]
      %v428 = vld [vmem:[%s418] sm:$0x1]
      %v430 = vperm.slane %v428, 0
      %v432 = vadd.f32 %v426, %v430
      %v433 = vadd.f32 %v427, %v430
      %v434 = vld [vmem:[%s3] sm:$0x1]
      %v435 = vmul.f32 %v425, %v425
      %436 = vadd.xlane.f32.xlu0 %v435
      %v437 = vpop.xlane.xlu0 %436
      %v438 = vmul.f32 %v437, 0.03125
      %v439 = vadd.f32 %v438, 1e-06
      %v440 = vrsqrt.pop %v439
      %v441 = vmul.f32 %v440, %v439
      %v442 = vmul.f32 %v441, %v440
      %v443 = vmul.f32 0.5, %v442
      %v444 = vsub.f32 1.5, %v443
      %v445 = vmul.f32 %v440, %v444
      %vm446 = vweird.f32 %v439
      %vm447 = vweird.f32 %v440
      %vm448 = vmor %vm446, %vm447
      %v449 = vsel %vm448, %v440, %v445
      %v450 = vmul.f32 %v425, %v449
      %v452 = vperm.slane %v434, 0
      %v454 = vmul.f32 %v450, %v452
      %v455 = vld [vmem:[%s4] sm:$0xf]
      %v456 = vld [vmem:[%s4 + $0x4] sm:$0xf]
      %v457 = vld [vmem:[%s4 + $0x8] sm:$0xf]
      %v458 = vld [vmem:[%s4 + $0xc] sm:$0xf]
      %v459 = vld [vmem:[%s4 + $0x10] sm:$0xf]
      %v460 = vld [vmem:[%s4 + $0x14] sm:$0xf]
      %v461 = vld [vmem:[%s4 + $0x18] sm:$0xf]
      %v462 = vld [vmem:[%s4 + $0x1c] sm:$0xf]
      %v463 = vld [vmem:[%s4 + $0x20] sm:$0xf]
      %v464 = vld [vmem:[%s4 + $0x24] sm:$0xf]
      %v465 = vld [vmem:[%s4 + $0x28] sm:$0xf]
      %v466 = vld [vmem:[%s4 + $0x2c] sm:$0xf]
      %v467 = vld [vmem:[%s4 + $0x30] sm:$0xf]
      %v468 = vld [vmem:[%s4 + $0x34] sm:$0xf]
      %v469 = vld [vmem:[%s4 + $0x38] sm:$0xf]
      %v470 = vld [vmem:[%s4 + $0x3c] sm:$0xf]
      %v471 = vld [vmem:[%s4 + $0x40] sm:$0xf]
      %v472 = vld [vmem:[%s4 + $0x44] sm:$0xf]
      %v473 = vld [vmem:[%s4 + $0x48] sm:$0xf]
      %v474 = vld [vmem:[%s4 + $0x4c] sm:$0xf]
      %v475 = vld [vmem:[%s4 + $0x50] sm:$0xf]
      %v476 = vld [vmem:[%s4 + $0x54] sm:$0xf]
      %v477 = vld [vmem:[%s4 + $0x58] sm:$0xf]
      %v478 = vld [vmem:[%s4 + $0x5c] sm:$0xf]
      %v479 = vld [vmem:[%s4 + $0x60] sm:$0xf]
      %v480 = vld [vmem:[%s4 + $0x64] sm:$0xf]
      %v481 = vld [vmem:[%s4 + $0x68] sm:$0xf]
      %v482 = vld [vmem:[%s4 + $0x6c] sm:$0xf]
      %v483 = vld [vmem:[%s4 + $0x70] sm:$0xf]
      %v484 = vld [vmem:[%s4 + $0x74] sm:$0xf]
      %v485 = vld [vmem:[%s4 + $0x78] sm:$0xf]
      %v486 = vld [vmem:[%s4 + $0x7c] sm:$0xf]
      %v487 = vld [vmem:[%s5] sm:$0xf]
      %v488 = vld [vmem:[%s5 + $0x4] sm:$0xf]
      %v489 = vld [vmem:[%s5 + $0x8] sm:$0xf]
      %v490 = vld [vmem:[%s5 + $0xc] sm:$0xf]
      %v491 = vld [vmem:[%s5 + $0x10] sm:$0xf]
      %v492 = vld [vmem:[%s5 + $0x14] sm:$0xf]
      %v493 = vld [vmem:[%s5 + $0x18] sm:$0xf]
      %v494 = vld [vmem:[%s5 + $0x1c] sm:$0xf]
      %v495 = vld [vmem:[%s5 + $0x20] sm:$0xf]
      %v496 = vld [vmem:[%s5 + $0x24] sm:$0xf]
      %v497 = vld [vmem:[%s5 + $0x28] sm:$0xf]
      %v498 = vld [vmem:[%s5 + $0x2c] sm:$0xf]
      %v499 = vld [vmem:[%s5 + $0x30] sm:$0xf]
      %v500 = vld [vmem:[%s5 + $0x34] sm:$0xf]
      %v501 = vld [vmem:[%s5 + $0x38] sm:$0xf]
      %v502 = vld [vmem:[%s5 + $0x3c] sm:$0xf]
      %v503 = vld [vmem:[%s5 + $0x40] sm:$0xf]
      %v504 = vld [vmem:[%s5 + $0x44] sm:$0xf]
      %v505 = vld [vmem:[%s5 + $0x48] sm:$0xf]
      %v506 = vld [vmem:[%s5 + $0x4c] sm:$0xf]
      %v507 = vld [vmem:[%s5 + $0x50] sm:$0xf]
      %v508 = vld [vmem:[%s5 + $0x54] sm:$0xf]
      %v509 = vld [vmem:[%s5 + $0x58] sm:$0xf]
      %v510 = vld [vmem:[%s5 + $0x5c] sm:$0xf]
      %v511 = vld [vmem:[%s5 + $0x60] sm:$0xf]
      %v512 = vld [vmem:[%s5 + $0x64] sm:$0xf]
      %v513 = vld [vmem:[%s5 + $0x68] sm:$0xf]
      %v514 = vld [vmem:[%s5 + $0x6c] sm:$0xf]
      %v515 = vld [vmem:[%s5 + $0x70] sm:$0xf]
      %v516 = vld [vmem:[%s5 + $0x74] sm:$0xf]
      %v517 = vld [vmem:[%s5 + $0x78] sm:$0xf]
      %v518 = vld [vmem:[%s5 + $0x7c] sm:$0xf]
      %v519 = vld [vmem:[%s6] sm:$0xf]
      %v520 = vld [vmem:[%s6 + $0x4] sm:$0xf]
      %v521 = vld [vmem:[%s6 + $0x8] sm:$0xf]
      %v522 = vld [vmem:[%s6 + $0xc] sm:$0xf]
      %v523 = vld [vmem:[%s6 + $0x10] sm:$0xf]
      %v524 = vld [vmem:[%s6 + $0x14] sm:$0xf]
      %v525 = vld [vmem:[%s6 + $0x18] sm:$0xf]
      %v526 = vld [vmem:[%s6 + $0x1c] sm:$0xf]
      %v527 = vld [vmem:[%s6 + $0x20] sm:$0xf]
      %v528 = vld [vmem:[%s6 + $0x24] sm:$0xf]
      %v529 = vld [vmem:[%s6 + $0x28] sm:$0xf]
      %v530 = vld [vmem:[%s6 + $0x2c] sm:$0xf]
      %v531 = vld [vmem:[%s6 + $0x30] sm:$0xf]
      %v532 = vld [vmem:[%s6 + $0x34] sm:$0xf]
      %v533 = vld [vmem:[%s6 + $0x38] sm:$0xf]
      %v534 = vld [vmem:[%s6 + $0x3c] sm:$0xf]
      %v535 = vld [vmem:[%s6 + $0x40] sm:$0xf]
      %v536 = vld [vmem:[%s6 + $0x44] sm:$0xf]
      %v537 = vld [vmem:[%s6 + $0x48] sm:$0xf]
      %v538 = vld [vmem:[%s6 + $0x4c] sm:$0xf]
      %v539 = vld [vmem:[%s6 + $0x50] sm:$0xf]
      %v540 = vld [vmem:[%s6 + $0x54] sm:$0xf]
      %v541 = vld [vmem:[%s6 + $0x58] sm:$0xf]
      %v542 = vld [vmem:[%s6 + $0x5c] sm:$0xf]
      %v543 = vld [vmem:[%s6 + $0x60] sm:$0xf]
      %v544 = vld [vmem:[%s6 + $0x64] sm:$0xf]
      %v545 = vld [vmem:[%s6 + $0x68] sm:$0xf]
      %v546 = vld [vmem:[%s6 + $0x6c] sm:$0xf]
      %v547 = vld [vmem:[%s6 + $0x70] sm:$0xf]
      %v548 = vld [vmem:[%s6 + $0x74] sm:$0xf]
      %v549 = vld [vmem:[%s6 + $0x78] sm:$0xf]
      %v550 = vld [vmem:[%s6 + $0x7c] sm:$0xf]
      %v551 = vld [vmem:[%s7] sm:$0xf]
      %v552 = vld [vmem:[%s7 + $0x4] sm:$0xf]
      %v553 = vld [vmem:[%s7 + $0x8] sm:$0xf]
      %v554 = vld [vmem:[%s7 + $0xc] sm:$0xf]
      %v555 = vpack.c.bf16 %v454, %v454
      %v572 = vunpack.c.l.b16 %v455
      %v573 = vunpack.c.l.b16 %v456
      %v574 = vunpack.c.l.b16 %v457
      %v575 = vunpack.c.l.b16 %v458
      %v576 = vunpack.c.l.b16 %v459
      %v577 = vunpack.c.l.b16 %v460
      %v578 = vunpack.c.l.b16 %v461
      %v579 = vunpack.c.l.b16 %v462
      %v580 = vunpack.c.l.b16 %v463
      %v581 = vunpack.c.l.b16 %v464
      %v582 = vunpack.c.l.b16 %v465
      %v583 = vunpack.c.l.b16 %v466
      %v584 = vunpack.c.l.b16 %v467
      %v585 = vunpack.c.l.b16 %v468
      %v586 = vunpack.c.l.b16 %v469
      %v587 = vunpack.c.l.b16 %v470
      %v588 = vpack.c.b16 %v573, %v572
      %v589 = vpack.c.b16 %v575, %v574
      %v590 = vpack.c.b16 %v577, %v576
      %v591 = vpack.c.b16 %v579, %v578
      %v592 = vpack.c.b16 %v581, %v580
      %v593 = vpack.c.b16 %v583, %v582
      %v594 = vpack.c.b16 %v585, %v584
      %v595 = vpack.c.b16 %v587, %v586
      %604 = vmatpush.bf16.msra.mxu0 %v595
      %605 = vmatpush.bf16.msra.mxu0 %v594
      %606 = vmatpush.bf16.msra.mxu0 %v593
      %607 = vmatpush.bf16.msra.mxu0 %v592
      %608 = vmatpush.bf16.msra.mxu0 %v591
      %609 = vmatpush.bf16.msra.mxu0 %v590
      %610 = vmatpush.bf16.msra.mxu0 %v589
      %611 = vmatpush.bf16.msra.mxu0 %v588
      %612 = vmatmul.bf16.gmra.mxu0 %v555
      %v613 = vpop.f32.mrf.mxu0
      %v614 = vadd.f32 0.0, %v613
      %v615 = vpop.f32.mrf.mxu0
      %616 = vdwg.mxu0
      %v633 = vunpack.c.l.b16 %v471
      %v634 = vunpack.c.l.b16 %v472
      %v635 = vunpack.c.l.b16 %v473
      %v636 = vunpack.c.l.b16 %v474
      %v637 = vunpack.c.l.b16 %v475
      %v638 = vunpack.c.l.b16 %v476
      %v639 = vunpack.c.l.b16 %v477
      %v640 = vunpack.c.l.b16 %v478
      %v641 = vunpack.c.l.b16 %v479
      %v642 = vunpack.c.l.b16 %v480
      %v643 = vunpack.c.l.b16 %v481
      %v644 = vunpack.c.l.b16 %v482
      %v645 = vunpack.c.l.b16 %v483
      %v646 = vunpack.c.l.b16 %v484
      %v647 = vunpack.c.l.b16 %v485
      %v648 = vunpack.c.l.b16 %v486
      %v649 = vpack.c.b16 %v634, %v633
      %v650 = vpack.c.b16 %v636, %v635
      %v651 = vpack.c.b16 %v638, %v637
      %v652 = vpack.c.b16 %v640, %v639
      %v653 = vpack.c.b16 %v642, %v641
      %v654 = vpack.c.b16 %v644, %v643
      %v655 = vpack.c.b16 %v646, %v645
      %v656 = vpack.c.b16 %v648, %v647
      %665 = vmatpush.bf16.msra.mxu0 %v656
      %666 = vmatpush.bf16.msra.mxu0 %v655
      %667 = vmatpush.bf16.msra.mxu0 %v654
      %668 = vmatpush.bf16.msra.mxu0 %v653
      %669 = vmatpush.bf16.msra.mxu0 %v652
      %670 = vmatpush.bf16.msra.mxu0 %v651
      %671 = vmatpush.bf16.msra.mxu0 %v650
      %672 = vmatpush.bf16.msra.mxu0 %v649
      %673 = vmatmul.bf16.gmra.mxu0 %v555
      %v674 = vpop.f32.mrf.mxu0
      %v675 = vadd.f32 0.0, %v674
      %v676 = vpop.f32.mrf.mxu0
      %677 = vdwg.mxu0
      %v694 = vunpack.c.l.b16 %v487
      %v695 = vunpack.c.l.b16 %v488
      %v696 = vunpack.c.l.b16 %v489
      %v697 = vunpack.c.l.b16 %v490
      %v698 = vunpack.c.l.b16 %v491
      %v699 = vunpack.c.l.b16 %v492
      %v700 = vunpack.c.l.b16 %v493
      %v701 = vunpack.c.l.b16 %v494
      %v702 = vunpack.c.l.b16 %v495
      %v703 = vunpack.c.l.b16 %v496
      %v704 = vunpack.c.l.b16 %v497
      %v705 = vunpack.c.l.b16 %v498
      %v706 = vunpack.c.l.b16 %v499
      %v707 = vunpack.c.l.b16 %v500
      %v708 = vunpack.c.l.b16 %v501
      %v709 = vunpack.c.l.b16 %v502
      %v710 = vpack.c.b16 %v695, %v694
      %v711 = vpack.c.b16 %v697, %v696
      %v712 = vpack.c.b16 %v699, %v698
      %v713 = vpack.c.b16 %v701, %v700
      %v714 = vpack.c.b16 %v703, %v702
      %v715 = vpack.c.b16 %v705, %v704
      %v716 = vpack.c.b16 %v707, %v706
      %v717 = vpack.c.b16 %v709, %v708
      %726 = vmatpush.bf16.msra.mxu0 %v717
      %727 = vmatpush.bf16.msra.mxu0 %v716
      %728 = vmatpush.bf16.msra.mxu0 %v715
      %729 = vmatpush.bf16.msra.mxu0 %v714
      %730 = vmatpush.bf16.msra.mxu0 %v713
      %731 = vmatpush.bf16.msra.mxu0 %v712
      %732 = vmatpush.bf16.msra.mxu0 %v711
      %733 = vmatpush.bf16.msra.mxu0 %v710
      %734 = vmatmul.bf16.gmra.mxu0 %v555
      %v735 = vpop.f32.mrf.mxu0
      %v736 = vadd.f32 0.0, %v735
      %v737 = vpop.f32.mrf.mxu0
      %738 = vdwg.mxu0
      %v755 = vunpack.c.l.b16 %v503
      %v756 = vunpack.c.l.b16 %v504
      %v757 = vunpack.c.l.b16 %v505
      %v758 = vunpack.c.l.b16 %v506
      %v759 = vunpack.c.l.b16 %v507
      %v760 = vunpack.c.l.b16 %v508
      %v761 = vunpack.c.l.b16 %v509
      %v762 = vunpack.c.l.b16 %v510
      %v763 = vunpack.c.l.b16 %v511
      %v764 = vunpack.c.l.b16 %v512
      %v765 = vunpack.c.l.b16 %v513
      %v766 = vunpack.c.l.b16 %v514
      %v767 = vunpack.c.l.b16 %v515
      %v768 = vunpack.c.l.b16 %v516
      %v769 = vunpack.c.l.b16 %v517
      %v770 = vunpack.c.l.b16 %v518
      %v771 = vpack.c.b16 %v756, %v755
      %v772 = vpack.c.b16 %v758, %v757
      %v773 = vpack.c.b16 %v760, %v759
      %v774 = vpack.c.b16 %v762, %v761
      %v775 = vpack.c.b16 %v764, %v763
      %v776 = vpack.c.b16 %v766, %v765
      %v777 = vpack.c.b16 %v768, %v767
      %v778 = vpack.c.b16 %v770, %v769
      %787 = vmatpush.bf16.msra.mxu0 %v778
      %788 = vmatpush.bf16.msra.mxu0 %v777
      %789 = vmatpush.bf16.msra.mxu0 %v776
      %790 = vmatpush.bf16.msra.mxu0 %v775
      %791 = vmatpush.bf16.msra.mxu0 %v774
      %792 = vmatpush.bf16.msra.mxu0 %v773
      %793 = vmatpush.bf16.msra.mxu0 %v772
      %794 = vmatpush.bf16.msra.mxu0 %v771
      %795 = vmatmul.bf16.gmra.mxu0 %v555
      %v796 = vpop.f32.mrf.mxu0
      %v797 = vadd.f32 0.0, %v796
      %v798 = vpop.f32.mrf.mxu0
      %799 = vdwg.mxu0
      %v816 = vunpack.c.l.b16 %v519
      %v817 = vunpack.c.l.b16 %v520
      %v818 = vunpack.c.l.b16 %v521
      %v819 = vunpack.c.l.b16 %v522
      %v820 = vunpack.c.l.b16 %v523
      %v821 = vunpack.c.l.b16 %v524
      %v822 = vunpack.c.l.b16 %v525
      %v823 = vunpack.c.l.b16 %v526
      %v824 = vunpack.c.l.b16 %v527
      %v825 = vunpack.c.l.b16 %v528
      %v826 = vunpack.c.l.b16 %v529
      %v827 = vunpack.c.l.b16 %v530
      %v828 = vunpack.c.l.b16 %v531
      %v829 = vunpack.c.l.b16 %v532
      %v830 = vunpack.c.l.b16 %v533
      %v831 = vunpack.c.l.b16 %v534
      %v832 = vpack.c.b16 %v817, %v816
      %v833 = vpack.c.b16 %v819, %v818
      %v834 = vpack.c.b16 %v821, %v820
      %v835 = vpack.c.b16 %v823, %v822
      %v836 = vpack.c.b16 %v825, %v824
      %v837 = vpack.c.b16 %v827, %v826
      %v838 = vpack.c.b16 %v829, %v828
      %v839 = vpack.c.b16 %v831, %v830
      %848 = vmatpush.bf16.msra.mxu0 %v839
      %849 = vmatpush.bf16.msra.mxu0 %v838
      %850 = vmatpush.bf16.msra.mxu0 %v837
      %851 = vmatpush.bf16.msra.mxu0 %v836
      %852 = vmatpush.bf16.msra.mxu0 %v835
      %853 = vmatpush.bf16.msra.mxu0 %v834
      %854 = vmatpush.bf16.msra.mxu0 %v833
      %855 = vmatpush.bf16.msra.mxu0 %v832
      %856 = vmatmul.bf16.gmra.mxu0 %v555
      %v857 = vpop.f32.mrf.mxu0
      %v858 = vadd.f32 0.0, %v857
      %v859 = vpop.f32.mrf.mxu0
      %860 = vdwg.mxu0
      %v877 = vunpack.c.l.b16 %v535
      %v878 = vunpack.c.l.b16 %v536
      %v879 = vunpack.c.l.b16 %v537
      %v880 = vunpack.c.l.b16 %v538
      %v881 = vunpack.c.l.b16 %v539
      %v882 = vunpack.c.l.b16 %v540
      %v883 = vunpack.c.l.b16 %v541
      %v884 = vunpack.c.l.b16 %v542
      %v885 = vunpack.c.l.b16 %v543
      %v886 = vunpack.c.l.b16 %v544
      %v887 = vunpack.c.l.b16 %v545
      %v888 = vunpack.c.l.b16 %v546
      %v889 = vunpack.c.l.b16 %v547
      %v890 = vunpack.c.l.b16 %v548
      %v891 = vunpack.c.l.b16 %v549
      %v892 = vunpack.c.l.b16 %v550
      %v893 = vpack.c.b16 %v878, %v877
      %v894 = vpack.c.b16 %v880, %v879
      %v895 = vpack.c.b16 %v882, %v881
      %v896 = vpack.c.b16 %v884, %v883
      %v897 = vpack.c.b16 %v886, %v885
      %v898 = vpack.c.b16 %v888, %v887
      %v899 = vpack.c.b16 %v890, %v889
      %v900 = vpack.c.b16 %v892, %v891
      %909 = vmatpush.bf16.msra.mxu0 %v900
      %910 = vmatpush.bf16.msra.mxu0 %v899
      %911 = vmatpush.bf16.msra.mxu0 %v898
      %912 = vmatpush.bf16.msra.mxu0 %v897
      %913 = vmatpush.bf16.msra.mxu0 %v896
      %914 = vmatpush.bf16.msra.mxu0 %v895
      %915 = vmatpush.bf16.msra.mxu0 %v894
      %916 = vmatpush.bf16.msra.mxu0 %v893
      %917 = vmatmul.bf16.gmra.mxu0 %v555
      %v918 = vpop.f32.mrf.mxu0
      %v919 = vadd.f32 0.0, %v918
      %v920 = vpop.f32.mrf.mxu0
      %921 = vdwg.mxu0
      %v922 = vpack.c.bf16 %v614, %v614
      %v923 = vpack.c.bf16 %v675, %v675
      %v924 = vpack.c.bf16 %v736, %v736
      %v925 = vpack.c.bf16 %v797, %v797
      %vm926 = vcmask 130048
      %v928 = vsel %vm926, %v922, 0
      %v931 = vsel %vm926, %v924, 0
      %933 = vmatpush.bf16.xpose.msra.mxu0 0
      %934 = vmatpush.bf16.xpose.msra.mxu0 0
      %935 = vmatpush.bf16.xpose.msra.mxu0 0
      %936 = vmatpush.bf16.xpose.msra.mxu0 0
      %937 = vmatpush.bf16.xpose.msra.mxu0 0
      %938 = vmatpush.bf16.xpose.msra.mxu0 0
      %939 = vmatpush.bf16.xpose.msra.mxu0 0
      %940 = vmatpush.bf16.xpose.msra.mxu0 %v931
      %941 = vmatmul.bf16.gmra.mxu0 %v928
      %v942 = vpop.f32.mrf.mxu0
      %v943 = vadd.f32 %v432, %v942
      %v944 = vpop.f32.mrf.mxu0
      %945 = vdwg.mxu0
      %v947 = vsel %vm926, %v923, 0
      %v950 = vsel %vm926, %v925, 0
      %952 = vmatpush.bf16.xpose.msra.mxu0 0
      %953 = vmatpush.bf16.xpose.msra.mxu0 0
      %954 = vmatpush.bf16.xpose.msra.mxu0 0
      %955 = vmatpush.bf16.xpose.msra.mxu0 0
      %956 = vmatpush.bf16.xpose.msra.mxu0 0
      %957 = vmatpush.bf16.xpose.msra.mxu0 0
      %958 = vmatpush.bf16.xpose.msra.mxu0 0
      %959 = vmatpush.bf16.xpose.msra.mxu0 %v950
      %960 = vmatmul.bf16.gmra.mxu0 %v947
      %v961 = vpop.f32.mrf.mxu0
      %v962 = vadd.f32 %v433, %v961
      %v963 = vpop.f32.mrf.mxu0
      %964 = vdwg.mxu0
      %vm965 = vcmask 64512
      %v966 = vsel %vm965, %v943, -inf
      %967 = vmax.xlane.f32.xlu0 %v966
      %v968 = vpop.xlane.xlu0 %967
      %v969 = vsel %vm965, %v962, -inf
      %970 = vmax.xlane.f32.xlu0 %v969
      %v971 = vpop.xlane.xlu0 %970
      %v972 = vsub.f32 %v943, %v968
      %v973 = vsub.f32 %v962, %v971
      %v974 = vmul.f32 %v972, 1.442695
      %v975 = vpow.pop %v974
      %v976 = vmul.f32 %v973, 1.442695
      %v977 = vpow.pop %v976
      %v978 = vsel %vm965, %v975, 0.0
      %979 = vadd.xlane.f32.xlu0 %v978
      %v980 = vpop.xlane.xlu0 %979
      %v981 = vsel %vm965, %v977, 0.0
      %982 = vadd.xlane.f32.xlu0 %v981
      %v983 = vpop.xlane.xlu0 %982
      %v984 = vrcp.pop %v980
      %v985 = vrcp.pop %v983
      %v986 = vmul.f32 %v975, %v984
      %v987 = vmul.f32 %v977, %v985
      %v988 = vpack.c.bf16 %v986, %v986
      %v989 = vpack.c.bf16 %v987, %v987
      %v990 = vpack.c.bf16 %v858, %v858
      %v991 = vpack.c.bf16 %v919, %v919
      %v993 = vsel %vm965, %v988, 0
      %vm995 = vcmask 1043456
      %v997 = vsel %vm995, %v990, 0
      %999 = vmatpush.bf16.msra.mxu0 0
      %1000 = vmatpush.bf16.msra.mxu0 0
      %1001 = vmatpush.bf16.msra.mxu0 0
      %1002 = vmatpush.bf16.msra.mxu0 0
      %1003 = vmatpush.bf16.msra.mxu0 0
      %1004 = vmatpush.bf16.msra.mxu0 0
      %1005 = vmatpush.bf16.msra.mxu0 0
      %1006 = vmatpush.bf16.msra.mxu0 %v997
      %1007 = vmatmul.bf16.gmra.mxu0 %v993
      %v1008 = vpop.f32.mrf.mxu0
      %v1009 = vadd.f32 0.0, %v1008
      %v1010 = vpop.f32.mrf.mxu0
      %1011 = vdwg.mxu0
      %v1013 = vsel %vm965, %v989, 0
      %v1016 = vsel %vm995, %v991, 0
      %1018 = vmatpush.bf16.msra.mxu0 0
      %1019 = vmatpush.bf16.msra.mxu0 0
      %1020 = vmatpush.bf16.msra.mxu0 0
      %1021 = vmatpush.bf16.msra.mxu0 0
      %1022 = vmatpush.bf16.msra.mxu0 0
      %1023 = vmatpush.bf16.msra.mxu0 0
      %1024 = vmatpush.bf16.msra.mxu0 0
      %1025 = vmatpush.bf16.msra.mxu0 %v1016
      %1026 = vmatmul.bf16.gmra.mxu0 %v1013
      %v1027 = vpop.f32.mrf.mxu0
      %v1028 = vadd.f32 0.0, %v1027
      %v1029 = vpop.f32.mrf.mxu0
      %1030 = vdwg.mxu0
      %v1031 = vpack.c.bf16 %v1009, %v1009
      %v1032 = vpack.c.bf16 %v1028, %v1028
      %v1035 = vunpack.c.l.b16 %v551
      %v1036 = vunpack.c.l.b16 %v552
      %v1037 = vpack.c.b16 %v1036, %v1035
      %v1040 = vsel %vm926, %v1031, 0
      %1042 = vmatpush.bf16.msra.mxu0 0
      %1043 = vmatpush.bf16.msra.mxu0 0
      %1044 = vmatpush.bf16.msra.mxu0 0
      %1045 = vmatpush.bf16.msra.mxu0 0
      %1046 = vmatpush.bf16.msra.mxu0 0
      %1047 = vmatpush.bf16.msra.mxu0 0
      %1048 = vmatpush.bf16.msra.mxu0 0
      %1049 = vmatpush.bf16.msra.mxu0 %v1037
      %1050 = vmatmul.bf16.gmra.mxu0 %v1040
      %v1051 = vpop.f32.mrf.mxu0
      %v1052 = vadd.f32 0.0, %v1051
      %v1053 = vpop.f32.mrf.mxu0
      %1054 = vdwg.mxu0
      %v1057 = vunpack.c.l.b16 %v553
      %v1058 = vunpack.c.l.b16 %v554
      %v1059 = vpack.c.b16 %v1058, %v1057
      %v1062 = vsel %vm926, %v1032, 0
      %1064 = vmatpush.bf16.msra.mxu0 0
      %1065 = vmatpush.bf16.msra.mxu0 0
      %1066 = vmatpush.bf16.msra.mxu0 0
      %1067 = vmatpush.bf16.msra.mxu0 0
      %1068 = vmatpush.bf16.msra.mxu0 0
      %1069 = vmatpush.bf16.msra.mxu0 0
      %1070 = vmatpush.bf16.msra.mxu0 0
      %1071 = vmatpush.bf16.msra.mxu0 %v1059
      %1072 = vmatmul.bf16.gmra.mxu0 %v1062
      %v1073 = vpop.f32.mrf.mxu0
      %v1074 = vadd.f32 0.0, %v1073
      %v1075 = vpop.f32.mrf.mxu0
      %1076 = vdwg.mxu0
      %v1077 = vadd.f32 %v1052, %v1074
      %v1078 = vadd.f32 %v425, %v1077
      %v1079 = vld [vmem:[%s8] sm:$0x1]
      %v1080 = vmul.f32 %v1078, %v1078
      %1081 = vadd.xlane.f32.xlu0 %v1080
      %v1082 = vpop.xlane.xlu0 %1081
      %v1083 = vmul.f32 %v1082, 0.03125
      %v1084 = vadd.f32 %v1083, 1e-06
      %v1085 = vrsqrt.pop %v1084
      %v1086 = vmul.f32 %v1085, %v1084
      %v1087 = vmul.f32 %v1086, %v1085
      %v1088 = vmul.f32 0.5, %v1087
      %v1089 = vsub.f32 1.5, %v1088
      %v1090 = vmul.f32 %v1085, %v1089
      %vm1091 = vweird.f32 %v1084
      %vm1092 = vweird.f32 %v1085
      %vm1093 = vmor %vm1091, %vm1092
      %v1094 = vsel %vm1093, %v1085, %v1090
      %v1095 = vmul.f32 %v1078, %v1094
      %v1097 = vperm.slane %v1079, 0
      %v1099 = vmul.f32 %v1095, %v1097
      %v1100 = vpack.c.bf16 %v1099, %v1099
      %v1101 = vld [vmem:[%s9] sm:$0xf]
      %v1102 = vld [vmem:[%s9 + $0x4] sm:$0xf]
      %v1103 = vld [vmem:[%s9 + $0x8] sm:$0xf]
      %v1104 = vld [vmem:[%s9 + $0xc] sm:$0xf]
      %v1105 = vld [vmem:[%s9 + $0x10] sm:$0xf]
      %v1106 = vld [vmem:[%s9 + $0x14] sm:$0xf]
      %v1107 = vld [vmem:[%s9 + $0x18] sm:$0xf]
      %v1108 = vld [vmem:[%s9 + $0x1c] sm:$0xf]
      %v1109 = vld [vmem:[%s9 + $0x20] sm:$0xf]
      %v1110 = vld [vmem:[%s9 + $0x24] sm:$0xf]
      %v1111 = vld [vmem:[%s9 + $0x28] sm:$0xf]
      %v1112 = vld [vmem:[%s9 + $0x2c] sm:$0xf]
      %v1113 = vld [vmem:[%s9 + $0x30] sm:$0xf]
      %v1114 = vld [vmem:[%s9 + $0x34] sm:$0xf]
      %v1115 = vld [vmem:[%s9 + $0x38] sm:$0xf]
      %v1116 = vld [vmem:[%s9 + $0x3c] sm:$0xf]
      %v1133 = vunpack.c.l.b16 %v1101
      %v1134 = vunpack.c.l.b16 %v1102
      %v1135 = vunpack.c.l.b16 %v1103
      %v1136 = vunpack.c.l.b16 %v1104
      %v1137 = vunpack.c.l.b16 %v1105
      %v1138 = vunpack.c.l.b16 %v1106
      %v1139 = vunpack.c.l.b16 %v1107
      %v1140 = vunpack.c.l.b16 %v1108
      %v1141 = vunpack.c.l.b16 %v1109
      %v1142 = vunpack.c.l.b16 %v1110
      %v1143 = vunpack.c.l.b16 %v1111
      %v1144 = vunpack.c.l.b16 %v1112
      %v1145 = vunpack.c.l.b16 %v1113
      %v1146 = vunpack.c.l.b16 %v1114
      %v1147 = vunpack.c.l.b16 %v1115
      %v1148 = vunpack.c.l.b16 %v1116
      %v1149 = vpack.c.b16 %v1134, %v1133
      %v1150 = vpack.c.b16 %v1136, %v1135
      %v1151 = vpack.c.b16 %v1138, %v1137
      %v1152 = vpack.c.b16 %v1140, %v1139
      %v1153 = vpack.c.b16 %v1142, %v1141
      %v1154 = vpack.c.b16 %v1144, %v1143
      %v1155 = vpack.c.b16 %v1146, %v1145
      %v1156 = vpack.c.b16 %v1148, %v1147
      %1165 = vmatpush.bf16.msra.mxu0 %v1156
      %1166 = vmatpush.bf16.msra.mxu0 %v1155
      %1167 = vmatpush.bf16.msra.mxu0 %v1154
      %1168 = vmatpush.bf16.msra.mxu0 %v1153
      %1169 = vmatpush.bf16.msra.mxu0 %v1152
      %1170 = vmatpush.bf16.msra.mxu0 %v1151
      %1171 = vmatpush.bf16.msra.mxu0 %v1150
      %1172 = vmatpush.bf16.msra.mxu0 %v1149
      %1173 = vmatmul.bf16.gmra.mxu0 %v1100
      %v1174 = vpop.f32.mrf.mxu0
      %v1175 = vadd.f32 0.0, %v1174
      %v1176 = vpop.f32.mrf.mxu0
      %1177 = vdwg.mxu0
      %v1178 = vmax.f32 %v1175, 0.0
      %v1179 = vpack.c.bf16 %v1178, %v1178
      %v1180 = vld [vmem:[%s10] sm:$0xf]
      %v1181 = vld [vmem:[%s10 + $0x4] sm:$0xf]
      %v1182 = vld [vmem:[%s10 + $0x8] sm:$0xf]
      %v1183 = vld [vmem:[%s10 + $0xc] sm:$0xf]
      %v1184 = vld [vmem:[%s10 + $0x10] sm:$0xf]
      %v1185 = vld [vmem:[%s10 + $0x14] sm:$0xf]
      %v1186 = vld [vmem:[%s10 + $0x18] sm:$0xf]
      %v1187 = vld [vmem:[%s10 + $0x1c] sm:$0xf]
      %v1196 = vunpack.c.l.b16 %v1180
      %v1197 = vunpack.c.l.b16 %v1181
      %v1198 = vunpack.c.l.b16 %v1182
      %v1199 = vunpack.c.l.b16 %v1183
      %v1200 = vunpack.c.l.b16 %v1184
      %v1201 = vunpack.c.l.b16 %v1185
      %v1202 = vunpack.c.l.b16 %v1186
      %v1203 = vunpack.c.l.b16 %v1187
      %v1204 = vpack.c.b16 %v1197, %v1196
      %v1205 = vpack.c.b16 %v1199, %v1198
      %v1206 = vpack.c.b16 %v1201, %v1200
      %v1207 = vpack.c.b16 %v1203, %v1202
      %vm1212 = vcmask 523264
      %v1214 = vsel %vm1212, %v1179, 0
      %1216 = vmatpush.bf16.msra.mxu0 0
      %1217 = vmatpush.bf16.msra.mxu0 0
      %1218 = vmatpush.bf16.msra.mxu0 0
      %1219 = vmatpush.bf16.msra.mxu0 0
      %1220 = vmatpush.bf16.msra.mxu0 %v1207
      %1221 = vmatpush.bf16.msra.mxu0 %v1206
      %1222 = vmatpush.bf16.msra.mxu0 %v1205
      %1223 = vmatpush.bf16.msra.mxu0 %v1204
      %1224 = vmatmul.bf16.gmra.mxu0 %v1214
      %v1225 = vpop.f32.mrf.mxu0
      %v1226 = vadd.f32 0.0, %v1225
      %v1227 = vpop.f32.mrf.mxu0
      %1228 = vdwg.mxu0
      %v1229 = vadd.f32 %v1078, %v1226
      %v1230 = vld [vmem:[%s11] sm:$0x1]
      %v1231 = vmul.f32 %v1229, %v1229
      %1232 = vadd.xlane.f32.xlu0 %v1231
      %v1233 = vpop.xlane.xlu0 %1232
      %v1234 = vmul.f32 %v1233, 0.03125
      %v1235 = vadd.f32 %v1234, 1e-06
      %v1236 = vrsqrt.pop %v1235
      %v1237 = vmul.f32 %v1236, %v1235
      %v1238 = vmul.f32 %v1237, %v1236
      %v1239 = vmul.f32 0.5, %v1238
      %v1240 = vsub.f32 1.5, %v1239
      %v1241 = vmul.f32 %v1236, %v1240
      %vm1242 = vweird.f32 %v1235
      %vm1243 = vweird.f32 %v1236
      %vm1244 = vmor %vm1242, %vm1243
      %v1245 = vsel %vm1244, %v1236, %v1241
      %v1246 = vmul.f32 %v1229, %v1245
      %v1248 = vperm.slane %v1230, 0
      %v1250 = vmul.f32 %v1246, %v1248
      %v1251 = vpack.c.bf16 %v1250, %v1250
      %1252 = vst [vmem:[%s422] sm:$0xf] %v1251
      %p1253 = scmp.lt.s32.totalorder %s23, 1
      %s1254 = scalar_select %p1253, %s23, 1
      %s1255 = smul.addr %s1254, 4
      %s1256 = scalar_lea.vmem %s12, %s1255
      // Predicated region
      $region69: #{forward.3} parent=67 // pred_check
        %p1257 = pneg %p303
      $region70: #{forward.3} parent=67 // pred_check_branch
        %1259 = sbr.rel (%p1257) target = $region72
      $region71: #{forward.3} parent=67 // pred_region
        _
      $region72: #{forward.3} parent=67 // pred_fallthru
        _
    $region68: #{forward.3} parent=5 // pred_fallthru
      _
    %p1260 = scmp.le.s32.totalorder 2, %s18
    // Predicated region
    $region73: #{forward.3} parent=5 // pred_check
      %p1261 = pneg %p1260
    $region74: #{forward.3} parent=5 // pred_check_branch
      %1263 = sbr.rel (%p1261) target = $region76
    $region75: #{forward.3} parent=5 // pred_region
      %s1264 = ssub.s32 %s18, 2
      // Predicated region
      $region77: #{forward.3} parent=75 // pred_check
        %p1265 = pneg %p309
      $region78: #{forward.3} parent=75 // pred_check_branch
        %1267 = sbr.rel (%p1265) target = $region80
      $region79: #{forward.3} parent=75 // pred_region
        %p1268 = scmp.lt.s32.totalorder %s24, 1
        %s1269 = scalar_select %p1268, %s24, 1
        %s1270 = smul.addr %s1269, 4
        %s1271 = scalar_lea.vmem %s12, %s1270
      $region80: #{forward.3} parent=75 // pred_fallthru
        _
    $region76: #{forward.3} parent=5 // pred_fallthru
      _
  $region6: #{forward.3} parent=0 // loop_footer
    %s22 = sadd.s32 1, %s18
  $region7: #{forward.3} parent=0 // loop_footer_branch
    %17 = sbr.rel target = $region3
  $region8: #{forward.3} parent=0 // loop_exit
    _

// kernel: forward.4
$region0: #{forward.4}
  #allocation0 [shape = 'u32[]', space=smem, size = 0x4, offset = 0x4, fixed_abs, tag = 'smem constant byte address 0x4 - core index']
  #allocation1 [shape = 'u32[72,128]{1,0:T(1,128)}', space=vmem, size = 0x9000, scoped, tag = 'internal scratch']
  %s0 = inlined_call_operand.vmem [shape: bf16[2,8,128], index: 0, kind: input, shape index: {}]
  %s1 = inlined_call_operand.vmem [shape: bf16[2,8,128], index: 1, kind: input, shape index: {}]
  %s2 = inlined_call_operand.vmem [shape: f32[2,1,8], index: 2, kind: input, shape index: {}]
  %s3 = inlined_call_operand.vmem [shape: f32[2,8,8], index: 3, kind: input, shape index: {}]
  %s4 = inlined_call_operand.vmem [shape: f32[1,128], index: 4, kind: input, shape index: {}]
  %s5 = inlined_call_operand.vmem [shape: bf16[2,128,16], index: 5, kind: input, shape index: {}]
  %s6 = inlined_call_operand.vmem [shape: bf16[2,128,16], index: 6, kind: input, shape index: {}]
  %s7 = inlined_call_operand.vmem [shape: bf16[2,128,16], index: 7, kind: input, shape index: {}]
  %s8 = inlined_call_operand.vmem [shape: bf16[2,16,128], index: 8, kind: input, shape index: {}]
  %s9 = inlined_call_operand.vmem [shape: f32[1,128], index: 9, kind: input, shape index: {}]
  %s10 = inlined_call_operand.vmem [shape: bf16[2,128,16], index: 10, kind: input, shape index: {}]
  %s11 = inlined_call_operand.vmem [shape: bf16[2,128,16], index: 11, kind: input, shape index: {}]
  %s12 = inlined_call_operand.vmem [shape: bf16[2,128,16], index: 12, kind: input, shape index: {}]
  %s13 = inlined_call_operand.vmem [shape: bf16[2,16,128], index: 13, kind: input, shape index: {}]
  %s14 = inlined_call_operand.vmem [shape: f32[1,128], index: 14, kind: input, shape index: {}]
  %s15 = inlined_call_operand.vmem [shape: bf16[128,64], index: 15, kind: input, shape index: {}]
  %s16 = inlined_call_operand.vmem [shape: bf16[64,128], index: 16, kind: input, shape index: {}]
  %s17 = inlined_call_operand.vmem [shape: bf16[2,8,128], index: 17, kind: output, shape index: {}]
  %s18 = sld [smem:[#allocation0]]
  $region101: #{forward.4} parent=0
    _
  %s20 = ssub.s32 1, %s18
  %s21 = scalar_select 0, %s20, %s18
  loop: start=0, step=1, limit=4
  $region2: #{forward.4} parent=0 // loop_pre_header
    _
  $region3: #{forward.4} parent=0 // loop_header
    %s23 = sphi 0, %s27
    %p24 = scmp.ge.s32.totalorder %s23, 4
    %s33 = sphi 0, %s35
    %s36 = sphi 0, %s33
    %s37 = sphi 0, %s36
    %s53 = sphi 0, %s37
    %s59 = sphi 0, %s61
    %s62 = sphi 0, %s59
    %s63 = sphi 0, %s62
    %s79 = sphi 0, %s63
    %s85 = sphi 0, %s87
    %s88 = sphi 0, %s85
    %s89 = sphi 0, %s88
    %s105 = sphi 0, %s89
    %s109 = sphi 0, %s109
    %s111 = sphi 0, %s109
    %s112 = sphi 0, %s111
    %s126 = sphi 0, %s112
    %s130 = sphi 0, %s130
    %s132 = sphi 0, %s130
    %s133 = sphi 0, %s132
    %s147 = sphi 0, %s133
    %s151 = sphi 0, %s151
    %s153 = sphi 0, %s151
    %s154 = sphi 0, %s153
    %s168 = sphi 0, %s154
    %s172 = sphi 0, %s172
    %s174 = sphi 0, %s172
    %s175 = sphi 0, %s174
    %s189 = sphi 0, %s175
    %s193 = sphi 0, %s193
    %s195 = sphi 0, %s193
    %s196 = sphi 0, %s195
    %s210 = sphi 0, %s196
    %s214 = sphi 0, %s214
    %s216 = sphi 0, %s214
    %s217 = sphi 0, %s216
    %s231 = sphi 0, %s217
    %s235 = sphi 0, %s235
    %s237 = sphi 0, %s235
    %s238 = sphi 0, %s237
    %s252 = sphi 0, %s238
    %s256 = sphi 0, %s256
    %s258 = sphi 0, %s256
    %s259 = sphi 0, %s258
    %s273 = sphi 0, %s259
    %s277 = sphi 0, %s277
    %s279 = sphi 0, %s277
    %s280 = sphi 0, %s279
    %s294 = sphi 0, %s280
    %s298 = sphi 0, %s298
    %s300 = sphi 0, %s298
    %s301 = sphi 0, %s300
    %s315 = sphi 0, %s301
    %s319 = sphi 0, %s319
    %s321 = sphi 0, %s319
    %s322 = sphi 0, %s321
    %s336 = sphi 0, %s322
    %s340 = sphi 0, %s340
    %s342 = sphi 0, %s340
    %s343 = sphi 0, %s342
    %s357 = sphi 0, %s343
    %s361 = sphi 0, %s361
    %s363 = sphi 0, %s361
    %s364 = sphi 0, %s363
    %s378 = sphi 0, %s364
    %s382 = sphi 0, %s382
    %s384 = sphi 0, %s382
    %s385 = sphi 0, %s384
    %s399 = sphi 0, %s385
    %s405 = sphi 0, %s407
    %s408 = sphi 0, %s405
    %s409 = sphi 0, %s408
    %s425 = sphi 0, %s409
  $region4: #{forward.4} parent=0 // loop_header_branch
    %26 = sbr.rel (%p24) target = $region8
  $region5: #{forward.4} parent=0 // loop_body
    %s28 = ssub.s32 %s23, 1
    %s29 = ssub.s32 %s23, 2
    %s30 = sadd.s32 %s23, 1
    %s31 = ssub.s32 %s23, %s30
    %p32 = scmp.eq.s32.totalorder %s31, 0
    %s34 = sadd.s32 %s33, 1
    %s35 = scalar_select %p32, %s33, %s34
    %p38 = pneg %p32
    %p39 = scmp.eq.s32.totalorder %s23, 1
    %p40 = por %p38, %p39
    %p41 = scmp.ne.s32.totalorder %s33, %s36
    %p42 = scmp.eq.s32.totalorder %s23, 0
    %p43 = por %p41, %p42
    %p44 = scmp.ne.s32.totalorder %s33, %s36
    %p45 = scmp.eq.s32.totalorder %s28, 1
    %p46 = por %p44, %p45
    %p47 = scmp.ne.s32.totalorder %s36, %s37
    %p48 = scmp.eq.s32.totalorder %s28, 0
    %p49 = por %p47, %p48
    %p50 = scmp.ne.s32.totalorder %s36, %s37
    %p51 = scmp.eq.s32.totalorder %s29, 1
    %p52 = por %p50, %p51
    %p54 = scmp.ne.s32.totalorder %s37, %s53
    %p55 = scmp.eq.s32.totalorder %s29, 0
    %p56 = por %p54, %p55
    %s57 = ssub.s32 %s23, %s30
    %p58 = scmp.eq.s32.totalorder %s57, 0
    %s60 = sadd.s32 %s59, 1
    %s61 = scalar_select %p58, %s59, %s60
    %p64 = pneg %p58
    %p65 = scmp.eq.s32.totalorder %s23, 1
    %p66 = por %p64, %p65
    %p67 = scmp.ne.s32.totalorder %s59, %s62
    %p68 = scmp.eq.s32.totalorder %s23, 0
    %p69 = por %p67, %p68
    %p70 = scmp.ne.s32.totalorder %s59, %s62
    %p71 = scmp.eq.s32.totalorder %s28, 1
    %p72 = por %p70, %p71
    %p73 = scmp.ne.s32.totalorder %s62, %s63
    %p74 = scmp.eq.s32.totalorder %s28, 0
    %p75 = por %p73, %p74
    %p76 = scmp.ne.s32.totalorder %s62, %s63
    %p77 = scmp.eq.s32.totalorder %s29, 1
    %p78 = por %p76, %p77
    %p80 = scmp.ne.s32.totalorder %s63, %s79
    %p81 = scmp.eq.s32.totalorder %s29, 0
    %p82 = por %p80, %p81
    %s83 = ssub.s32 %s23, %s30
    %p84 = scmp.eq.s32.totalorder %s83, 0
    %s86 = sadd.s32 %s85, 1
    %s87 = scalar_select %p84, %s85, %s86
    %p90 = pneg %p84
    %p91 = scmp.eq.s32.totalorder %s23, 1
    %p92 = por %p90, %p91
    %p93 = scmp.ne.s32.totalorder %s85, %s88
    %p94 = scmp.eq.s32.totalorder %s23, 0
    %p95 = por %p93, %p94
    %p96 = scmp.ne.s32.totalorder %s85, %s88
    %p97 = scmp.eq.s32.totalorder %s28, 1
    %p98 = por %p96, %p97
    %p99 = scmp.ne.s32.totalorder %s88, %s89
    %p100 = scmp.eq.s32.totalorder %s28, 0
    %p101 = por %p99, %p100
    %p102 = scmp.ne.s32.totalorder %s88, %s89
    %p103 = scmp.eq.s32.totalorder %s29, 1
    %p104 = por %p102, %p103
    %p106 = scmp.ne.s32.totalorder %s89, %s105
    %p107 = scmp.eq.s32.totalorder %s29, 0
    %p108 = por %p106, %p107
    %s110 = sadd.s32 %s109, 1
    %p113 = scmp.eq.s32.totalorder %s23, 1
    %p114 = scmp.ne.s32.totalorder %s109, %s111
    %p115 = scmp.eq.s32.totalorder %s23, 0
    %p116 = por %p114, %p115
    %p117 = scmp.ne.s32.totalorder %s109, %s111
    %p118 = scmp.eq.s32.totalorder %s28, 1
    %p119 = por %p117, %p118
    %p120 = scmp.ne.s32.totalorder %s111, %s112
    %p121 = scmp.eq.s32.totalorder %s28, 0
    %p122 = por %p120, %p121
    %p123 = scmp.ne.s32.totalorder %s111, %s112
    %p124 = scmp.eq.s32.totalorder %s29, 1
    %p125 = por %p123, %p124
    %p127 = scmp.ne.s32.totalorder %s112, %s126
    %p128 = scmp.eq.s32.totalorder %s29, 0
    %p129 = por %p127, %p128
    %s131 = sadd.s32 %s130, 1
    %p134 = scmp.eq.s32.totalorder %s23, 1
    %p135 = scmp.ne.s32.totalorder %s130, %s132
    %p136 = scmp.eq.s32.totalorder %s23, 0
    %p137 = por %p135, %p136
    %p138 = scmp.ne.s32.totalorder %s130, %s132
    %p139 = scmp.eq.s32.totalorder %s28, 1
    %p140 = por %p138, %p139
    %p141 = scmp.ne.s32.totalorder %s132, %s133
    %p142 = scmp.eq.s32.totalorder %s28, 0
    %p143 = por %p141, %p142
    %p144 = scmp.ne.s32.totalorder %s132, %s133
    %p145 = scmp.eq.s32.totalorder %s29, 1
    %p146 = por %p144, %p145
    %p148 = scmp.ne.s32.totalorder %s133, %s147
    %p149 = scmp.eq.s32.totalorder %s29, 0
    %p150 = por %p148, %p149
    %s152 = sadd.s32 %s151, 1
    %p155 = scmp.eq.s32.totalorder %s23, 1
    %p156 = scmp.ne.s32.totalorder %s151, %s153
    %p157 = scmp.eq.s32.totalorder %s23, 0
    %p158 = por %p156, %p157
    %p159 = scmp.ne.s32.totalorder %s151, %s153
    %p160 = scmp.eq.s32.totalorder %s28, 1
    %p161 = por %p159, %p160
    %p162 = scmp.ne.s32.totalorder %s153, %s154
    %p163 = scmp.eq.s32.totalorder %s28, 0
    %p164 = por %p162, %p163
    %p165 = scmp.ne.s32.totalorder %s153, %s154
    %p166 = scmp.eq.s32.totalorder %s29, 1
    %p167 = por %p165, %p166
    %p169 = scmp.ne.s32.totalorder %s154, %s168
    %p170 = scmp.eq.s32.totalorder %s29, 0
    %p171 = por %p169, %p170
    %s173 = sadd.s32 %s172, 1
    %p176 = scmp.eq.s32.totalorder %s23, 1
    %p177 = scmp.ne.s32.totalorder %s172, %s174
    %p178 = scmp.eq.s32.totalorder %s23, 0
    %p179 = por %p177, %p178
    %p180 = scmp.ne.s32.totalorder %s172, %s174
    %p181 = scmp.eq.s32.totalorder %s28, 1
    %p182 = por %p180, %p181
    %p183 = scmp.ne.s32.totalorder %s174, %s175
    %p184 = scmp.eq.s32.totalorder %s28, 0
    %p185 = por %p183, %p184
    %p186 = scmp.ne.s32.totalorder %s174, %s175
    %p187 = scmp.eq.s32.totalorder %s29, 1
    %p188 = por %p186, %p187
    %p190 = scmp.ne.s32.totalorder %s175, %s189
    %p191 = scmp.eq.s32.totalorder %s29, 0
    %p192 = por %p190, %p191
    %s194 = sadd.s32 %s193, 1
    %p197 = scmp.eq.s32.totalorder %s23, 1
    %p198 = scmp.ne.s32.totalorder %s193, %s195
    %p199 = scmp.eq.s32.totalorder %s23, 0
    %p200 = por %p198, %p199
    %p201 = scmp.ne.s32.totalorder %s193, %s195
    %p202 = scmp.eq.s32.totalorder %s28, 1
    %p203 = por %p201, %p202
    %p204 = scmp.ne.s32.totalorder %s195, %s196
    %p205 = scmp.eq.s32.totalorder %s28, 0
    %p206 = por %p204, %p205
    %p207 = scmp.ne.s32.totalorder %s195, %s196
    %p208 = scmp.eq.s32.totalorder %s29, 1
    %p209 = por %p207, %p208
    %p211 = scmp.ne.s32.totalorder %s196, %s210
    %p212 = scmp.eq.s32.totalorder %s29, 0
    %p213 = por %p211, %p212
    %s215 = sadd.s32 %s214, 1
    %p218 = scmp.eq.s32.totalorder %s23, 1
    %p219 = scmp.ne.s32.totalorder %s214, %s216
    %p220 = scmp.eq.s32.totalorder %s23, 0
    %p221 = por %p219, %p220
    %p222 = scmp.ne.s32.totalorder %s214, %s216
    %p223 = scmp.eq.s32.totalorder %s28, 1
    %p224 = por %p222, %p223
    %p225 = scmp.ne.s32.totalorder %s216, %s217
    %p226 = scmp.eq.s32.totalorder %s28, 0
    %p227 = por %p225, %p226
    %p228 = scmp.ne.s32.totalorder %s216, %s217
    %p229 = scmp.eq.s32.totalorder %s29, 1
    %p230 = por %p228, %p229
    %p232 = scmp.ne.s32.totalorder %s217, %s231
    %p233 = scmp.eq.s32.totalorder %s29, 0
    %p234 = por %p232, %p233
    %s236 = sadd.s32 %s235, 1
    %p239 = scmp.eq.s32.totalorder %s23, 1
    %p240 = scmp.ne.s32.totalorder %s235, %s237
    %p241 = scmp.eq.s32.totalorder %s23, 0
    %p242 = por %p240, %p241
    %p243 = scmp.ne.s32.totalorder %s235, %s237
    %p244 = scmp.eq.s32.totalorder %s28, 1
    %p245 = por %p243, %p244
    %p246 = scmp.ne.s32.totalorder %s237, %s238
    %p247 = scmp.eq.s32.totalorder %s28, 0
    %p248 = por %p246, %p247
    %p249 = scmp.ne.s32.totalorder %s237, %s238
    %p250 = scmp.eq.s32.totalorder %s29, 1
    %p251 = por %p249, %p250
    %p253 = scmp.ne.s32.totalorder %s238, %s252
    %p254 = scmp.eq.s32.totalorder %s29, 0
    %p255 = por %p253, %p254
    %s257 = sadd.s32 %s256, 1
    %p260 = scmp.eq.s32.totalorder %s23, 1
    %p261 = scmp.ne.s32.totalorder %s256, %s258
    %p262 = scmp.eq.s32.totalorder %s23, 0
    %p263 = por %p261, %p262
    %p264 = scmp.ne.s32.totalorder %s256, %s258
    %p265 = scmp.eq.s32.totalorder %s28, 1
    %p266 = por %p264, %p265
    %p267 = scmp.ne.s32.totalorder %s258, %s259
    %p268 = scmp.eq.s32.totalorder %s28, 0
    %p269 = por %p267, %p268
    %p270 = scmp.ne.s32.totalorder %s258, %s259
    %p271 = scmp.eq.s32.totalorder %s29, 1
    %p272 = por %p270, %p271
    %p274 = scmp.ne.s32.totalorder %s259, %s273
    %p275 = scmp.eq.s32.totalorder %s29, 0
    %p276 = por %p274, %p275
    %s278 = sadd.s32 %s277, 1
    %p281 = scmp.eq.s32.totalorder %s23, 1
    %p282 = scmp.ne.s32.totalorder %s277, %s279
    %p283 = scmp.eq.s32.totalorder %s23, 0
    %p284 = por %p282, %p283
    %p285 = scmp.ne.s32.totalorder %s277, %s279
    %p286 = scmp.eq.s32.totalorder %s28, 1
    %p287 = por %p285, %p286
    %p288 = scmp.ne.s32.totalorder %s279, %s280
    %p289 = scmp.eq.s32.totalorder %s28, 0
    %p290 = por %p288, %p289
    %p291 = scmp.ne.s32.totalorder %s279, %s280
    %p292 = scmp.eq.s32.totalorder %s29, 1
    %p293 = por %p291, %p292
    %p295 = scmp.ne.s32.totalorder %s280, %s294
    %p296 = scmp.eq.s32.totalorder %s29, 0
    %p297 = por %p295, %p296
    %s299 = sadd.s32 %s298, 1
    %p302 = scmp.eq.s32.totalorder %s23, 1
    %p303 = scmp.ne.s32.totalorder %s298, %s300
    %p304 = scmp.eq.s32.totalorder %s23, 0
    %p305 = por %p303, %p304
    %p306 = scmp.ne.s32.totalorder %s298, %s300
    %p307 = scmp.eq.s32.totalorder %s28, 1
    %p308 = por %p306, %p307
    %p309 = scmp.ne.s32.totalorder %s300, %s301
    %p310 = scmp.eq.s32.totalorder %s28, 0
    %p311 = por %p309, %p310
    %p312 = scmp.ne.s32.totalorder %s300, %s301
    %p313 = scmp.eq.s32.totalorder %s29, 1
    %p314 = por %p312, %p313
    %p316 = scmp.ne.s32.totalorder %s301, %s315
    %p317 = scmp.eq.s32.totalorder %s29, 0
    %p318 = por %p316, %p317
    %s320 = sadd.s32 %s319, 1
    %p323 = scmp.eq.s32.totalorder %s23, 1
    %p324 = scmp.ne.s32.totalorder %s319, %s321
    %p325 = scmp.eq.s32.totalorder %s23, 0
    %p326 = por %p324, %p325
    %p327 = scmp.ne.s32.totalorder %s319, %s321
    %p328 = scmp.eq.s32.totalorder %s28, 1
    %p329 = por %p327, %p328
    %p330 = scmp.ne.s32.totalorder %s321, %s322
    %p331 = scmp.eq.s32.totalorder %s28, 0
    %p332 = por %p330, %p331
    %p333 = scmp.ne.s32.totalorder %s321, %s322
    %p334 = scmp.eq.s32.totalorder %s29, 1
    %p335 = por %p333, %p334
    %p337 = scmp.ne.s32.totalorder %s322, %s336
    %p338 = scmp.eq.s32.totalorder %s29, 0
    %p339 = por %p337, %p338
    %s341 = sadd.s32 %s340, 1
    %p344 = scmp.eq.s32.totalorder %s23, 1
    %p345 = scmp.ne.s32.totalorder %s340, %s342
    %p346 = scmp.eq.s32.totalorder %s23, 0
    %p347 = por %p345, %p346
    %p348 = scmp.ne.s32.totalorder %s340, %s342
    %p349 = scmp.eq.s32.totalorder %s28, 1
    %p350 = por %p348, %p349
    %p351 = scmp.ne.s32.totalorder %s342, %s343
    %p352 = scmp.eq.s32.totalorder %s28, 0
    %p353 = por %p351, %p352
    %p354 = scmp.ne.s32.totalorder %s342, %s343
    %p355 = scmp.eq.s32.totalorder %s29, 1
    %p356 = por %p354, %p355
    %p358 = scmp.ne.s32.totalorder %s343, %s357
    %p359 = scmp.eq.s32.totalorder %s29, 0
    %p360 = por %p358, %p359
    %s362 = sadd.s32 %s361, 1
    %p365 = scmp.eq.s32.totalorder %s23, 1
    %p366 = scmp.ne.s32.totalorder %s361, %s363
    %p367 = scmp.eq.s32.totalorder %s23, 0
    %p368 = por %p366, %p367
    %p369 = scmp.ne.s32.totalorder %s361, %s363
    %p370 = scmp.eq.s32.totalorder %s28, 1
    %p371 = por %p369, %p370
    %p372 = scmp.ne.s32.totalorder %s363, %s364
    %p373 = scmp.eq.s32.totalorder %s28, 0
    %p374 = por %p372, %p373
    %p375 = scmp.ne.s32.totalorder %s363, %s364
    %p376 = scmp.eq.s32.totalorder %s29, 1
    %p377 = por %p375, %p376
    %p379 = scmp.ne.s32.totalorder %s364, %s378
    %p380 = scmp.eq.s32.totalorder %s29, 0
    %p381 = por %p379, %p380
    %s383 = sadd.s32 %s382, 1
    %p386 = scmp.eq.s32.totalorder %s23, 1
    %p387 = scmp.ne.s32.totalorder %s382, %s384
    %p388 = scmp.eq.s32.totalorder %s23, 0
    %p389 = por %p387, %p388
    %p390 = scmp.ne.s32.totalorder %s382, %s384
    %p391 = scmp.eq.s32.totalorder %s28, 1
    %p392 = por %p390, %p391
    %p393 = scmp.ne.s32.totalorder %s384, %s385
    %p394 = scmp.eq.s32.totalorder %s28, 0
    %p395 = por %p393, %p394
    %p396 = scmp.ne.s32.totalorder %s384, %s385
    %p397 = scmp.eq.s32.totalorder %s29, 1
    %p398 = por %p396, %p397
    %p400 = scmp.ne.s32.totalorder %s385, %s399
    %p401 = scmp.eq.s32.totalorder %s29, 0
    %p402 = por %p400, %p401
    %s403 = ssub.s32 %s23, %s30
    %p404 = scmp.eq.s32.totalorder %s403, 0
    %s406 = sadd.s32 %s405, 1
    %s407 = scalar_select %p404, %s405, %s406
    %p410 = pneg %p404
    %p411 = scmp.eq.s32.totalorder %s23, 1
    %p412 = por %p410, %p411
    %p413 = scmp.ne.s32.totalorder %s405, %s408
    %p414 = scmp.eq.s32.totalorder %s23, 0
    %p415 = por %p413, %p414
    %p416 = scmp.ne.s32.totalorder %s405, %s408
    %p417 = scmp.eq.s32.totalorder %s28, 1
    %p418 = por %p416, %p417
    %p419 = scmp.ne.s32.totalorder %s408, %s409
    %p420 = scmp.eq.s32.totalorder %s28, 0
    %p421 = por %p419, %p420
    %p422 = scmp.ne.s32.totalorder %s408, %s409
    %p423 = scmp.eq.s32.totalorder %s29, 1
    %p424 = por %p422, %p423
    %p426 = scmp.ne.s32.totalorder %s409, %s425
    %p427 = scmp.eq.s32.totalorder %s29, 0
    %p428 = por %p426, %p427
    %p429 = scmp.le.s32.totalorder 1, %s23
    %p430 = scmp.lt.s32.totalorder %s23, 3
    %p431 = pnand %p429, %p430
    %p432 = pneg %p431
    // Predicated region
    $region9: #{forward.4} parent=5 // pred_check
      _
    $region10: #{forward.4} parent=5 // pred_check_branch
      %434 = sbr.rel (%p431) target = $region12
    $region11: #{forward.4} parent=5 // pred_region
      %s435 = ssub.s32 %s23, 1
      // Predicated region
      $region13: #{forward.4} parent=11 // pred_check
        %p436 = pneg %p122
      $region14: #{forward.4} parent=11 // pred_check_branch
        %438 = sbr.rel (%p436) target = $region16
      $region15: #{forward.4} parent=11 // pred_region
        _
      $region16: #{forward.4} parent=11 // pred_fallthru
        _
      // Predicated region
      $region17: #{forward.4} parent=11 // pred_check
        %p439 = pneg %p143
      $region18: #{forward.4} parent=11 // pred_check_branch
        %441 = sbr.rel (%p439) target = $region20
      $region19: #{forward.4} parent=11 // pred_region
        _
      $region20: #{forward.4} parent=11 // pred_fallthru
        _
      // Predicated region
      $region21: #{forward.4} parent=11 // pred_check
        %p442 = pneg %p164
      $region22: #{forward.4} parent=11 // pred_check_branch
        %444 = sbr.rel (%p442) target = $region24
      $region23: #{forward.4} parent=11 // pred_region
        _
      $region24: #{forward.4} parent=11 // pred_fallthru
        _
      // Predicated region
      $region25: #{forward.4} parent=11 // pred_check
        %p445 = pneg %p185
      $region26: #{forward.4} parent=11 // pred_check_branch
        %447 = sbr.rel (%p445) target = $region28
      $region27: #{forward.4} parent=11 // pred_region
        _
      $region28: #{forward.4} parent=11 // pred_fallthru
        _
      // Predicated region
      $region29: #{forward.4} parent=11 // pred_check
        %p448 = pneg %p206
      $region30: #{forward.4} parent=11 // pred_check_branch
        %450 = sbr.rel (%p448) target = $region32
      $region31: #{forward.4} parent=11 // pred_region
        _
      $region32: #{forward.4} parent=11 // pred_fallthru
        _
      // Predicated region
      $region33: #{forward.4} parent=11 // pred_check
        %p451 = pneg %p227
      $region34: #{forward.4} parent=11 // pred_check_branch
        %453 = sbr.rel (%p451) target = $region36
      $region35: #{forward.4} parent=11 // pred_region
        _
      $region36: #{forward.4} parent=11 // pred_fallthru
        _
      // Predicated region
      $region37: #{forward.4} parent=11 // pred_check
        %p454 = pneg %p248
      $region38: #{forward.4} parent=11 // pred_check_branch
        %456 = sbr.rel (%p454) target = $region40
      $region39: #{forward.4} parent=11 // pred_region
        _
      $region40: #{forward.4} parent=11 // pred_fallthru
        _
      // Predicated region
      $region41: #{forward.4} parent=11 // pred_check
        %p457 = pneg %p269
      $region42: #{forward.4} parent=11 // pred_check_branch
        %459 = sbr.rel (%p457) target = $region44
      $region43: #{forward.4} parent=11 // pred_region
        _
      $region44: #{forward.4} parent=11 // pred_fallthru
        _
      // Predicated region
      $region45: #{forward.4} parent=11 // pred_check
        %p460 = pneg %p290
      $region46: #{forward.4} parent=11 // pred_check_branch
        %462 = sbr.rel (%p460) target = $region48
      $region47: #{forward.4} parent=11 // pred_region
        _
      $region48: #{forward.4} parent=11 // pred_fallthru
        _
      // Predicated region
      $region49: #{forward.4} parent=11 // pred_check
        %p463 = pneg %p311
      $region50: #{forward.4} parent=11 // pred_check_branch
        %465 = sbr.rel (%p463) target = $region52
      $region51: #{forward.4} parent=11 // pred_region
        _
      $region52: #{forward.4} parent=11 // pred_fallthru
        _
      // Predicated region
      $region53: #{forward.4} parent=11 // pred_check
        %p466 = pneg %p332
      $region54: #{forward.4} parent=11 // pred_check_branch
        %468 = sbr.rel (%p466) target = $region56
      $region55: #{forward.4} parent=11 // pred_region
        _
      $region56: #{forward.4} parent=11 // pred_fallthru
        _
      // Predicated region
      $region57: #{forward.4} parent=11 // pred_check
        %p469 = pneg %p353
      $region58: #{forward.4} parent=11 // pred_check_branch
        %471 = sbr.rel (%p469) target = $region60
      $region59: #{forward.4} parent=11 // pred_region
        _
      $region60: #{forward.4} parent=11 // pred_fallthru
        _
      // Predicated region
      $region61: #{forward.4} parent=11 // pred_check
        %p472 = pneg %p374
      $region62: #{forward.4} parent=11 // pred_check_branch
        %474 = sbr.rel (%p472) target = $region64
      $region63: #{forward.4} parent=11 // pred_region
        _
      $region64: #{forward.4} parent=11 // pred_fallthru
        _
      // Predicated region
      $region65: #{forward.4} parent=11 // pred_check
        %p475 = pneg %p395
      $region66: #{forward.4} parent=11 // pred_check_branch
        %477 = sbr.rel (%p475) target = $region68
      $region67: #{forward.4} parent=11 // pred_region
        _
      $region68: #{forward.4} parent=11 // pred_fallthru
        _
    $region12: #{forward.4} parent=5 // pred_fallthru
      _
    %p478 = scmp.lt.s32.totalorder %s23, 2
    // Predicated region
    $region69: #{forward.4} parent=5 // pred_check
      %p479 = pneg %p478
    $region70: #{forward.4} parent=5 // pred_check_branch
      %481 = sbr.rel (%p479) target = $region72
    $region71: #{forward.4} parent=5 // pred_region
      // Predicated region
      $region73: #{forward.4} parent=71 // pred_check
        %p482 = pneg %p43
      $region74: #{forward.4} parent=71 // pred_check_branch
        %484 = sbr.rel (%p482) target = $region76
      $region75: #{forward.4} parent=71 // pred_region
        %p485 = scmp.lt.s32.totalorder %s23, 1
        %s486 = scalar_select %p485, %s23, 1
        %s487 = smul.addr %s486, 4
        %s488 = scalar_lea.vmem %s0, %s487
      $region76: #{forward.4} parent=71 // pred_fallthru
        _
      // Predicated region
      $region77: #{forward.4} parent=71 // pred_check
        %p489 = pneg %p69
      $region78: #{forward.4} parent=71 // pred_check_branch
        %491 = sbr.rel (%p489) target = $region80
      $region79: #{forward.4} parent=71 // pred_region
        %p492 = scmp.lt.s32.totalorder %s23, 1
        %s493 = scalar_select %p492, %s23, 1
        %s494 = smul.addr %s493, 4
        %s495 = scalar_lea.vmem %s1, %s494
      $region80: #{forward.4} parent=71 // pred_fallthru
        _
      // Predicated region
      $region81: #{forward.4} parent=71 // pred_check
        %p496 = pneg %p95
      $region82: #{forward.4} parent=71 // pred_check_branch
        %498 = sbr.rel (%p496) target = $region84
      $region83: #{forward.4} parent=71 // pred_region
        %p499 = scmp.lt.s32.totalorder %s23, 1
        %s500 = scalar_select %p499, %s23, 1
        %s501 = scalar_lea.vmem %s2, %s500
      $region84: #{forward.4} parent=71 // pred_fallthru
        _
    $region72: #{forward.4} parent=5 // pred_fallthru
      _
    %p502 = scmp.le.s32.totalorder 1, %s23
    %p503 = scmp.lt.s32.totalorder %s23, 3
    %p504 = pnand %p502, %p503
    %p505 = pneg %p504
    // Predicated region
    $region85: #{forward.4} parent=5 // pred_check
      _
    $region86: #{forward.4} parent=5 // pred_check_branch
      %507 = sbr.rel (%p504) target = $region88
    $region87: #{forward.4} parent=5 // pred_region
      %s508 = ssub.s32 %s23, 1
      %p509 = scmp.lt.s32.totalorder %s28, 1
      %s510 = scalar_select %p509, %s28, 1
      %s511 = smul.addr %s510, 4
      %s512 = scalar_lea.vmem %s0, %s511
      %p513 = pneg %p49
      %p514 = pneg %p46
      %p515 = scmp.lt.s32.totalorder %s28, 1
      %s516 = scalar_select %p515, %s28, 1
      %s517 = smul.addr %s516, 4
      %s518 = scalar_lea.vmem %s1, %s517
      %p519 = pneg %p75
      %p520 = pneg %p72
      %p521 = scmp.lt.s32.totalorder %s28, 1
      %s522 = scalar_select %p521, %s28, 1
      %s523 = scalar_lea.vmem %s2, %s522
      %p524 = pneg %p101
      %p525 = pneg %p98
      %p526 = pneg %p122
      %p527 = pneg %p119
      %p528 = pneg %p143
      %p529 = pneg %p140
      %p530 = pneg %p164
      %p531 = pneg %p161
      %p532 = pneg %p185
      %p533 = pneg %p182
      %p534 = pneg %p206
      %p535 = pneg %p203
      %p536 = pneg %p227
      %p537 = pneg %p224
      %p538 = pneg %p248
      %p539 = pneg %p245
      %p540 = pneg %p269
      %p541 = pneg %p266
      %p542 = pneg %p290
      %p543 = pneg %p287
      %p544 = pneg %p311
      %p545 = pneg %p308
      %p546 = pneg %p332
      %p547 = pneg %p329
      %p548 = pneg %p353
      %p549 = pneg %p350
      %p550 = pneg %p374
      %p551 = pneg %p371
      %p552 = pneg %p395
      %p553 = pneg %p392
      %p554 = pneg %p421
      %p555 = pneg %p418
      %p556 = scmp.lt.s32.totalorder %s28, 1
      %s557 = scalar_select %p556, %s28, 1
      %s558 = smul.addr %s557, 4
      %s559 = scalar_lea.vmem %s17, %s558
      %p560 = scmp.lt.s32.totalorder %s28, 1
      %s561 = scalar_select %p560, %s28, 1
      %s562 = smul.addr %s561, 4
      %s563 = scalar_lea.vmem %s0, %s562
      %p564 = scmp.lt.s32.totalorder %s28, 1
      %s565 = scalar_select %p564, %s28, 1
      %s566 = smul.addr %s565, 4
      %s567 = scalar_lea.vmem %s1, %s566
      %p568 = scmp.lt.s32.totalorder %s28, 1
      %s569 = scalar_select %p568, %s28, 1
      %s570 = scalar_lea.vmem %s2, %s569
      %p571 = scmp.lt.s32.totalorder %s28, 1
      %s572 = scalar_select %p571, %s28, 1
      %s573 = smul.addr %s572, 4
      %s574 = scalar_lea.vmem %s17, %s573
      %v576 = vld [vmem:[%s563] sm:$0xf]
      %v577 = vunpack.c.l.bf16 %v576
      %v578 = vld [vmem:[%s567] sm:$0xf]
      %v579 = vlaneseq
      %v580 = vshrl.u32 %v579, 7
      %v581 = vlaneseq
      %v582 = vand.u32 %v581, 127
      %vm583 = vcmp.le.s32.totalorder %v582, %v580
      %v584 = vsel %vm583, 0.0, -1e+09
      %v585 = vld [vmem:[%s3] sm:$0xff]
      %v586 = vld [vmem:[%s3 + $0x8] sm:$0xff]
      %v587 = vadd.f32 %v585, %v584
      %v588 = vadd.f32 %v586, %v584
      %v589 = vld [vmem:[%s4] sm:$0x1]
      %v590 = vmul.f32 %v577, %v577
      %591 = vadd.xlane.f32.xlu0 %v590
      %v592 = vpop.xlane.xlu0 %591
      %v593 = vmul.f32 %v592, 0.03125
      %v594 = vadd.f32 %v593, 1e-06
      %v595 = vrsqrt.pop %v594
      %v596 = vmul.f32 %v595, %v594
      %v597 = vmul.f32 %v596, %v595
      %v598 = vmul.f32 0.5, %v597
      %v599 = vsub.f32 1.5, %v598
      %v600 = vmul.f32 %v595, %v599
      %vm601 = vweird.f32 %v594
      %vm602 = vweird.f32 %v595
      %vm603 = vmor %vm601, %vm602
      %v604 = vsel %vm603, %v595, %v600
      %v605 = vmul.f32 %v577, %v604
      %v607 = vperm.slane %v589, 0
      %v609 = vmul.f32 %v605, %v607
      %v610 = vld [vmem:[%s5] sm:$0xf]
      %v611 = vld [vmem:[%s5 + $0x4] sm:$0xf]
      %v612 = vld [vmem:[%s5 + $0x8] sm:$0xf]
      %v613 = vld [vmem:[%s5 + $0xc] sm:$0xf]
      %v614 = vld [vmem:[%s5 + $0x10] sm:$0xf]
      %v615 = vld [vmem:[%s5 + $0x14] sm:$0xf]
      %v616 = vld [vmem:[%s5 + $0x18] sm:$0xf]
      %v617 = vld [vmem:[%s5 + $0x1c] sm:$0xf]
      %v618 = vld [vmem:[%s5 + $0x20] sm:$0xf]
      %v619 = vld [vmem:[%s5 + $0x24] sm:$0xf]
      %v620 = vld [vmem:[%s5 + $0x28] sm:$0xf]
      %v621 = vld [vmem:[%s5 + $0x2c] sm:$0xf]
      %v622 = vld [vmem:[%s5 + $0x30] sm:$0xf]
      %v623 = vld [vmem:[%s5 + $0x34] sm:$0xf]
      %v624 = vld [vmem:[%s5 + $0x38] sm:$0xf]
      %v625 = vld [vmem:[%s5 + $0x3c] sm:$0xf]
      %v626 = vld [vmem:[%s5 + $0x40] sm:$0xf]
      %v627 = vld [vmem:[%s5 + $0x44] sm:$0xf]
      %v628 = vld [vmem:[%s5 + $0x48] sm:$0xf]
      %v629 = vld [vmem:[%s5 + $0x4c] sm:$0xf]
      %v630 = vld [vmem:[%s5 + $0x50] sm:$0xf]
      %v631 = vld [vmem:[%s5 + $0x54] sm:$0xf]
      %v632 = vld [vmem:[%s5 + $0x58] sm:$0xf]
      %v633 = vld [vmem:[%s5 + $0x5c] sm:$0xf]
      %v634 = vld [vmem:[%s5 + $0x60] sm:$0xf]
      %v635 = vld [vmem:[%s5 + $0x64] sm:$0xf]
      %v636 = vld [vmem:[%s5 + $0x68] sm:$0xf]
      %v637 = vld [vmem:[%s5 + $0x6c] sm:$0xf]
      %v638 = vld [vmem:[%s5 + $0x70] sm:$0xf]
      %v639 = vld [vmem:[%s5 + $0x74] sm:$0xf]
      %v640 = vld [vmem:[%s5 + $0x78] sm:$0xf]
      %v641 = vld [vmem:[%s5 + $0x7c] sm:$0xf]
      %v642 = vld [vmem:[%s6] sm:$0xf]
      %v643 = vld [vmem:[%s6 + $0x4] sm:$0xf]
      %v644 = vld [vmem:[%s6 + $0x8] sm:$0xf]
      %v645 = vld [vmem:[%s6 + $0xc] sm:$0xf]
      %v646 = vld [vmem:[%s6 + $0x10] sm:$0xf]
      %v647 = vld [vmem:[%s6 + $0x14] sm:$0xf]
      %v648 = vld [vmem:[%s6 + $0x18] sm:$0xf]
      %v649 = vld [vmem:[%s6 + $0x1c] sm:$0xf]
      %v650 = vld [vmem:[%s6 + $0x20] sm:$0xf]
      %v651 = vld [vmem:[%s6 + $0x24] sm:$0xf]
      %v652 = vld [vmem:[%s6 + $0x28] sm:$0xf]
      %v653 = vld [vmem:[%s6 + $0x2c] sm:$0xf]
      %v654 = vld [vmem:[%s6 + $0x30] sm:$0xf]
      %v655 = vld [vmem:[%s6 + $0x34] sm:$0xf]
      %v656 = vld [vmem:[%s6 + $0x38] sm:$0xf]
      %v657 = vld [vmem:[%s6 + $0x3c] sm:$0xf]
      %v658 = vld [vmem:[%s6 + $0x40] sm:$0xf]
      %v659 = vld [vmem:[%s6 + $0x44] sm:$0xf]
      %v660 = vld [vmem:[%s6 + $0x48] sm:$0xf]
      %v661 = vld [vmem:[%s6 + $0x4c] sm:$0xf]
      %v662 = vld [vmem:[%s6 + $0x50] sm:$0xf]
      %v663 = vld [vmem:[%s6 + $0x54] sm:$0xf]
      %v664 = vld [vmem:[%s6 + $0x58] sm:$0xf]
      %v665 = vld [vmem:[%s6 + $0x5c] sm:$0xf]
      %v666 = vld [vmem:[%s6 + $0x60] sm:$0xf]
      %v667 = vld [vmem:[%s6 + $0x64] sm:$0xf]
      %v668 = vld [vmem:[%s6 + $0x68] sm:$0xf]
      %v669 = vld [vmem:[%s6 + $0x6c] sm:$0xf]
      %v670 = vld [vmem:[%s6 + $0x70] sm:$0xf]
      %v671 = vld [vmem:[%s6 + $0x74] sm:$0xf]
      %v672 = vld [vmem:[%s6 + $0x78] sm:$0xf]
      %v673 = vld [vmem:[%s6 + $0x7c] sm:$0xf]
      %v674 = vld [vmem:[%s7] sm:$0xf]
      %v675 = vld [vmem:[%s7 + $0x4] sm:$0xf]
      %v676 = vld [vmem:[%s7 + $0x8] sm:$0xf]
      %v677 = vld [vmem:[%s7 + $0xc] sm:$0xf]
      %v678 = vld [vmem:[%s7 + $0x10] sm:$0xf]
      %v679 = vld [vmem:[%s7 + $0x14] sm:$0xf]
      %v680 = vld [vmem:[%s7 + $0x18] sm:$0xf]
      %v681 = vld [vmem:[%s7 + $0x1c] sm:$0xf]
      %v682 = vld [vmem:[%s7 + $0x20] sm:$0xf]
      %v683 = vld [vmem:[%s7 + $0x24] sm:$0xf]
      %v684 = vld [vmem:[%s7 + $0x28] sm:$0xf]
      %v685 = vld [vmem:[%s7 + $0x2c] sm:$0xf]
      %v686 = vld [vmem:[%s7 + $0x30] sm:$0xf]
      %v687 = vld [vmem:[%s7 + $0x34] sm:$0xf]
      %v688 = vld [vmem:[%s7 + $0x38] sm:$0xf]
      %v689 = vld [vmem:[%s7 + $0x3c] sm:$0xf]
      %v690 = vld [vmem:[%s7 + $0x40] sm:$0xf]
      %v691 = vld [vmem:[%s7 + $0x44] sm:$0xf]
      %v692 = vld [vmem:[%s7 + $0x48] sm:$0xf]
      %v693 = vld [vmem:[%s7 + $0x4c] sm:$0xf]
      %v694 = vld [vmem:[%s7 + $0x50] sm:$0xf]
      %v695 = vld [vmem:[%s7 + $0x54] sm:$0xf]
      %v696 = vld [vmem:[%s7 + $0x58] sm:$0xf]
      %v697 = vld [vmem:[%s7 + $0x5c] sm:$0xf]
      %v698 = vld [vmem:[%s7 + $0x60] sm:$0xf]
      %v699 = vld [vmem:[%s7 + $0x64] sm:$0xf]
      %v700 = vld [vmem:[%s7 + $0x68] sm:$0xf]
      %v701 = vld [vmem:[%s7 + $0x6c] sm:$0xf]
      %v702 = vld [vmem:[%s7 + $0x70] sm:$0xf]
      %v703 = vld [vmem:[%s7 + $0x74] sm:$0xf]
      %v704 = vld [vmem:[%s7 + $0x78] sm:$0xf]
      %v705 = vld [vmem:[%s7 + $0x7c] sm:$0xf]
      %v706 = vld [vmem:[%s8] sm:$0xf]
      %v707 = vld [vmem:[%s8 + $0x4] sm:$0xf]
      %v708 = vld [vmem:[%s8 + $0x8] sm:$0xf]
      %v709 = vld [vmem:[%s8 + $0xc] sm:$0xf]
      %v710 = vpack.c.bf16 %v609, %v609
      %v727 = vunpack.c.l.b16 %v610
      %v728 = vunpack.c.l.b16 %v611
      %v729 = vunpack.c.l.b16 %v612
      %v730 = vunpack.c.l.b16 %v613
      %v731 = vunpack.c.l.b16 %v614
      %v732 = vunpack.c.l.b16 %v615
      %v733 = vunpack.c.l.b16 %v616
      %v734 = vunpack.c.l.b16 %v617
      %v735 = vunpack.c.l.b16 %v618
      %v736 = vunpack.c.l.b16 %v619
      %v737 = vunpack.c.l.b16 %v620
      %v738 = vunpack.c.l.b16 %v621
      %v739 = vunpack.c.l.b16 %v622
      %v740 = vunpack.c.l.b16 %v623
      %v741 = vunpack.c.l.b16 %v624
      %v742 = vunpack.c.l.b16 %v625
      %v743 = vpack.c.b16 %v728, %v727
      %v744 = vpack.c.b16 %v730, %v729
      %v745 = vpack.c.b16 %v732, %v731
      %v746 = vpack.c.b16 %v734, %v733
      %v747 = vpack.c.b16 %v736, %v735
      %v748 = vpack.c.b16 %v738, %v737
      %v749 = vpack.c.b16 %v740, %v739
      %v750 = vpack.c.b16 %v742, %v741
      %759 = vmatpush.bf16.msra.mxu0 %v750
      %760 = vmatpush.bf16.msra.mxu0 %v749
      %761 = vmatpush.bf16.msra.mxu0 %v748
      %762 = vmatpush.bf16.msra.mxu0 %v747
      %763 = vmatpush.bf16.msra.mxu0 %v746
      %764 = vmatpush.bf16.msra.mxu0 %v745
      %765 = vmatpush.bf16.msra.mxu0 %v744
      %766 = vmatpush.bf16.msra.mxu0 %v743
      %767 = vmatmul.bf16.gmra.mxu0 %v710
      %v768 = vpop.f32.mrf.mxu0
      %v769 = vadd.f32 0.0, %v768
      %v770 = vpop.f32.mrf.mxu0
      %771 = vdwg.mxu0
      %v788 = vunpack.c.l.b16 %v626
      %v789 = vunpack.c.l.b16 %v627
      %v790 = vunpack.c.l.b16 %v628
      %v791 = vunpack.c.l.b16 %v629
      %v792 = vunpack.c.l.b16 %v630
      %v793 = vunpack.c.l.b16 %v631
      %v794 = vunpack.c.l.b16 %v632
      %v795 = vunpack.c.l.b16 %v633
      %v796 = vunpack.c.l.b16 %v634
      %v797 = vunpack.c.l.b16 %v635
      %v798 = vunpack.c.l.b16 %v636
      %v799 = vunpack.c.l.b16 %v637
      %v800 = vunpack.c.l.b16 %v638
      %v801 = vunpack.c.l.b16 %v639
      %v802 = vunpack.c.l.b16 %v640
      %v803 = vunpack.c.l.b16 %v641
      %v804 = vpack.c.b16 %v789, %v788
      %v805 = vpack.c.b16 %v791, %v790
      %v806 = vpack.c.b16 %v793, %v792
      %v807 = vpack.c.b16 %v795, %v794
      %v808 = vpack.c.b16 %v797, %v796
      %v809 = vpack.c.b16 %v799, %v798
      %v810 = vpack.c.b16 %v801, %v800
      %v811 = vpack.c.b16 %v803, %v802
      %820 = vmatpush.bf16.msra.mxu0 %v811
      %821 = vmatpush.bf16.msra.mxu0 %v810
      %822 = vmatpush.bf16.msra.mxu0 %v809
      %823 = vmatpush.bf16.msra.mxu0 %v808
      %824 = vmatpush.bf16.msra.mxu0 %v807
      %825 = vmatpush.bf16.msra.mxu0 %v806
      %826 = vmatpush.bf16.msra.mxu0 %v805
      %827 = vmatpush.bf16.msra.mxu0 %v804
      %828 = vmatmul.bf16.gmra.mxu0 %v710
      %v829 = vpop.f32.mrf.mxu0
      %v830 = vadd.f32 0.0, %v829
      %v831 = vpop.f32.mrf.mxu0
      %832 = vdwg.mxu0
      %v849 = vunpack.c.l.b16 %v642
      %v850 = vunpack.c.l.b16 %v643
      %v851 = vunpack.c.l.b16 %v644
      %v852 = vunpack.c.l.b16 %v645
      %v853 = vunpack.c.l.b16 %v646
      %v854 = vunpack.c.l.b16 %v647
      %v855 = vunpack.c.l.b16 %v648
      %v856 = vunpack.c.l.b16 %v649
      %v857 = vunpack.c.l.b16 %v650
      %v858 = vunpack.c.l.b16 %v651
      %v859 = vunpack.c.l.b16 %v652
      %v860 = vunpack.c.l.b16 %v653
      %v861 = vunpack.c.l.b16 %v654
      %v862 = vunpack.c.l.b16 %v655
      %v863 = vunpack.c.l.b16 %v656
      %v864 = vunpack.c.l.b16 %v657
      %v865 = vpack.c.b16 %v850, %v849
      %v866 = vpack.c.b16 %v852, %v851
      %v867 = vpack.c.b16 %v854, %v853
      %v868 = vpack.c.b16 %v856, %v855
      %v869 = vpack.c.b16 %v858, %v857
      %v870 = vpack.c.b16 %v860, %v859
      %v871 = vpack.c.b16 %v862, %v861
      %v872 = vpack.c.b16 %v864, %v863
      %881 = vmatpush.bf16.msra.mxu0 %v872
      %882 = vmatpush.bf16.msra.mxu0 %v871
      %883 = vmatpush.bf16.msra.mxu0 %v870
      %884 = vmatpush.bf16.msra.mxu0 %v869
      %885 = vmatpush.bf16.msra.mxu0 %v868
      %886 = vmatpush.bf16.msra.mxu0 %v867
      %887 = vmatpush.bf16.msra.mxu0 %v866
      %888 = vmatpush.bf16.msra.mxu0 %v865
      %889 = vmatmul.bf16.gmra.mxu0 %v710
      %v890 = vpop.f32.mrf.mxu0
      %v891 = vadd.f32 0.0, %v890
      %v892 = vpop.f32.mrf.mxu0
      %893 = vdwg.mxu0
      %v910 = vunpack.c.l.b16 %v658
      %v911 = vunpack.c.l.b16 %v659
      %v912 = vunpack.c.l.b16 %v660
      %v913 = vunpack.c.l.b16 %v661
      %v914 = vunpack.c.l.b16 %v662
      %v915 = vunpack.c.l.b16 %v663
      %v916 = vunpack.c.l.b16 %v664
      %v917 = vunpack.c.l.b16 %v665
      %v918 = vunpack.c.l.b16 %v666
      %v919 = vunpack.c.l.b16 %v667
      %v920 = vunpack.c.l.b16 %v668
      %v921 = vunpack.c.l.b16 %v669
      %v922 = vunpack.c.l.b16 %v670
      %v923 = vunpack.c.l.b16 %v671
      %v924 = vunpack.c.l.b16 %v672
      %v925 = vunpack.c.l.b16 %v673
      %v926 = vpack.c.b16 %v911, %v910
      %v927 = vpack.c.b16 %v913, %v912
      %v928 = vpack.c.b16 %v915, %v914
      %v929 = vpack.c.b16 %v917, %v916
      %v930 = vpack.c.b16 %v919, %v918
      %v931 = vpack.c.b16 %v921, %v920
      %v932 = vpack.c.b16 %v923, %v922
      %v933 = vpack.c.b16 %v925, %v924
      %942 = vmatpush.bf16.msra.mxu0 %v933
      %943 = vmatpush.bf16.msra.mxu0 %v932
      %944 = vmatpush.bf16.msra.mxu0 %v931
      %945 = vmatpush.bf16.msra.mxu0 %v930
      %946 = vmatpush.bf16.msra.mxu0 %v929
      %947 = vmatpush.bf16.msra.mxu0 %v928
      %948 = vmatpush.bf16.msra.mxu0 %v927
      %949 = vmatpush.bf16.msra.mxu0 %v926
      %950 = vmatmul.bf16.gmra.mxu0 %v710
      %v951 = vpop.f32.mrf.mxu0
      %v952 = vadd.f32 0.0, %v951
      %v953 = vpop.f32.mrf.mxu0
      %954 = vdwg.mxu0
      %v971 = vunpack.c.l.b16 %v674
      %v972 = vunpack.c.l.b16 %v675
      %v973 = vunpack.c.l.b16 %v676
      %v974 = vunpack.c.l.b16 %v677
      %v975 = vunpack.c.l.b16 %v678
      %v976 = vunpack.c.l.b16 %v679
      %v977 = vunpack.c.l.b16 %v680
      %v978 = vunpack.c.l.b16 %v681
      %v979 = vunpack.c.l.b16 %v682
      %v980 = vunpack.c.l.b16 %v683
      %v981 = vunpack.c.l.b16 %v684
      %v982 = vunpack.c.l.b16 %v685
      %v983 = vunpack.c.l.b16 %v686
      %v984 = vunpack.c.l.b16 %v687
      %v985 = vunpack.c.l.b16 %v688
      %v986 = vunpack.c.l.b16 %v689
      %v987 = vpack.c.b16 %v972, %v971
      %v988 = vpack.c.b16 %v974, %v973
      %v989 = vpack.c.b16 %v976, %v975
      %v990 = vpack.c.b16 %v978, %v977
      %v991 = vpack.c.b16 %v980, %v979
      %v992 = vpack.c.b16 %v982, %v981
      %v993 = vpack.c.b16 %v984, %v983
      %v994 = vpack.c.b16 %v986, %v985
      %1003 = vmatpush.bf16.msra.mxu0 %v994
      %1004 = vmatpush.bf16.msra.mxu0 %v993
      %1005 = vmatpush.bf16.msra.mxu0 %v992
      %1006 = vmatpush.bf16.msra.mxu0 %v991
      %1007 = vmatpush.bf16.msra.mxu0 %v990
      %1008 = vmatpush.bf16.msra.mxu0 %v989
      %1009 = vmatpush.bf16.msra.mxu0 %v988
      %1010 = vmatpush.bf16.msra.mxu0 %v987
      %1011 = vmatmul.bf16.gmra.mxu0 %v710
      %v1012 = vpop.f32.mrf.mxu0
      %v1013 = vadd.f32 0.0, %v1012
      %v1014 = vpop.f32.mrf.mxu0
      %1015 = vdwg.mxu0
      %v1032 = vunpack.c.l.b16 %v690
      %v1033 = vunpack.c.l.b16 %v691
      %v1034 = vunpack.c.l.b16 %v692
      %v1035 = vunpack.c.l.b16 %v693
      %v1036 = vunpack.c.l.b16 %v694
      %v1037 = vunpack.c.l.b16 %v695
      %v1038 = vunpack.c.l.b16 %v696
      %v1039 = vunpack.c.l.b16 %v697
      %v1040 = vunpack.c.l.b16 %v698
      %v1041 = vunpack.c.l.b16 %v699
      %v1042 = vunpack.c.l.b16 %v700
      %v1043 = vunpack.c.l.b16 %v701
      %v1044 = vunpack.c.l.b16 %v702
      %v1045 = vunpack.c.l.b16 %v703
      %v1046 = vunpack.c.l.b16 %v704
      %v1047 = vunpack.c.l.b16 %v705
      %v1048 = vpack.c.b16 %v1033, %v1032
      %v1049 = vpack.c.b16 %v1035, %v1034
      %v1050 = vpack.c.b16 %v1037, %v1036
      %v1051 = vpack.c.b16 %v1039, %v1038
      %v1052 = vpack.c.b16 %v1041, %v1040
      %v1053 = vpack.c.b16 %v1043, %v1042
      %v1054 = vpack.c.b16 %v1045, %v1044
      %v1055 = vpack.c.b16 %v1047, %v1046
      %1064 = vmatpush.bf16.msra.mxu0 %v1055
      %1065 = vmatpush.bf16.msra.mxu0 %v1054
      %1066 = vmatpush.bf16.msra.mxu0 %v1053
      %1067 = vmatpush.bf16.msra.mxu0 %v1052
      %1068 = vmatpush.bf16.msra.mxu0 %v1051
      %1069 = vmatpush.bf16.msra.mxu0 %v1050
      %1070 = vmatpush.bf16.msra.mxu0 %v1049
      %1071 = vmatpush.bf16.msra.mxu0 %v1048
      %1072 = vmatmul.bf16.gmra.mxu0 %v710
      %v1073 = vpop.f32.mrf.mxu0
      %v1074 = vadd.f32 0.0, %v1073
      %v1075 = vpop.f32.mrf.mxu0
      %1076 = vdwg.mxu0
      %v1077 = vpack.c.bf16 %v769, %v769
      %v1078 = vpack.c.bf16 %v830, %v830
      %v1079 = vpack.c.bf16 %v891, %v891
      %v1080 = vpack.c.bf16 %v952, %v952
      %vm1081 = vcmask 130048
      %v1083 = vsel %vm1081, %v1077, 0
      %v1086 = vsel %vm1081, %v1079, 0
      %1088 = vmatpush.bf16.xpose.msra.mxu0 0
      %1089 = vmatpush.bf16.xpose.msra.mxu0 0
      %1090 = vmatpush.bf16.xpose.msra.mxu0 0
      %1091 = vmatpush.bf16.xpose.msra.mxu0 0
      %1092 = vmatpush.bf16.xpose.msra.mxu0 0
      %1093 = vmatpush.bf16.xpose.msra.mxu0 0
      %1094 = vmatpush.bf16.xpose.msra.mxu0 0
      %1095 = vmatpush.bf16.xpose.msra.mxu0 %v1086
      %1096 = vmatmul.bf16.gmra.mxu0 %v1083
      %v1097 = vpop.f32.mrf.mxu0
      %v1098 = vadd.f32 %v587, %v1097
      %v1099 = vpop.f32.mrf.mxu0
      %1100 = vdwg.mxu0
      %v1102 = vsel %vm1081, %v1078, 0
      %v1105 = vsel %vm1081, %v1080, 0
      %1107 = vmatpush.bf16.xpose.msra.mxu0 0
      %1108 = vmatpush.bf16.xpose.msra.mxu0 0
      %1109 = vmatpush.bf16.xpose.msra.mxu0 0
      %1110 = vmatpush.bf16.xpose.msra.mxu0 0
      %1111 = vmatpush.bf16.xpose.msra.mxu0 0
      %1112 = vmatpush.bf16.xpose.msra.mxu0 0
      %1113 = vmatpush.bf16.xpose.msra.mxu0 0
      %1114 = vmatpush.bf16.xpose.msra.mxu0 %v1105
      %1115 = vmatmul.bf16.gmra.mxu0 %v1102
      %v1116 = vpop.f32.mrf.mxu0
      %v1117 = vadd.f32 %v588, %v1116
      %v1118 = vpop.f32.mrf.mxu0
      %1119 = vdwg.mxu0
      %vm1120 = vcmask 64512
      %v1121 = vsel %vm1120, %v1098, -inf
      %1122 = vmax.xlane.f32.xlu0 %v1121
      %v1123 = vpop.xlane.xlu0 %1122
      %v1124 = vsel %vm1120, %v1117, -inf
      %1125 = vmax.xlane.f32.xlu0 %v1124
      %v1126 = vpop.xlane.xlu0 %1125
      %v1127 = vsub.f32 %v1098, %v1123
      %v1128 = vsub.f32 %v1117, %v1126
      %v1129 = vmul.f32 %v1127, 1.442695
      %v1130 = vpow.pop %v1129
      %v1131 = vmul.f32 %v1128, 1.442695
      %v1132 = vpow.pop %v1131
      %v1133 = vsel %vm1120, %v1130, 0.0
      %1134 = vadd.xlane.f32.xlu0 %v1133
      %v1135 = vpop.xlane.xlu0 %1134
      %v1136 = vsel %vm1120, %v1132, 0.0
      %1137 = vadd.xlane.f32.xlu0 %v1136
      %v1138 = vpop.xlane.xlu0 %1137
      %v1139 = vrcp.pop %v1135
      %v1140 = vrcp.pop %v1138
      %v1141 = vmul.f32 %v1130, %v1139
      %v1142 = vmul.f32 %v1132, %v1140
      %v1143 = vpack.c.bf16 %v1141, %v1141
      %v1144 = vpack.c.bf16 %v1142, %v1142
      %v1145 = vpack.c.bf16 %v1013, %v1013
      %v1146 = vpack.c.bf16 %v1074, %v1074
      %v1148 = vsel %vm1120, %v1143, 0
      %vm1150 = vcmask 1043456
      %v1152 = vsel %vm1150, %v1145, 0
      %1154 = vmatpush.bf16.msra.mxu0 0
      %1155 = vmatpush.bf16.msra.mxu0 0
      %1156 = vmatpush.bf16.msra.mxu0 0
      %1157 = vmatpush.bf16.msra.mxu0 0
      %1158 = vmatpush.bf16.msra.mxu0 0
      %1159 = vmatpush.bf16.msra.mxu0 0
      %1160 = vmatpush.bf16.msra.mxu0 0
      %1161 = vmatpush.bf16.msra.mxu0 %v1152
      %1162 = vmatmul.bf16.gmra.mxu0 %v1148
      %v1163 = vpop.f32.mrf.mxu0
      %v1164 = vadd.f32 0.0, %v1163
      %v1165 = vpop.f32.mrf.mxu0
      %1166 = vdwg.mxu0
      %v1168 = vsel %vm1120, %v1144, 0
      %v1171 = vsel %vm1150, %v1146, 0
      %1173 = vmatpush.bf16.msra.mxu0 0
      %1174 = vmatpush.bf16.msra.mxu0 0
      %1175 = vmatpush.bf16.msra.mxu0 0
      %1176 = vmatpush.bf16.msra.mxu0 0
      %1177 = vmatpush.bf16.msra.mxu0 0
      %1178 = vmatpush.bf16.msra.mxu0 0
      %1179 = vmatpush.bf16.msra.mxu0 0
      %1180 = vmatpush.bf16.msra.mxu0 %v1171
      %1181 = vmatmul.bf16.gmra.mxu0 %v1168
      %v1182 = vpop.f32.mrf.mxu0
      %v1183 = vadd.f32 0.0, %v1182
      %v1184 = vpop.f32.mrf.mxu0
      %1185 = vdwg.mxu0
      %v1186 = vpack.c.bf16 %v1164, %v1164
      %v1187 = vpack.c.bf16 %v1183, %v1183
      %v1190 = vunpack.c.l.b16 %v706
      %v1191 = vunpack.c.l.b16 %v707
      %v1192 = vpack.c.b16 %v1191, %v1190
      %v1195 = vsel %vm1081, %v1186, 0
      %1197 = vmatpush.bf16.msra.mxu0 0
      %1198 = vmatpush.bf16.msra.mxu0 0
      %1199 = vmatpush.bf16.msra.mxu0 0
      %1200 = vmatpush.bf16.msra.mxu0 0
      %1201 = vmatpush.bf16.msra.mxu0 0
      %1202 = vmatpush.bf16.msra.mxu0 0
      %1203 = vmatpush.bf16.msra.mxu0 0
      %1204 = vmatpush.bf16.msra.mxu0 %v1192
      %1205 = vmatmul.bf16.gmra.mxu0 %v1195
      %v1206 = vpop.f32.mrf.mxu0
      %v1207 = vadd.f32 0.0, %v1206
      %v1208 = vpop.f32.mrf.mxu0
      %1209 = vdwg.mxu0
      %v1212 = vunpack.c.l.b16 %v708
      %v1213 = vunpack.c.l.b16 %v709
      %v1214 = vpack.c.b16 %v1213, %v1212
      %v1217 = vsel %vm1081, %v1187, 0
      %1219 = vmatpush.bf16.msra.mxu0 0
      %1220 = vmatpush.bf16.msra.mxu0 0
      %1221 = vmatpush.bf16.msra.mxu0 0
      %1222 = vmatpush.bf16.msra.mxu0 0
      %1223 = vmatpush.bf16.msra.mxu0 0
      %1224 = vmatpush.bf16.msra.mxu0 0
      %1225 = vmatpush.bf16.msra.mxu0 0
      %1226 = vmatpush.bf16.msra.mxu0 %v1214
      %1227 = vmatmul.bf16.gmra.mxu0 %v1217
      %v1228 = vpop.f32.mrf.mxu0
      %v1229 = vadd.f32 0.0, %v1228
      %v1230 = vpop.f32.mrf.mxu0
      %1231 = vdwg.mxu0
      %v1232 = vadd.f32 %v1207, %v1229
      %v1233 = vadd.f32 %v577, %v1232
      %v1234 = vld [vmem:[%s9] sm:$0x1]
      %v1235 = vmul.f32 %v1233, %v1233
      %1236 = vadd.xlane.f32.xlu0 %v1235
      %v1237 = vpop.xlane.xlu0 %1236
      %v1238 = vmul.f32 %v1237, 0.03125
      %v1239 = vadd.f32 %v1238, 1e-06
      %v1240 = vrsqrt.pop %v1239
      %v1241 = vmul.f32 %v1240, %v1239
      %v1242 = vmul.f32 %v1241, %v1240
      %v1243 = vmul.f32 0.5, %v1242
      %v1244 = vsub.f32 1.5, %v1243
      %v1245 = vmul.f32 %v1240, %v1244
      %vm1246 = vweird.f32 %v1239
      %vm1247 = vweird.f32 %v1240
      %vm1248 = vmor %vm1246, %vm1247
      %v1249 = vsel %vm1248, %v1240, %v1245
      %v1250 = vmul.f32 %v1233, %v1249
      %v1252 = vperm.slane %v1234, 0
      %v1254 = vmul.f32 %v1250, %v1252
      %v1255 = vld [vmem:[%s10] sm:$0xf]
      %v1256 = vld [vmem:[%s10 + $0x4] sm:$0xf]
      %v1257 = vld [vmem:[%s10 + $0x8] sm:$0xf]
      %v1258 = vld [vmem:[%s10 + $0xc] sm:$0xf]
      %v1259 = vld [vmem:[%s10 + $0x10] sm:$0xf]
      %v1260 = vld [vmem:[%s10 + $0x14] sm:$0xf]
      %v1261 = vld [vmem:[%s10 + $0x18] sm:$0xf]
      %v1262 = vld [vmem:[%s10 + $0x1c] sm:$0xf]
      %v1263 = vld [vmem:[%s10 + $0x20] sm:$0xf]
      %v1264 = vld [vmem:[%s10 + $0x24] sm:$0xf]
      %v1265 = vld [vmem:[%s10 + $0x28] sm:$0xf]
      %v1266 = vld [vmem:[%s10 + $0x2c] sm:$0xf]
      %v1267 = vld [vmem:[%s10 + $0x30] sm:$0xf]
      %v1268 = vld [vmem:[%s10 + $0x34] sm:$0xf]
      %v1269 = vld [vmem:[%s10 + $0x38] sm:$0xf]
      %v1270 = vld [vmem:[%s10 + $0x3c] sm:$0xf]
      %v1271 = vld [vmem:[%s10 + $0x40] sm:$0xf]
      %v1272 = vld [vmem:[%s10 + $0x44] sm:$0xf]
      %v1273 = vld [vmem:[%s10 + $0x48] sm:$0xf]
      %v1274 = vld [vmem:[%s10 + $0x4c] sm:$0xf]
      %v1275 = vld [vmem:[%s10 + $0x50] sm:$0xf]
      %v1276 = vld [vmem:[%s10 + $0x54] sm:$0xf]
      %v1277 = vld [vmem:[%s10 + $0x58] sm:$0xf]
      %v1278 = vld [vmem:[%s10 + $0x5c] sm:$0xf]
      %v1279 = vld [vmem:[%s10 + $0x60] sm:$0xf]
      %v1280 = vld [vmem:[%s10 + $0x64] sm:$0xf]
      %v1281 = vld [vmem:[%s10 + $0x68] sm:$0xf]
      %v1282 = vld [vmem:[%s10 + $0x6c] sm:$0xf]
      %v1283 = vld [vmem:[%s10 + $0x70] sm:$0xf]
      %v1284 = vld [vmem:[%s10 + $0x74] sm:$0xf]
      %v1285 = vld [vmem:[%s10 + $0x78] sm:$0xf]
      %v1286 = vld [vmem:[%s10 + $0x7c] sm:$0xf]
      %v1287 = vld [vmem:[%s11] sm:$0xf]
      %v1288 = vld [vmem:[%s11 + $0x4] sm:$0xf]
      %v1289 = vld [vmem:[%s11 + $0x8] sm:$0xf]
      %v1290 = vld [vmem:[%s11 + $0xc] sm:$0xf]
      %v1291 = vld [vmem:[%s11 + $0x10] sm:$0xf]
      %v1292 = vld [vmem:[%s11 + $0x14] sm:$0xf]
      %v1293 = vld [vmem:[%s11 + $0x18] sm:$0xf]
      %v1294 = vld [vmem:[%s11 + $0x1c] sm:$0xf]
      %v1295 = vld [vmem:[%s11 + $0x20] sm:$0xf]
      %v1296 = vld [vmem:[%s11 + $0x24] sm:$0xf]
      %v1297 = vld [vmem:[%s11 + $0x28] sm:$0xf]
      %v1298 = vld [vmem:[%s11 + $0x2c] sm:$0xf]
      %v1299 = vld [vmem:[%s11 + $0x30] sm:$0xf]
      %v1300 = vld [vmem:[%s11 + $0x34] sm:$0xf]
      %v1301 = vld [vmem:[%s11 + $0x38] sm:$0xf]
      %v1302 = vld [vmem:[%s11 + $0x3c] sm:$0xf]
      %v1303 = vld [vmem:[%s11 + $0x40] sm:$0xf]
      %v1304 = vld [vmem:[%s11 + $0x44] sm:$0xf]
      %v1305 = vld [vmem:[%s11 + $0x48] sm:$0xf]
      %v1306 = vld [vmem:[%s11 + $0x4c] sm:$0xf]
      %v1307 = vld [vmem:[%s11 + $0x50] sm:$0xf]
      %v1308 = vld [vmem:[%s11 + $0x54] sm:$0xf]
      %v1309 = vld [vmem:[%s11 + $0x58] sm:$0xf]
      %v1310 = vld [vmem:[%s11 + $0x5c] sm:$0xf]
      %v1311 = vld [vmem:[%s11 + $0x60] sm:$0xf]
      %v1312 = vld [vmem:[%s11 + $0x64] sm:$0xf]
      %v1313 = vld [vmem:[%s11 + $0x68] sm:$0xf]
      %v1314 = vld [vmem:[%s11 + $0x6c] sm:$0xf]
      %v1315 = vld [vmem:[%s11 + $0x70] sm:$0xf]
      %v1316 = vld [vmem:[%s11 + $0x74] sm:$0xf]
      %v1317 = vld [vmem:[%s11 + $0x78] sm:$0xf]
      %v1318 = vld [vmem:[%s11 + $0x7c] sm:$0xf]
      %v1319 = vld [vmem:[%s12] sm:$0xf]
      %v1320 = vld [vmem:[%s12 + $0x4] sm:$0xf]
      %v1321 = vld [vmem:[%s12 + $0x8] sm:$0xf]
      %v1322 = vld [vmem:[%s12 + $0xc] sm:$0xf]
      %v1323 = vld [vmem:[%s12 + $0x10] sm:$0xf]
      %v1324 = vld [vmem:[%s12 + $0x14] sm:$0xf]
      %v1325 = vld [vmem:[%s12 + $0x18] sm:$0xf]
      %v1326 = vld [vmem:[%s12 + $0x1c] sm:$0xf]
      %v1327 = vld [vmem:[%s12 + $0x20] sm:$0xf]
      %v1328 = vld [vmem:[%s12 + $0x24] sm:$0xf]
      %v1329 = vld [vmem:[%s12 + $0x28] sm:$0xf]
      %v1330 = vld [vmem:[%s12 + $0x2c] sm:$0xf]
      %v1331 = vld [vmem:[%s12 + $0x30] sm:$0xf]
      %v1332 = vld [vmem:[%s12 + $0x34] sm:$0xf]
      %v1333 = vld [vmem:[%s12 + $0x38] sm:$0xf]
      %v1334 = vld [vmem:[%s12 + $0x3c] sm:$0xf]
      %v1335 = vld [vmem:[%s12 + $0x40] sm:$0xf]
      %v1336 = vld [vmem:[%s12 + $0x44] sm:$0xf]
      %v1337 = vld [vmem:[%s12 + $0x48] sm:$0xf]
      %v1338 = vld [vmem:[%s12 + $0x4c] sm:$0xf]
      %v1339 = vld [vmem:[%s12 + $0x50] sm:$0xf]
      %v1340 = vld [vmem:[%s12 + $0x54] sm:$0xf]
      %v1341 = vld [vmem:[%s12 + $0x58] sm:$0xf]
      %v1342 = vld [vmem:[%s12 + $0x5c] sm:$0xf]
      %v1343 = vld [vmem:[%s12 + $0x60] sm:$0xf]
      %v1344 = vld [vmem:[%s12 + $0x64] sm:$0xf]
      %v1345 = vld [vmem:[%s12 + $0x68] sm:$0xf]
      %v1346 = vld [vmem:[%s12 + $0x6c] sm:$0xf]
      %v1347 = vld [vmem:[%s12 + $0x70] sm:$0xf]
      %v1348 = vld [vmem:[%s12 + $0x74] sm:$0xf]
      %v1349 = vld [vmem:[%s12 + $0x78] sm:$0xf]
      %v1350 = vld [vmem:[%s12 + $0x7c] sm:$0xf]
      %v1351 = vld [vmem:[%s13] sm:$0xf]
      %v1352 = vld [vmem:[%s13 + $0x4] sm:$0xf]
      %v1353 = vld [vmem:[%s13 + $0x8] sm:$0xf]
      %v1354 = vld [vmem:[%s13 + $0xc] sm:$0xf]
      %v1355 = vld [vmem:[%s570] sm:$0x1]
      %v1356 = vpack.c.bf16 %v1254, %v1254
      %v1373 = vunpack.c.l.b16 %v1255
      %v1374 = vunpack.c.l.b16 %v1256
      %v1375 = vunpack.c.l.b16 %v1257
      %v1376 = vunpack.c.l.b16 %v1258
      %v1377 = vunpack.c.l.b16 %v1259
      %v1378 = vunpack.c.l.b16 %v1260
      %v1379 = vunpack.c.l.b16 %v1261
      %v1380 = vunpack.c.l.b16 %v1262
      %v1381 = vunpack.c.l.b16 %v1263
      %v1382 = vunpack.c.l.b16 %v1264
      %v1383 = vunpack.c.l.b16 %v1265
      %v1384 = vunpack.c.l.b16 %v1266
      %v1385 = vunpack.c.l.b16 %v1267
      %v1386 = vunpack.c.l.b16 %v1268
      %v1387 = vunpack.c.l.b16 %v1269
      %v1388 = vunpack.c.l.b16 %v1270
      %v1389 = vpack.c.b16 %v1374, %v1373
      %v1390 = vpack.c.b16 %v1376, %v1375
      %v1391 = vpack.c.b16 %v1378, %v1377
      %v1392 = vpack.c.b16 %v1380, %v1379
      %v1393 = vpack.c.b16 %v1382, %v1381
      %v1394 = vpack.c.b16 %v1384, %v1383
      %v1395 = vpack.c.b16 %v1386, %v1385
      %v1396 = vpack.c.b16 %v1388, %v1387
      %1405 = vmatpush.bf16.msra.mxu0 %v1396
      %1406 = vmatpush.bf16.msra.mxu0 %v1395
      %1407 = vmatpush.bf16.msra.mxu0 %v1394
      %1408 = vmatpush.bf16.msra.mxu0 %v1393
      %1409 = vmatpush.bf16.msra.mxu0 %v1392
      %1410 = vmatpush.bf16.msra.mxu0 %v1391
      %1411 = vmatpush.bf16.msra.mxu0 %v1390
      %1412 = vmatpush.bf16.msra.mxu0 %v1389
      %1413 = vmatmul.bf16.gmra.mxu0 %v1356
      %v1414 = vpop.f32.mrf.mxu0
      %v1415 = vadd.f32 0.0, %v1414
      %v1416 = vpop.f32.mrf.mxu0
      %1417 = vdwg.mxu0
      %v1434 = vunpack.c.l.b16 %v1271
      %v1435 = vunpack.c.l.b16 %v1272
      %v1436 = vunpack.c.l.b16 %v1273
      %v1437 = vunpack.c.l.b16 %v1274
      %v1438 = vunpack.c.l.b16 %v1275
      %v1439 = vunpack.c.l.b16 %v1276
      %v1440 = vunpack.c.l.b16 %v1277
      %v1441 = vunpack.c.l.b16 %v1278
      %v1442 = vunpack.c.l.b16 %v1279
      %v1443 = vunpack.c.l.b16 %v1280
      %v1444 = vunpack.c.l.b16 %v1281
      %v1445 = vunpack.c.l.b16 %v1282
      %v1446 = vunpack.c.l.b16 %v1283
      %v1447 = vunpack.c.l.b16 %v1284
      %v1448 = vunpack.c.l.b16 %v1285
      %v1449 = vunpack.c.l.b16 %v1286
      %v1450 = vpack.c.b16 %v1435, %v1434
      %v1451 = vpack.c.b16 %v1437, %v1436
      %v1452 = vpack.c.b16 %v1439, %v1438
      %v1453 = vpack.c.b16 %v1441, %v1440
      %v1454 = vpack.c.b16 %v1443, %v1442
      %v1455 = vpack.c.b16 %v1445, %v1444
      %v1456 = vpack.c.b16 %v1447, %v1446
      %v1457 = vpack.c.b16 %v1449, %v1448
      %1466 = vmatpush.bf16.msra.mxu0 %v1457
      %1467 = vmatpush.bf16.msra.mxu0 %v1456
      %1468 = vmatpush.bf16.msra.mxu0 %v1455
      %1469 = vmatpush.bf16.msra.mxu0 %v1454
      %1470 = vmatpush.bf16.msra.mxu0 %v1453
      %1471 = vmatpush.bf16.msra.mxu0 %v1452
      %1472 = vmatpush.bf16.msra.mxu0 %v1451
      %1473 = vmatpush.bf16.msra.mxu0 %v1450
      %1474 = vmatmul.bf16.gmra.mxu0 %v1356
      %v1475 = vpop.f32.mrf.mxu0
      %v1476 = vadd.f32 0.0, %v1475
      %v1477 = vpop.f32.mrf.mxu0
      %1478 = vdwg.mxu0
      %v1495 = vunpack.c.l.b16 %v1287
      %v1496 = vunpack.c.l.b16 %v1288
      %v1497 = vunpack.c.l.b16 %v1289
      %v1498 = vunpack.c.l.b16 %v1290
      %v1499 = vunpack.c.l.b16 %v1291
      %v1500 = vunpack.c.l.b16 %v1292
      %v1501 = vunpack.c.l.b16 %v1293
      %v1502 = vunpack.c.l.b16 %v1294
      %v1503 = vunpack.c.l.b16 %v1295
      %v1504 = vunpack.c.l.b16 %v1296
      %v1505 = vunpack.c.l.b16 %v1297
      %v1506 = vunpack.c.l.b16 %v1298
      %v1507 = vunpack.c.l.b16 %v1299
      %v1508 = vunpack.c.l.b16 %v1300
      %v1509 = vunpack.c.l.b16 %v1301
      %v1510 = vunpack.c.l.b16 %v1302
      %v1511 = vpack.c.b16 %v1496, %v1495
      %v1512 = vpack.c.b16 %v1498, %v1497
      %v1513 = vpack.c.b16 %v1500, %v1499
      %v1514 = vpack.c.b16 %v1502, %v1501
      %v1515 = vpack.c.b16 %v1504, %v1503
      %v1516 = vpack.c.b16 %v1506, %v1505
      %v1517 = vpack.c.b16 %v1508, %v1507
      %v1518 = vpack.c.b16 %v1510, %v1509
      %1527 = vmatpush.bf16.msra.mxu0 %v1518
      %1528 = vmatpush.bf16.msra.mxu0 %v1517
      %1529 = vmatpush.bf16.msra.mxu0 %v1516
      %1530 = vmatpush.bf16.msra.mxu0 %v1515
      %1531 = vmatpush.bf16.msra.mxu0 %v1514
      %1532 = vmatpush.bf16.msra.mxu0 %v1513
      %1533 = vmatpush.bf16.msra.mxu0 %v1512
      %1534 = vmatpush.bf16.msra.mxu0 %v1511
      %1535 = vmatmul.bf16.gmra.mxu0 %v578
      %v1536 = vpop.f32.mrf.mxu0
      %v1537 = vadd.f32 0.0, %v1536
      %v1538 = vpop.f32.mrf.mxu0
      %1539 = vdwg.mxu0
      %v1556 = vunpack.c.l.b16 %v1303
      %v1557 = vunpack.c.l.b16 %v1304
      %v1558 = vunpack.c.l.b16 %v1305
      %v1559 = vunpack.c.l.b16 %v1306
      %v1560 = vunpack.c.l.b16 %v1307
      %v1561 = vunpack.c.l.b16 %v1308
      %v1562 = vunpack.c.l.b16 %v1309
      %v1563 = vunpack.c.l.b16 %v1310
      %v1564 = vunpack.c.l.b16 %v1311
      %v1565 = vunpack.c.l.b16 %v1312
      %v1566 = vunpack.c.l.b16 %v1313
      %v1567 = vunpack.c.l.b16 %v1314
      %v1568 = vunpack.c.l.b16 %v1315
      %v1569 = vunpack.c.l.b16 %v1316
      %v1570 = vunpack.c.l.b16 %v1317
      %v1571 = vunpack.c.l.b16 %v1318
      %v1572 = vpack.c.b16 %v1557, %v1556
      %v1573 = vpack.c.b16 %v1559, %v1558
      %v1574 = vpack.c.b16 %v1561, %v1560
      %v1575 = vpack.c.b16 %v1563, %v1562
      %v1576 = vpack.c.b16 %v1565, %v1564
      %v1577 = vpack.c.b16 %v1567, %v1566
      %v1578 = vpack.c.b16 %v1569, %v1568
      %v1579 = vpack.c.b16 %v1571, %v1570
      %1588 = vmatpush.bf16.msra.mxu0 %v1579
      %1589 = vmatpush.bf16.msra.mxu0 %v1578
      %1590 = vmatpush.bf16.msra.mxu0 %v1577
      %1591 = vmatpush.bf16.msra.mxu0 %v1576
      %1592 = vmatpush.bf16.msra.mxu0 %v1575
      %1593 = vmatpush.bf16.msra.mxu0 %v1574
      %1594 = vmatpush.bf16.msra.mxu0 %v1573
      %1595 = vmatpush.bf16.msra.mxu0 %v1572
      %1596 = vmatmul.bf16.gmra.mxu0 %v578
      %v1597 = vpop.f32.mrf.mxu0
      %v1598 = vadd.f32 0.0, %v1597
      %v1599 = vpop.f32.mrf.mxu0
      %1600 = vdwg.mxu0
      %v1617 = vunpack.c.l.b16 %v1319
      %v1618 = vunpack.c.l.b16 %v1320
      %v1619 = vunpack.c.l.b16 %v1321
      %v1620 = vunpack.c.l.b16 %v1322
      %v1621 = vunpack.c.l.b16 %v1323
      %v1622 = vunpack.c.l.b16 %v1324
      %v1623 = vunpack.c.l.b16 %v1325
      %v1624 = vunpack.c.l.b16 %v1326
      %v1625 = vunpack.c.l.b16 %v1327
      %v1626 = vunpack.c.l.b16 %v1328
      %v1627 = vunpack.c.l.b16 %v1329
      %v1628 = vunpack.c.l.b16 %v1330
      %v1629 = vunpack.c.l.b16 %v1331
      %v1630 = vunpack.c.l.b16 %v1332
      %v1631 = vunpack.c.l.b16 %v1333
      %v1632 = vunpack.c.l.b16 %v1334
      %v1633 = vpack.c.b16 %v1618, %v1617
      %v1634 = vpack.c.b16 %v1620, %v1619
      %v1635 = vpack.c.b16 %v1622, %v1621
      %v1636 = vpack.c.b16 %v1624, %v1623
      %v1637 = vpack.c.b16 %v1626, %v1625
      %v1638 = vpack.c.b16 %v1628, %v1627
      %v1639 = vpack.c.b16 %v1630, %v1629
      %v1640 = vpack.c.b16 %v1632, %v1631
      %1649 = vmatpush.bf16.msra.mxu0 %v1640
      %1650 = vmatpush.bf16.msra.mxu0 %v1639
      %1651 = vmatpush.bf16.msra.mxu0 %v1638
      %1652 = vmatpush.bf16.msra.mxu0 %v1637
      %1653 = vmatpush.bf16.msra.mxu0 %v1636
      %1654 = vmatpush.bf16.msra.mxu0 %v1635
      %1655 = vmatpush.bf16.msra.mxu0 %v1634
      %1656 = vmatpush.bf16.msra.mxu0 %v1633
      %1657 = vmatmul.bf16.gmra.mxu0 %v578
      %v1658 = vpop.f32.mrf.mxu0
      %v1659 = vadd.f32 0.0, %v1658
      %v1660 = vpop.f32.mrf.mxu0
      %1661 = vdwg.mxu0
      %v1678 = vunpack.c.l.b16 %v1335
      %v1679 = vunpack.c.l.b16 %v1336
      %v1680 = vunpack.c.l.b16 %v1337
      %v1681 = vunpack.c.l.b16 %v1338
      %v1682 = vunpack.c.l.b16 %v1339
      %v1683 = vunpack.c.l.b16 %v1340
      %v1684 = vunpack.c.l.b16 %v1341
      %v1685 = vunpack.c.l.b16 %v1342
      %v1686 = vunpack.c.l.b16 %v1343
      %v1687 = vunpack.c.l.b16 %v1344
      %v1688 = vunpack.c.l.b16 %v1345
      %v1689 = vunpack.c.l.b16 %v1346
      %v1690 = vunpack.c.l.b16 %v1347
      %v1691 = vunpack.c.l.b16 %v1348
      %v1692 = vunpack.c.l.b16 %v1349
      %v1693 = vunpack.c.l.b16 %v1350
      %v1694 = vpack.c.b16 %v1679, %v1678
      %v1695 = vpack.c.b16 %v1681, %v1680
      %v1696 = vpack.c.b16 %v1683, %v1682
      %v1697 = vpack.c.b16 %v1685, %v1684
      %v1698 = vpack.c.b16 %v1687, %v1686
      %v1699 = vpack.c.b16 %v1689, %v1688
      %v1700 = vpack.c.b16 %v1691, %v1690
      %v1701 = vpack.c.b16 %v1693, %v1692
      %1710 = vmatpush.bf16.msra.mxu0 %v1701
      %1711 = vmatpush.bf16.msra.mxu0 %v1700
      %1712 = vmatpush.bf16.msra.mxu0 %v1699
      %1713 = vmatpush.bf16.msra.mxu0 %v1698
      %1714 = vmatpush.bf16.msra.mxu0 %v1697
      %1715 = vmatpush.bf16.msra.mxu0 %v1696
      %1716 = vmatpush.bf16.msra.mxu0 %v1695
      %1717 = vmatpush.bf16.msra.mxu0 %v1694
      %1718 = vmatmul.bf16.gmra.mxu0 %v578
      %v1719 = vpop.f32.mrf.mxu0
      %v1720 = vadd.f32 0.0, %v1719
      %v1721 = vpop.f32.mrf.mxu0
      %1722 = vdwg.mxu0
      %v1723 = vpack.c.bf16 %v1415, %v1415
      %v1724 = vpack.c.bf16 %v1476, %v1476
      %v1725 = vpack.c.bf16 %v1537, %v1537
      %v1726 = vpack.c.bf16 %v1598, %v1598
      %v1728 = vperm.slane %v1355, 0
      %v1731 = vsel %vm1081, %v1723, 0
      %v1734 = vsel %vm1081, %v1725, 0
      %1736 = vmatpush.bf16.xpose.msra.mxu0 0
      %1737 = vmatpush.bf16.xpose.msra.mxu0 0
      %1738 = vmatpush.bf16.xpose.msra.mxu0 0
      %1739 = vmatpush.bf16.xpose.msra.mxu0 0
      %1740 = vmatpush.bf16.xpose.msra.mxu0 0
      %1741 = vmatpush.bf16.xpose.msra.mxu0 0
      %1742 = vmatpush.bf16.xpose.msra.mxu0 0
      %1743 = vmatpush.bf16.xpose.msra.mxu0 %v1734
      %1744 = vmatmul.bf16.gmra.mxu0 %v1731
      %v1745 = vpop.f32.mrf.mxu0
      %v1746 = vadd.f32 %v1728, %v1745
      %v1747 = vpop.f32.mrf.mxu0
      %1748 = vdwg.mxu0
      %v1750 = vsel %vm1081, %v1724, 0
      %v1753 = vsel %vm1081, %v1726, 0
      %1755 = vmatpush.bf16.xpose.msra.mxu0 0
      %1756 = vmatpush.bf16.xpose.msra.mxu0 0
      %1757 = vmatpush.bf16.xpose.msra.mxu0 0
      %1758 = vmatpush.bf16.xpose.msra.mxu0 0
      %1759 = vmatpush.bf16.xpose.msra.mxu0 0
      %1760 = vmatpush.bf16.xpose.msra.mxu0 0
      %1761 = vmatpush.bf16.xpose.msra.mxu0 0
      %1762 = vmatpush.bf16.xpose.msra.mxu0 %v1753
      %1763 = vmatmul.bf16.gmra.mxu0 %v1750
      %v1764 = vpop.f32.mrf.mxu0
      %v1765 = vadd.f32 %v1728, %v1764
      %v1766 = vpop.f32.mrf.mxu0
      %1767 = vdwg.mxu0
      %v1768 = vsel %vm1120, %v1746, -inf
      %1769 = vmax.xlane.f32.xlu0 %v1768
      %v1770 = vpop.xlane.xlu0 %1769
      %v1771 = vsel %vm1120, %v1765, -inf
      %1772 = vmax.xlane.f32.xlu0 %v1771
      %v1773 = vpop.xlane.xlu0 %1772
      %v1774 = vsub.f32 %v1746, %v1770
      %v1775 = vsub.f32 %v1765, %v1773
      %v1776 = vmul.f32 %v1774, 1.442695
      %v1777 = vpow.pop %v1776
      %v1778 = vmul.f32 %v1775, 1.442695
      %v1779 = vpow.pop %v1778
      %v1780 = vsel %vm1120, %v1777, 0.0
      %1781 = vadd.xlane.f32.xlu0 %v1780
      %v1782 = vpop.xlane.xlu0 %1781
      %v1783 = vsel %vm1120, %v1779, 0.0
      %1784 = vadd.xlane.f32.xlu0 %v1783
      %v1785 = vpop.xlane.xlu0 %1784
      %v1786 = vrcp.pop %v1782
      %v1787 = vrcp.pop %v1785
      %v1788 = vmul.f32 %v1777, %v1786
      %v1789 = vmul.f32 %v1779, %v1787
      %v1790 = vpack.c.bf16 %v1788, %v1788
      %v1791 = vpack.c.bf16 %v1789, %v1789
      %v1792 = vpack.c.bf16 %v1659, %v1659
      %v1793 = vpack.c.bf16 %v1720, %v1720
      %v1795 = vsel %vm1120, %v1790, 0
      %v1798 = vsel %vm1150, %v1792, 0
      %1800 = vmatpush.bf16.msra.mxu0 0
      %1801 = vmatpush.bf16.msra.mxu0 0
      %1802 = vmatpush.bf16.msra.mxu0 0
      %1803 = vmatpush.bf16.msra.mxu0 0
      %1804 = vmatpush.bf16.msra.mxu0 0
      %1805 = vmatpush.bf16.msra.mxu0 0
      %1806 = vmatpush.bf16.msra.mxu0 0
      %1807 = vmatpush.bf16.msra.mxu0 %v1798
      %1808 = vmatmul.bf16.gmra.mxu0 %v1795
      %v1809 = vpop.f32.mrf.mxu0
      %v1810 = vadd.f32 0.0, %v1809
      %v1811 = vpop.f32.mrf.mxu0
      %1812 = vdwg.mxu0
      %v1814 = vsel %vm1120, %v1791, 0
      %v1817 = vsel %vm1150, %v1793, 0
      %1819 = vmatpush.bf16.msra.mxu0 0
      %1820 = vmatpush.bf16.msra.mxu0 0
      %1821 = vmatpush.bf16.msra.mxu0 0
      %1822 = vmatpush.bf16.msra.mxu0 0
      %1823 = vmatpush.bf16.msra.mxu0 0
      %1824 = vmatpush.bf16.msra.mxu0 0
      %1825 = vmatpush.bf16.msra.mxu0 0
      %1826 = vmatpush.bf16.msra.mxu0 %v1817
      %1827 = vmatmul.bf16.gmra.mxu0 %v1814
      %v1828 = vpop.f32.mrf.mxu0
      %v1829 = vadd.f32 0.0, %v1828
      %v1830 = vpop.f32.mrf.mxu0
      %1831 = vdwg.mxu0
      %v1832 = vpack.c.bf16 %v1810, %v1810
      %v1833 = vpack.c.bf16 %v1829, %v1829
      %v1836 = vunpack.c.l.b16 %v1351
      %v1837 = vunpack.c.l.b16 %v1352
      %v1838 = vpack.c.b16 %v1837, %v1836
      %v1841 = vsel %vm1081, %v1832, 0
      %1843 = vmatpush.bf16.msra.mxu0 0
      %1844 = vmatpush.bf16.msra.mxu0 0
      %1845 = vmatpush.bf16.msra.mxu0 0
      %1846 = vmatpush.bf16.msra.mxu0 0
      %1847 = vmatpush.bf16.msra.mxu0 0
      %1848 = vmatpush.bf16.msra.mxu0 0
      %1849 = vmatpush.bf16.msra.mxu0 0
      %1850 = vmatpush.bf16.msra.mxu0 %v1838
      %1851 = vmatmul.bf16.gmra.mxu0 %v1841
      %v1852 = vpop.f32.mrf.mxu0
      %v1853 = vadd.f32 0.0, %v1852
      %v1854 = vpop.f32.mrf.mxu0
      %1855 = vdwg.mxu0
      %v1858 = vunpack.c.l.b16 %v1353
      %v1859 = vunpack.c.l.b16 %v1354
      %v1860 = vpack.c.b16 %v1859, %v1858
      %v1863 = vsel %vm1081, %v1833, 0
      %1865 = vmatpush.bf16.msra.mxu0 0
      %1866 = vmatpush.bf16.msra.mxu0 0
      %1867 = vmatpush.bf16.msra.mxu0 0
      %1868 = vmatpush.bf16.msra.mxu0 0
      %1869 = vmatpush.bf16.msra.mxu0 0
      %1870 = vmatpush.bf16.msra.mxu0 0
      %1871 = vmatpush.bf16.msra.mxu0 0
      %1872 = vmatpush.bf16.msra.mxu0 %v1860
      %1873 = vmatmul.bf16.gmra.mxu0 %v1863
      %v1874 = vpop.f32.mrf.mxu0
      %v1875 = vadd.f32 0.0, %v1874
      %v1876 = vpop.f32.mrf.mxu0
      %1877 = vdwg.mxu0
      %v1878 = vadd.f32 %v1853, %v1875
      %v1879 = vadd.f32 %v1233, %v1878
      %v1880 = vld [vmem:[%s14] sm:$0x1]
      %v1881 = vmul.f32 %v1879, %v1879
      %1882 = vadd.xlane.f32.xlu0 %v1881
      %v1883 = vpop.xlane.xlu0 %1882
      %v1884 = vmul.f32 %v1883, 0.03125
      %v1885 = vadd.f32 %v1884, 1e-06
      %v1886 = vrsqrt.pop %v1885
      %v1887 = vmul.f32 %v1886, %v1885
      %v1888 = vmul.f32 %v1887, %v1886
      %v1889 = vmul.f32 0.5, %v1888
      %v1890 = vsub.f32 1.5, %v1889
      %v1891 = vmul.f32 %v1886, %v1890
      %vm1892 = vweird.f32 %v1885
      %vm1893 = vweird.f32 %v1886
      %vm1894 = vmor %vm1892, %vm1893
      %v1895 = vsel %vm1894, %v1886, %v1891
      %v1896 = vmul.f32 %v1879, %v1895
      %v1898 = vperm.slane %v1880, 0
      %v1900 = vmul.f32 %v1896, %v1898
      %v1901 = vpack.c.bf16 %v1900, %v1900
      %v1902 = vld [vmem:[%s15] sm:$0xf]
      %v1903 = vld [vmem:[%s15 + $0x4] sm:$0xf]
      %v1904 = vld [vmem:[%s15 + $0x8] sm:$0xf]
      %v1905 = vld [vmem:[%s15 + $0xc] sm:$0xf]
      %v1906 = vld [vmem:[%s15 + $0x10] sm:$0xf]
      %v1907 = vld [vmem:[%s15 + $0x14] sm:$0xf]
      %v1908 = vld [vmem:[%s15 + $0x18] sm:$0xf]
      %v1909 = vld [vmem:[%s15 + $0x1c] sm:$0xf]
      %v1910 = vld [vmem:[%s15 + $0x20] sm:$0xf]
      %v1911 = vld [vmem:[%s15 + $0x24] sm:$0xf]
      %v1912 = vld [vmem:[%s15 + $0x28] sm:$0xf]
      %v1913 = vld [vmem:[%s15 + $0x2c] sm:$0xf]
      %v1914 = vld [vmem:[%s15 + $0x30] sm:$0xf]
      %v1915 = vld [vmem:[%s15 + $0x34] sm:$0xf]
      %v1916 = vld [vmem:[%s15 + $0x38] sm:$0xf]
      %v1917 = vld [vmem:[%s15 + $0x3c] sm:$0xf]
      %v1934 = vunpack.c.l.b16 %v1902
      %v1935 = vunpack.c.l.b16 %v1903
      %v1936 = vunpack.c.l.b16 %v1904
      %v1937 = vunpack.c.l.b16 %v1905
      %v1938 = vunpack.c.l.b16 %v1906
      %v1939 = vunpack.c.l.b16 %v1907
      %v1940 = vunpack.c.l.b16 %v1908
      %v1941 = vunpack.c.l.b16 %v1909
      %v1942 = vunpack.c.l.b16 %v1910
      %v1943 = vunpack.c.l.b16 %v1911
      %v1944 = vunpack.c.l.b16 %v1912
      %v1945 = vunpack.c.l.b16 %v1913
      %v1946 = vunpack.c.l.b16 %v1914
      %v1947 = vunpack.c.l.b16 %v1915
      %v1948 = vunpack.c.l.b16 %v1916
      %v1949 = vunpack.c.l.b16 %v1917
      %v1950 = vpack.c.b16 %v1935, %v1934
      %v1951 = vpack.c.b16 %v1937, %v1936
      %v1952 = vpack.c.b16 %v1939, %v1938
      %v1953 = vpack.c.b16 %v1941, %v1940
      %v1954 = vpack.c.b16 %v1943, %v1942
      %v1955 = vpack.c.b16 %v1945, %v1944
      %v1956 = vpack.c.b16 %v1947, %v1946
      %v1957 = vpack.c.b16 %v1949, %v1948
      %1966 = vmatpush.bf16.msra.mxu0 %v1957
      %1967 = vmatpush.bf16.msra.mxu0 %v1956
      %1968 = vmatpush.bf16.msra.mxu0 %v1955
      %1969 = vmatpush.bf16.msra.mxu0 %v1954
      %1970 = vmatpush.bf16.msra.mxu0 %v1953
      %1971 = vmatpush.bf16.msra.mxu0 %v1952
      %1972 = vmatpush.bf16.msra.mxu0 %v1951
      %1973 = vmatpush.bf16.msra.mxu0 %v1950
      %1974 = vmatmul.bf16.gmra.mxu0 %v1901
      %v1975 = vpop.f32.mrf.mxu0
      %v1976 = vadd.f32 0.0, %v1975
      %v1977 = vpop.f32.mrf.mxu0
      %1978 = vdwg.mxu0
      %v1979 = vmax.f32 %v1976, 0.0
      %v1980 = vpack.c.bf16 %v1979, %v1979
      %v1981 = vld [vmem:[%s16] sm:$0xf]
      %v1982 = vld [vmem:[%s16 + $0x4] sm:$0xf]
      %v1983 = vld [vmem:[%s16 + $0x8] sm:$0xf]
      %v1984 = vld [vmem:[%s16 + $0xc] sm:$0xf]
      %v1985 = vld [vmem:[%s16 + $0x10] sm:$0xf]
      %v1986 = vld [vmem:[%s16 + $0x14] sm:$0xf]
      %v1987 = vld [vmem:[%s16 + $0x18] sm:$0xf]
      %v1988 = vld [vmem:[%s16 + $0x1c] sm:$0xf]
      %v1997 = vunpack.c.l.b16 %v1981
      %v1998 = vunpack.c.l.b16 %v1982
      %v1999 = vunpack.c.l.b16 %v1983
      %v2000 = vunpack.c.l.b16 %v1984
      %v2001 = vunpack.c.l.b16 %v1985
      %v2002 = vunpack.c.l.b16 %v1986
      %v2003 = vunpack.c.l.b16 %v1987
      %v2004 = vunpack.c.l.b16 %v1988
      %v2005 = vpack.c.b16 %v1998, %v1997
      %v2006 = vpack.c.b16 %v2000, %v1999
      %v2007 = vpack.c.b16 %v2002, %v2001
      %v2008 = vpack.c.b16 %v2004, %v2003
      %vm2013 = vcmask 523264
      %v2015 = vsel %vm2013, %v1980, 0
      %2017 = vmatpush.bf16.msra.mxu0 0
      %2018 = vmatpush.bf16.msra.mxu0 0
      %2019 = vmatpush.bf16.msra.mxu0 0
      %2020 = vmatpush.bf16.msra.mxu0 0
      %2021 = vmatpush.bf16.msra.mxu0 %v2008
      %2022 = vmatpush.bf16.msra.mxu0 %v2007
      %2023 = vmatpush.bf16.msra.mxu0 %v2006
      %2024 = vmatpush.bf16.msra.mxu0 %v2005
      %2025 = vmatmul.bf16.gmra.mxu0 %v2015
      %v2026 = vpop.f32.mrf.mxu0
      %v2027 = vadd.f32 0.0, %v2026
      %v2028 = vpop.f32.mrf.mxu0
      %2029 = vdwg.mxu0
      %v2030 = vadd.f32 %v1879, %v2027
      %v2031 = vpack.c.bf16 %v2030, %v2030
      %2032 = vst [vmem:[%s574] sm:$0xf] %v2031
      %p2033 = scmp.lt.s32.totalorder %s28, 1
      %s2034 = scalar_select %p2033, %s28, 1
      %s2035 = smul.addr %s2034, 4
      %s2036 = scalar_lea.vmem %s17, %s2035
      // Predicated region
      $region89: #{forward.4} parent=87 // pred_check
        %p2037 = pneg %p418
      $region90: #{forward.4} parent=87 // pred_check_branch
        %2039 = sbr.rel (%p2037) target = $region92
      $region91: #{forward.4} parent=87 // pred_region
        _
      $region92: #{forward.4} parent=87 // pred_fallthru
        _
    $region88: #{forward.4} parent=5 // pred_fallthru
      _
    %p2040 = scmp.le.s32.totalorder 2, %s23
    // Predicated region
    $region93: #{forward.4} parent=5 // pred_check
      %p2041 = pneg %p2040
    $region94: #{forward.4} parent=5 // pred_check_branch
      %2043 = sbr.rel (%p2041) target = $region96
    $region95: #{forward.4} parent=5 // pred_region
      %s2044 = ssub.s32 %s23, 2
      // Predicated region
      $region97: #{forward.4} parent=95 // pred_check
        %p2045 = pneg %p424
      $region98: #{forward.4} parent=95 // pred_check_branch
        %2047 = sbr.rel (%p2045) target = $region100
      $region99: #{forward.4} parent=95 // pred_region
        %p2048 = scmp.lt.s32.totalorder %s29, 1
        %s2049 = scalar_select %p2048, %s29, 1
        %s2050 = smul.addr %s2049, 4
        %s2051 = scalar_lea.vmem %s17, %s2050
      $region100: #{forward.4} parent=95 // pred_fallthru
        _
    $region96: #{forward.4} parent=5 // pred_fallthru
      _
  $region6: #{forward.4} parent=0 // loop_footer
    %s27 = sadd.s32 1, %s23
  $region7: #{forward.4} parent=0 // loop_footer_branch
    %22 = sbr.rel target = $region3
  $region8: #{forward.4} parent=0 // loop_exit
    _

</llo_original>
